<compile_context>
chip_gen: v5e
topology: v5e:2x2
jax: 0.10.0
libtpu: 0.0.40
codegen_flags: <defaults>
</compile_context>

<pallas_src>
import math

import numpy as np

import jax
import jax.numpy as jnp
from jax.experimental import pallas as pl
from jax.experimental.pallas import tpu as pltpu

# ----------------------------- model hyper-params ------------------------------------
BATCH     = 2
SEQ_LEN   = 64     # args.seq_len
ENC_IN    = 4      # args.enc_in
D_MODEL   = 32     # args.d_model
NUM_CLASS = 5      # args.num_class
HEADS     = 4
DK        = D_MODEL // HEADS          # 8

# stage geometry: seq 64 -> 7 -> 3 -> 1 positions, d_model = 32 throughout
#   stage 0: Conv1d(4, 32, K=16, stride=8), tr=2   -> Lout = (64-16)//8 + 1 = 7
#   stage 1: Conv1d(32, 32, K=2,  stride=2), tr=1  -> Lout = (7-2)//2  + 1 = 3
#   stage 2: Conv1d(32, 32, K=2,  stride=2), tr=1  -> Lout = (3-2)//2  + 1 = 1
LAYERS_PER_STAGE = 2
N_LAYERS = 3 * LAYERS_PER_STAGE       # 6 transformer layers in total

NUM_CLASS_PAD = 128                   # lane-dense classifier output (sliced in wrapper)

# packed-slab sizes
N_SQ  = 3 * 5 + 3 * N_LAYERS          # 15 pos-conv taps + 18 q/k/v weights = 33
N_V32 = 3 * 4 + 12 * N_LAYERS         # 12 stage vectors + 72 layer vectors  = 84

# vec32 row layout:
#   stage s  (rows 4*s + .): 0 b_proj, 1 g_in, 2 b_in, 3 b_pos
#   layer L  (rows 12 + 12*L + .): 0 bq, 1 bk, 2 bv, 3 g1, 4 b1, 5 g2, 6 b2,
#                                  7 b_ff2, 8 a1(filled), 9 a2(filled), 10 g_tr, 11 beta_tr
# wsq index layout:
#   pos-conv tap k of stage s -> 5*s + k        (k = 0..4, offset k-2)
#   layer L: wq -> 15 + 3*L, wk -> 16 + 3*L, wv -> 17 + 3*L


# ----------------------------- the single fused kernel -------------------------------
def _former_time_kernel(patches_ref, wproj_ref, wsq_ref, wff1_ref, wff2_ref,
                        wtr_ref, v32_ref, v128_ref, wout_ref, o_ref):
    f32 = jnp.float32

    def mm(a, b):
        return jnp.dot(a, b, preferred_element_type=f32)

    def vrow(r):                                   # (1, 32) slice of the packed vector slab
        return v32_ref[r:r + 1, :]

    def ln(z, g_row, b_row, eps=1e-5):
        # independent sum / sum-of-squares so the two XLU reduces overlap
        inv_n = 1.0 / z.shape[-1]
        s1 = jnp.sum(z, axis=-1, keepdims=True)
        s2 = jnp.sum(z * z, axis=-1, keepdims=True)
        mu = s1 * inv_n
        var = s2 * inv_n - mu * mu
        return (z - mu) * jax.lax.rsqrt(var + eps) * vrow(g_row) + vrow(b_row)

    def gelu(x):
        # TODO(synk): torch nn.GELU() default is exact erf-GELU; tanh approximation is used
        # for a Mosaic-safe elementwise lowering (~1e-3 deviation).
        c = math.sqrt(2.0 / math.pi)
        return 0.5 * x * (1.0 + jnp.tanh(c * (x + 0.044715 * x * x * x)))

    # ---- hoisted constants (JAX does not CSE iota/broadcasts; build them once) ------
    r32 = jax.lax.broadcasted_iota(jnp.int32, (32, 32), 0)
    c32 = jax.lax.broadcasted_iota(jnp.int32, (32, 32), 1)
    head_block_mask = (jax.lax.shift_right_logical(r32, 3) ==
                       jax.lax.shift_right_logical(c32, 3)).astype(f32)   # (32, 32)

    def shift_rows(xs, off):
        """sh[t] = xs[t + off], zero-padded at the edges ('same' conv padding)."""
        L, D = xs.shape
        if off == 0:
            return xs
        if off > 0:
            return jnp.concatenate([xs[off:], jnp.zeros((off, D), f32)], axis=0)
        return jnp.concatenate([jnp.zeros((-off, D), f32), xs[:off]], axis=0)

    def pos_conv(xs, s):
        """Conditional position encoding: Conv1d(D, D, 5, padding='same') over time."""
        Lout = xs.shape[0]
        pos = mm(xs, wsq_ref[5 * s + 2])                       # centre tap (offset 0)
        if Lout > 1:                                           # Lout==1: other taps only see padding
            for k in (0, 1, 3, 4):
                pos = pos + mm(shift_rows(xs, k - 2), wsq_ref[5 * s + k])
        return pos + vrow(4 * s + 3)

    def attention(x, L, tr, wtr_idx):
        """MultiHeadAttention (reference never applies output_linear; dropout = identity)."""
        N = x.shape[0]
        base = 12 + 12 * L
        if tr > 1:
            blk = wtr_ref[wtr_idx]                             # (M, 8): cols 0..6 weight, col 7 bias
            # tr_layer = Conv1d(N, N//tr, 1): sequence positions are the conv channels
            x_ = mm(blk[:, 0:7], x) + blk[:, 7:8]
            x_ = ln(x_, base + 10, base + 11)
        else:
            x_ = x
        v = mm(x_, wsq_ref[17 + 3 * L]) + vrow(base + 2)       # (M, 32)
        if N == 1:
            return v                                           # softmax over a single key is identity
        q = mm(x, wsq_ref[15 + 3 * L]) + vrow(base + 0)        # (N, 32)
        k = mm(x_, wsq_ref[16 + 3 * L]) + vrow(base + 1)       # (M, 32)
        # all 4 heads stacked along sublanes: rows [8h, 8h+8) carry head h (lanes 8h..8h+7)
        if N < 8:
            q = jnp.concatenate([q, jnp.zeros((8 - N, 32), f32)], axis=0)
        qs = jnp.concatenate([q, q, q, q], axis=0) * head_block_mask        # (32, 32)
        s = jax.lax.dot_general(qs, k, (((1,), (1,)), ((), ())),
                                preferred_element_type=f32) * (1.0 / math.sqrt(DK))
        s = s - jnp.max(s, axis=-1, keepdims=True)
        p = jnp.exp(s)
        p = p * pl.reciprocal(jnp.sum(p, axis=-1, keepdims=True), approx=True)
        o = mm(p, v) * head_block_mask                                       # (32, 32)
        o = o[0:8] + o[8:16] + o[16:24] + o[24:32]   # (8, 32): heads occupy disjoint lanes
        return o[:N]

    def trm(x, L, tr, wtr_idx=None):
        """TransformerBlock: two residual-scaled LayerNorm sublayers (attn, fused FFN)."""
        base = 12 + 12 * L
        attn = attention(x, L, tr, wtr_idx)
        x = ln(x + vrow(base + 8) * attn, base + 3, base + 4)
        h = gelu(mm(x, wff1_ref[L]) + v128_ref[L:L + 1, :])    # (N, 128), never leaves vregs
        y = mm(h, wff2_ref[L]) + vrow(base + 7)
        return ln(x + vrow(base + 9) * y, base + 5, base + 6)

    # ---- stage 0 (64 -> 7, K=16, stride=8, tr=2): input projection is ONE im2col matmul
    x = mm(patches_ref[0], wproj_ref[0]) + vrow(0)             # (7, 64) @ (64, 32)
    x = ln(x, 1, 2)
    x = x + pos_conv(x, 0)
    x = trm(x, 0, 2, 0)
    x = trm(x, 1, 2, 1)

    # ---- stage 1 (7 -> 3, K=2, stride=2): gather even/odd rows, two tap matmuls ------
    w0 = wproj_ref[1][0:32, :]
    w1 = wproj_ref[1][32:64, :]
    xe = jnp.concatenate([x[0:1], x[2:3], x[4:5]], axis=0)     # rows 0, 2, 4  (tap k=0)
    xo = jnp.concatenate([x[1:2], x[3:4], x[5:6]], axis=0)     # rows 1, 3, 5  (tap k=1)
    x = mm(xe, w0) + mm(xo, w1) + vrow(4)
    x = ln(x, 5, 6)
    x = x + pos_conv(x, 1)
    x = trm(x, 2, 1)
    x = trm(x, 3, 1)

    # ---- stage 2 (3 -> 1, K=2, stride=2): Lout==1, conv/attention/pool all specialize -
    w0 = wproj_ref[2][0:32, :]
    w1 = wproj_ref[2][32:64, :]
    x = mm(x[0:1], w0) + mm(x[1:2], w1) + vrow(8)
    x = ln(x, 9, 10)
    x = x + pos_conv(x, 2)
    x = trm(x, 4, 1)
    x = trm(x, 5, 1)

    # ---- 'mean' pooling over time (single row -> no-op) + classifier ------------------
    pooled = x if x.shape[0] == 1 else jnp.mean(x, axis=0, keepdims=True)
    logits = mm(pooled, wout_ref[...]) + v128_ref[6:7, :]       # (1, 128) lane-dense
    o_ref[0] = logits.astype(o_ref.dtype)


# ----------------------------- wrapper ------------------------------------------------
def _im2col_stage0(x_enc):
    """(B, 64, 4) -> (B, 7, 64) with patches[b, t, k*Cin + c] = x[b, t*8 + k, c].

    Pure layout plumbing done once in XLA outside the kernel."""
    B, L, C = x_enc.shape
    K, stride, Lout = 16, 8, 7
    idx = jnp.arange(Lout)[:, None] * stride + jnp.arange(K)[None, :]     # (7, 16)
    patches = x_enc[:, idx, :]                                            # (B, 7, 16, 4)
    return patches.reshape(B, Lout, K * C).astype(jnp.float32)


def model_forward(x_enc, x_mark_enc, x_dec, x_mark_dec, params):
    del x_mark_enc, x_dec, x_mark_dec                          # unused by FormerTime
    B = x_enc.shape[0]
    patches = _im2col_stage0(x_enc)                            # (B, 7, 64)

    out = pl.pallas_call(
        _former_time_kernel,
        out_shape=jax.ShapeDtypeStruct((B, 1, NUM_CLASS_PAD), jnp.float32),
        grid=(B,),
        in_specs=[
            pl.BlockSpec((1, 7, 64), lambda b: (b, 0, 0)),                 # im2col'd input
            pl.BlockSpec((3, 64, 32), lambda b: (0, 0, 0)),                # wproj slab
            pl.BlockSpec((N_SQ, 32, 32), lambda b: (0, 0, 0)),             # all 32x32 weights
            pl.BlockSpec((N_LAYERS, 32, 128), lambda b: (0, 0, 0)),        # FFN up weights
            pl.BlockSpec((N_LAYERS, 128, 32), lambda b: (0, 0, 0)),        # FFN down weights
            pl.BlockSpec((2, 3, 8), lambda b: (0, 0, 0)),                  # tr conv weight+bias
            pl.BlockSpec((N_V32, 32), lambda b: (0, 0)),                   # 32-wide vectors/scalars
            pl.BlockSpec((7, 128), lambda b: (0, 0)),                      # 128-wide vectors
            pl.BlockSpec((32, 128), lambda b: (0, 0)),                     # padded classifier weight
        ],
        out_specs=pl.BlockSpec((1, 1, NUM_CLASS_PAD), lambda b: (b, 0, 0)),
        compiler_params=pltpu.CompilerParams(dimension_semantics=("parallel",)),
    )(patches, params["wproj"], params["wsq"], params["wff1"], params["wff2"],
      params["wtr"], params["vec32"], params["vec128"], params["wout"])
    return out[:, 0, :NUM_CLASS]


# ----------------------------- deterministic parameter init --------------------------
class KeyGen:
    def __init__(self, seed):
        self.key = jax.random.PRNGKey(seed)

    def __call__(self):
        self.key, k = jax.random.split(self.key)
        return k


def _xavier_normal(key, fan_in, fan_out):
    std = math.sqrt(2.0 / (fan_in + fan_out))
    return (std * jax.random.normal(key, (fan_in, fan_out))).astype(jnp.float32)


def _small_normal(key, shape, std=0.05):
    return (std * jax.random.normal(key, shape)).astype(jnp.float32)


def init_params(seed=0):
    kg = KeyGen(seed)

    # square-weight slab: 15 positional-conv taps (3 stages x 5) then q/k/v per layer
    wsq = []
    for _s in range(3):
        for _k in range(5):
            wsq.append(_small_normal(kg(), (32, 32)))
    for _L in range(N_LAYERS):
        for _ in range(3):                       # q, k, v (xavier_normal, torch _init_weights)
            wsq.append(_xavier_normal(kg(), 32, 32))
    wsq = jnp.stack(wsq)                         # (33, 32, 32)

    # im2col input-projection weights: one (K*Cin, D) = (64, 32) matrix per stage
    wproj = jnp.stack([_small_normal(kg(), (64, 32)) for _ in range(3)])

    # FFN weights
    wff1 = jnp.stack([_xavier_normal(kg(), 32, 128) for _ in range(N_LAYERS)])
    wff2 = jnp.stack([_xavier_normal(kg(), 128, 32) for _ in range(N_LAYERS)])

    # tr-branch Conv1d(7, 3, 1) for the two stage-0 layers; column 7 holds the bias
    wtr = []
    for _ in range(2):
        w = _small_normal(kg(), (3, 7))
        wtr.append(jnp.concatenate([w, jnp.zeros((3, 1), jnp.float32)], axis=1))
    wtr = jnp.stack(wtr)                          # (2, 3, 8)

    # 32-wide vectors and residual-scale scalars, packed row-wise
    v32 = np.zeros((N_V32, 32), np.float32)
    for s in range(3):
        v32[4 * s + 1] = 1.0                      # input_norm gain (bias/b_proj/b_pos stay 0)
    for L in range(N_LAYERS):
        b = 12 + 12 * L
        v32[b + 0] = 0.1                          # q bias (torch Linear bias init = 0.1)
        v32[b + 1] = 0.1                          # k bias
        v32[b + 2] = 0.1                          # v bias
        v32[b + 3] = 1.0                          # LN1 gain
        v32[b + 5] = 1.0                          # LN2 gain
        v32[b + 7] = 0.1                          # FFN down bias
        v32[b + 8] = 1e-8                         # residual scale a1 (row filled with scalar)
        v32[b + 9] = 1e-8                         # residual scale a2
        v32[b + 10] = 1.0                         # tr-branch LN gain (used only by stage-0 layers)
    v32 = jnp.asarray(v32)

    # 128-wide vectors: FFN up biases per layer + padded classifier bias
    v128 = np.zeros((7, 128), np.float32)
    v128[0:N_LAYERS] = 0.1
    v128[6, :NUM_CLASS] = 0.1
    v128 = jnp.asarray(v128)

    # classifier padded to a lane-dense (32, 128); real classes in columns [:NUM_CLASS]
    wout = jnp.zeros((32, NUM_CLASS_PAD), jnp.float32).at[:, :NUM_CLASS].set(
        _xavier_normal(kg(), D_MODEL, NUM_CLASS))

    return dict(wproj=wproj, wsq=wsq, wff1=wff1, wff2=wff2, wtr=wtr,
                vec32=v32, vec128=v128, wout=wout)


# ----------------------------- main ---------------------------------------------------
if __name__ == "__main__":
    params = init_params(seed=0)

    key = jax.random.PRNGKey(0)
    k1, k2, k3, k4 = jax.random.split(key, 4)
    x_enc = jax.random.normal(k1, (BATCH, SEQ_LEN, ENC_IN), jnp.float32)
    x_mark_enc = jnp.zeros((BATCH, SEQ_LEN, 1), jnp.float32)   # unused by FormerTime
    x_dec = jnp.zeros((BATCH, 8, ENC_IN), jnp.float32)         # unused
    x_mark_dec = jnp.zeros((BATCH, 8, 1), jnp.float32)         # unused

    fwd = jax.jit(model_forward)
    out = fwd(x_enc, x_mark_enc, x_dec, x_mark_dec, params)
    out = jax.block_until_ready(out)

    assert out.shape == (BATCH, NUM_CLASS), out.shape
    assert bool(jnp.all(jnp.isfinite(out)))
    print("KERNEL_OK")
</pallas_src>

<mosaic_0001>
module attributes {stable_mosaic.version = 11 : i64} {
  func.func @_former_time_kernel(%arg0: i32, %arg1: memref<1x7x64xf32, #tpu.memory_space<vmem>>, %arg2: memref<3x64x32xf32, #tpu.memory_space<vmem>>, %arg3: memref<33x32x32xf32, #tpu.memory_space<vmem>>, %arg4: memref<6x32x128xf32, #tpu.memory_space<vmem>>, %arg5: memref<6x128x32xf32, #tpu.memory_space<vmem>>, %arg6: memref<2x3x8xf32, #tpu.memory_space<vmem>>, %arg7: memref<84x32xf32, #tpu.memory_space<vmem>>, %arg8: memref<7x128xf32, #tpu.memory_space<vmem>>, %arg9: memref<32x128xf32, #tpu.memory_space<vmem>>, %arg10: memref<1x1x128xf32, #tpu.memory_space<vmem>>) attributes {dimension_semantics = [#tpu.dimension_semantics<parallel>], iteration_bounds = array<i64: 2>, scalar_prefetch = 0 : i64, scratch_operands = 0 : i64, tpu.core_type = #tpu.core_type<tc>, window_params = [{transform_indices = @transform_0, window_bounds = array<i64: 1, 7, 64>}, {pipeline_mode = #tpu.pipeline_mode<synchronous>, transform_indices = @transform_1, window_bounds = array<i64: 3, 64, 32>}, {pipeline_mode = #tpu.pipeline_mode<synchronous>, transform_indices = @transform_2, window_bounds = array<i64: 33, 32, 32>}, {pipeline_mode = #tpu.pipeline_mode<synchronous>, transform_indices = @transform_3, window_bounds = array<i64: 6, 32, 128>}, {pipeline_mode = #tpu.pipeline_mode<synchronous>, transform_indices = @transform_4, window_bounds = array<i64: 6, 128, 32>}, {pipeline_mode = #tpu.pipeline_mode<synchronous>, transform_indices = @transform_5, window_bounds = array<i64: 2, 3, 8>}, {pipeline_mode = #tpu.pipeline_mode<synchronous>, transform_indices = @transform_6, window_bounds = array<i64: 84, 32>}, {pipeline_mode = #tpu.pipeline_mode<synchronous>, transform_indices = @transform_7, window_bounds = array<i64: 7, 128>}, {pipeline_mode = #tpu.pipeline_mode<synchronous>, transform_indices = @transform_8, window_bounds = array<i64: 32, 128>}, {transform_indices = @transform_9, window_bounds = array<i64: 1, 1, 128>}]} {
    %0 = tpu.iota {dimensions = array<i32: 0>} : vector<32x32xi32>
    %1 = tpu.iota {dimensions = array<i32: 1>} : vector<32x32xi32>
    %c3_i32 = arith.constant 3 : i32
    %2 = vector.broadcast %c3_i32 : i32 to vector<32x32xi32>
    %3 = arith.shrui %0, %2 : vector<32x32xi32>
    %c3_i32_0 = arith.constant 3 : i32
    %4 = vector.broadcast %c3_i32_0 : i32 to vector<32x32xi32>
    %5 = arith.shrui %1, %4 : vector<32x32xi32>
    %6 = arith.cmpi eq, %3, %5 : vector<32x32xi32>
    %7 = arith.extui %6 : vector<32x32xi1> to vector<32x32xi32>
    %8 = arith.sitofp %7 : vector<32x32xi32> to vector<32x32xf32>
    %c0 = arith.constant 0 : index
    %c0_1 = arith.constant 0 : index
    %c0_2 = arith.constant 0 : index
    %9 = vector.load %arg1[%c0, %c0_1, %c0_2] : memref<1x7x64xf32, #tpu.memory_space<vmem>>, vector<1x7x64xf32>
    %10 = vector.shape_cast %9 : vector<1x7x64xf32> to vector<7x64xf32>
    %c0_3 = arith.constant 0 : index
    %c0_4 = arith.constant 0 : index
    %c0_5 = arith.constant 0 : index
    %11 = vector.load %arg2[%c0_3, %c0_4, %c0_5] : memref<3x64x32xf32, #tpu.memory_space<vmem>>, vector<1x64x32xf32>
    %12 = vector.shape_cast %11 : vector<1x64x32xf32> to vector<64x32xf32>
    %cst = arith.constant dense<0.000000e+00> : vector<7x32xf32>
    %13 = tpu.matmul %10, %12, %cst {dimension_numbers = #tpu.dot_dimension_numbers<[1], [0], [0], [1], [0, 0, 1, 1], [], []>} : vector<7x64xf32>, vector<64x32xf32>, vector<7x32xf32> -> vector<7x32xf32>
    %c0_6 = arith.constant 0 : index
    %c0_7 = arith.constant 0 : index
    %14 = vector.load %arg7[%c0_6, %c0_7] : memref<84x32xf32, #tpu.memory_space<vmem>>, vector<1x32xf32>
    %15 = vector.broadcast %14 : vector<1x32xf32> to vector<7x32xf32>
    %16 = arith.addf %13, %15 : vector<7x32xf32>
    %cst_8 = arith.constant dense<0.000000e+00> : vector<7xf32>
    %17 = vector.multi_reduction <add>, %16, %cst_8 [1] : vector<7x32xf32> to vector<7xf32>
    %18 = vector.shape_cast %17 : vector<7xf32> to vector<7x1xf32>
    %19 = arith.mulf %16, %16 : vector<7x32xf32>
    %cst_9 = arith.constant dense<0.000000e+00> : vector<7xf32>
    %20 = vector.multi_reduction <add>, %19, %cst_9 [1] : vector<7x32xf32> to vector<7xf32>
    %21 = vector.shape_cast %20 : vector<7xf32> to vector<7x1xf32>
    %cst_10 = arith.constant 3.125000e-02 : f32
    %22 = vector.broadcast %cst_10 : f32 to vector<7x1xf32>
    %23 = arith.mulf %18, %22 : vector<7x1xf32>
    %cst_11 = arith.constant 3.125000e-02 : f32
    %24 = vector.broadcast %cst_11 : f32 to vector<7x1xf32>
    %25 = arith.mulf %21, %24 : vector<7x1xf32>
    %26 = arith.mulf %23, %23 : vector<7x1xf32>
    %27 = arith.subf %25, %26 : vector<7x1xf32>
    %28 = vector.broadcast %23 : vector<7x1xf32> to vector<7x32xf32>
    %29 = arith.subf %16, %28 : vector<7x32xf32>
    %cst_12 = arith.constant 9.99999974E-6 : f32
    %30 = vector.broadcast %cst_12 : f32 to vector<7x1xf32>
    %31 = arith.addf %27, %30 : vector<7x1xf32>
    %32 = math.rsqrt %31 : vector<7x1xf32>
    %33 = vector.broadcast %32 : vector<7x1xf32> to vector<7x32xf32>
    %34 = arith.mulf %29, %33 : vector<7x32xf32>
    %c1 = arith.constant 1 : index
    %c0_13 = arith.constant 0 : index
    %35 = vector.load %arg7[%c1, %c0_13] : memref<84x32xf32, #tpu.memory_space<vmem>>, vector<1x32xf32>
    %36 = vector.broadcast %35 : vector<1x32xf32> to vector<7x32xf32>
    %37 = arith.mulf %34, %36 : vector<7x32xf32>
    %c2 = arith.constant 2 : index
    %c0_14 = arith.constant 0 : index
    %38 = vector.load %arg7[%c2, %c0_14] : memref<84x32xf32, #tpu.memory_space<vmem>>, vector<1x32xf32>
    %39 = vector.broadcast %38 : vector<1x32xf32> to vector<7x32xf32>
    %40 = arith.addf %37, %39 : vector<7x32xf32>
    %c2_15 = arith.constant 2 : index
    %c0_16 = arith.constant 0 : index
    %c0_17 = arith.constant 0 : index
    %41 = vector.load %arg3[%c2_15, %c0_16, %c0_17] : memref<33x32x32xf32, #tpu.memory_space<vmem>>, vector<1x32x32xf32>
    %42 = vector.shape_cast %41 : vector<1x32x32xf32> to vector<32x32xf32>
    %cst_18 = arith.constant dense<0.000000e+00> : vector<7x32xf32>
    %43 = tpu.matmul %40, %42, %cst_18 {dimension_numbers = #tpu.dot_dimension_numbers<[1], [0], [0], [1], [0, 0, 1, 1], [], []>} : vector<7x32xf32>, vector<32x32xf32>, vector<7x32xf32> -> vector<7x32xf32>
    %cst_19 = arith.constant 0.000000e+00 : f32
    %44 = vector.broadcast %cst_19 : f32 to vector<2x32xf32>
    %45 = vector.extract_strided_slice %40 {offsets = [0, 0], sizes = [5, 32], strides = [1, 1]} : vector<7x32xf32> to vector<5x32xf32>
    %46 = tpu.concatenate %44, %45 in 0 : vector<2x32xf32>, vector<5x32xf32> -> vector<7x32xf32>
    %c0_20 = arith.constant 0 : index
    %c0_21 = arith.constant 0 : index
    %c0_22 = arith.constant 0 : index
    %47 = vector.load %arg3[%c0_20, %c0_21, %c0_22] : memref<33x32x32xf32, #tpu.memory_space<vmem>>, vector<1x32x32xf32>
    %48 = vector.shape_cast %47 : vector<1x32x32xf32> to vector<32x32xf32>
    %cst_23 = arith.constant dense<0.000000e+00> : vector<7x32xf32>
    %49 = tpu.matmul %46, %48, %cst_23 {dimension_numbers = #tpu.dot_dimension_numbers<[1], [0], [0], [1], [0, 0, 1, 1], [], []>} : vector<7x32xf32>, vector<32x32xf32>, vector<7x32xf32> -> vector<7x32xf32>
    %50 = arith.addf %43, %49 : vector<7x32xf32>
    %cst_24 = arith.constant 0.000000e+00 : f32
    %51 = vector.broadcast %cst_24 : f32 to vector<1x32xf32>
    %52 = vector.extract_strided_slice %40 {offsets = [0, 0], sizes = [6, 32], strides = [1, 1]} : vector<7x32xf32> to vector<6x32xf32>
    %53 = tpu.concatenate %51, %52 in 0 : vector<1x32xf32>, vector<6x32xf32> -> vector<7x32xf32>
    %c1_25 = arith.constant 1 : index
    %c0_26 = arith.constant 0 : index
    %c0_27 = arith.constant 0 : index
    %54 = vector.load %arg3[%c1_25, %c0_26, %c0_27] : memref<33x32x32xf32, #tpu.memory_space<vmem>>, vector<1x32x32xf32>
    %55 = vector.shape_cast %54 : vector<1x32x32xf32> to vector<32x32xf32>
    %cst_28 = arith.constant dense<0.000000e+00> : vector<7x32xf32>
    %56 = tpu.matmul %53, %55, %cst_28 {dimension_numbers = #tpu.dot_dimension_numbers<[1], [0], [0], [1], [0, 0, 1, 1], [], []>} : vector<7x32xf32>, vector<32x32xf32>, vector<7x32xf32> -> vector<7x32xf32>
    %57 = arith.addf %50, %56 : vector<7x32xf32>
    %58 = vector.extract_strided_slice %40 {offsets = [1, 0], sizes = [6, 32], strides = [1, 1]} : vector<7x32xf32> to vector<6x32xf32>
    %cst_29 = arith.constant 0.000000e+00 : f32
    %59 = vector.broadcast %cst_29 : f32 to vector<1x32xf32>
    %60 = tpu.concatenate %58, %59 in 0 : vector<6x32xf32>, vector<1x32xf32> -> vector<7x32xf32>
    %c3 = arith.constant 3 : index
    %c0_30 = arith.constant 0 : index
    %c0_31 = arith.constant 0 : index
    %61 = vector.load %arg3[%c3, %c0_30, %c0_31] : memref<33x32x32xf32, #tpu.memory_space<vmem>>, vector<1x32x32xf32>
    %62 = vector.shape_cast %61 : vector<1x32x32xf32> to vector<32x32xf32>
    %cst_32 = arith.constant dense<0.000000e+00> : vector<7x32xf32>
    %63 = tpu.matmul %60, %62, %cst_32 {dimension_numbers = #tpu.dot_dimension_numbers<[1], [0], [0], [1], [0, 0, 1, 1], [], []>} : vector<7x32xf32>, vector<32x32xf32>, vector<7x32xf32> -> vector<7x32xf32>
    %64 = arith.addf %57, %63 : vector<7x32xf32>
    %65 = vector.extract_strided_slice %40 {offsets = [2, 0], sizes = [5, 32], strides = [1, 1]} : vector<7x32xf32> to vector<5x32xf32>
    %cst_33 = arith.constant 0.000000e+00 : f32
    %66 = vector.broadcast %cst_33 : f32 to vector<2x32xf32>
    %67 = tpu.concatenate %65, %66 in 0 : vector<5x32xf32>, vector<2x32xf32> -> vector<7x32xf32>
    %c4 = arith.constant 4 : index
    %c0_34 = arith.constant 0 : index
    %c0_35 = arith.constant 0 : index
    %68 = vector.load %arg3[%c4, %c0_34, %c0_35] : memref<33x32x32xf32, #tpu.memory_space<vmem>>, vector<1x32x32xf32>
    %69 = vector.shape_cast %68 : vector<1x32x32xf32> to vector<32x32xf32>
    %cst_36 = arith.constant dense<0.000000e+00> : vector<7x32xf32>
    %70 = tpu.matmul %67, %69, %cst_36 {dimension_numbers = #tpu.dot_dimension_numbers<[1], [0], [0], [1], [0, 0, 1, 1], [], []>} : vector<7x32xf32>, vector<32x32xf32>, vector<7x32xf32> -> vector<7x32xf32>
    %71 = arith.addf %64, %70 : vector<7x32xf32>
    %c3_37 = arith.constant 3 : index
    %c0_38 = arith.constant 0 : index
    %72 = vector.load %arg7[%c3_37, %c0_38] : memref<84x32xf32, #tpu.memory_space<vmem>>, vector<1x32xf32>
    %73 = vector.broadcast %72 : vector<1x32xf32> to vector<7x32xf32>
    %74 = arith.addf %71, %73 : vector<7x32xf32>
    %75 = arith.addf %40, %74 : vector<7x32xf32>
    %c0_39 = arith.constant 0 : index
    %c0_40 = arith.constant 0 : index
    %c0_41 = arith.constant 0 : index
    %76 = vector.load %arg6[%c0_39, %c0_40, %c0_41] : memref<2x3x8xf32, #tpu.memory_space<vmem>>, vector<1x3x8xf32>
    %77 = vector.shape_cast %76 : vector<1x3x8xf32> to vector<3x8xf32>
    %78 = vector.extract_strided_slice %77 {offsets = [0, 0], sizes = [3, 7], strides = [1, 1]} : vector<3x8xf32> to vector<3x7xf32>
    %cst_42 = arith.constant dense<0.000000e+00> : vector<3x32xf32>
    %79 = tpu.matmul %78, %75, %cst_42 {dimension_numbers = #tpu.dot_dimension_numbers<[1], [0], [0], [1], [0, 0, 1, 1], [], []>} : vector<3x7xf32>, vector<7x32xf32>, vector<3x32xf32> -> vector<3x32xf32>
    %80 = vector.extract_strided_slice %77 {offsets = [0, 7], sizes = [3, 1], strides = [1, 1]} : vector<3x8xf32> to vector<3x1xf32>
    %81 = vector.broadcast %80 : vector<3x1xf32> to vector<3x32xf32>
    %82 = arith.addf %79, %81 : vector<3x32xf32>
    %cst_43 = arith.constant dense<0.000000e+00> : vector<3xf32>
    %83 = vector.multi_reduction <add>, %82, %cst_43 [1] : vector<3x32xf32> to vector<3xf32>
    %84 = vector.shape_cast %83 : vector<3xf32> to vector<3x1xf32>
    %85 = arith.mulf %82, %82 : vector<3x32xf32>
    %cst_44 = arith.constant dense<0.000000e+00> : vector<3xf32>
    %86 = vector.multi_reduction <add>, %85, %cst_44 [1] : vector<3x32xf32> to vector<3xf32>
    %87 = vector.shape_cast %86 : vector<3xf32> to vector<3x1xf32>
    %cst_45 = arith.constant 3.125000e-02 : f32
    %88 = vector.broadcast %cst_45 : f32 to vector<3x1xf32>
    %89 = arith.mulf %84, %88 : vector<3x1xf32>
    %cst_46 = arith.constant 3.125000e-02 : f32
    %90 = vector.broadcast %cst_46 : f32 to vector<3x1xf32>
    %91 = arith.mulf %87, %90 : vector<3x1xf32>
    %92 = arith.mulf %89, %89 : vector<3x1xf32>
    %93 = arith.subf %91, %92 : vector<3x1xf32>
    %94 = vector.broadcast %89 : vector<3x1xf32> to vector<3x32xf32>
    %95 = arith.subf %82, %94 : vector<3x32xf32>
    %cst_47 = arith.constant 9.99999974E-6 : f32
    %96 = vector.broadcast %cst_47 : f32 to vector<3x1xf32>
    %97 = arith.addf %93, %96 : vector<3x1xf32>
    %98 = math.rsqrt %97 : vector<3x1xf32>
    %99 = vector.broadcast %98 : vector<3x1xf32> to vector<3x32xf32>
    %100 = arith.mulf %95, %99 : vector<3x32xf32>
    %c22 = arith.constant 22 : index
    %c0_48 = arith.constant 0 : index
    %101 = vector.load %arg7[%c22, %c0_48] : memref<84x32xf32, #tpu.memory_space<vmem>>, vector<1x32xf32>
    %102 = vector.broadcast %101 : vector<1x32xf32> to vector<3x32xf32>
    %103 = arith.mulf %100, %102 : vector<3x32xf32>
    %c23 = arith.constant 23 : index
    %c0_49 = arith.constant 0 : index
    %104 = vector.load %arg7[%c23, %c0_49] : memref<84x32xf32, #tpu.memory_space<vmem>>, vector<1x32xf32>
    %105 = vector.broadcast %104 : vector<1x32xf32> to vector<3x32xf32>
    %106 = arith.addf %103, %105 : vector<3x32xf32>
    %c17 = arith.constant 17 : index
    %c0_50 = arith.constant 0 : index
    %c0_51 = arith.constant 0 : index
    %107 = vector.load %arg3[%c17, %c0_50, %c0_51] : memref<33x32x32xf32, #tpu.memory_space<vmem>>, vector<1x32x32xf32>
    %108 = vector.shape_cast %107 : vector<1x32x32xf32> to vector<32x32xf32>
    %cst_52 = arith.constant dense<0.000000e+00> : vector<3x32xf32>
    %109 = tpu.matmul %106, %108, %cst_52 {dimension_numbers = #tpu.dot_dimension_numbers<[1], [0], [0], [1], [0, 0, 1, 1], [], []>} : vector<3x32xf32>, vector<32x32xf32>, vector<3x32xf32> -> vector<3x32xf32>
    %c14 = arith.constant 14 : index
    %c0_53 = arith.constant 0 : index
    %110 = vector.load %arg7[%c14, %c0_53] : memref<84x32xf32, #tpu.memory_space<vmem>>, vector<1x32xf32>
    %111 = vector.broadcast %110 : vector<1x32xf32> to vector<3x32xf32>
    %112 = arith.addf %109, %111 : vector<3x32xf32>
    %c15 = arith.constant 15 : index
    %c0_54 = arith.constant 0 : index
    %c0_55 = arith.constant 0 : index
    %113 = vector.load %arg3[%c15, %c0_54, %c0_55] : memref<33x32x32xf32, #tpu.memory_space<vmem>>, vector<1x32x32xf32>
    %114 = vector.shape_cast %113 : vector<1x32x32xf32> to vector<32x32xf32>
    %cst_56 = arith.constant dense<0.000000e+00> : vector<7x32xf32>
    %115 = tpu.matmul %75, %114, %cst_56 {dimension_numbers = #tpu.dot_dimension_numbers<[1], [0], [0], [1], [0, 0, 1, 1], [], []>} : vector<7x32xf32>, vector<32x32xf32>, vector<7x32xf32> -> vector<7x32xf32>
    %c12 = arith.constant 12 : index
    %c0_57 = arith.constant 0 : index
    %116 = vector.load %arg7[%c12, %c0_57] : memref<84x32xf32, #tpu.memory_space<vmem>>, vector<1x32xf32>
    %117 = vector.broadcast %116 : vector<1x32xf32> to vector<7x32xf32>
    %118 = arith.addf %115, %117 : vector<7x32xf32>
    %c16 = arith.constant 16 : index
    %c0_58 = arith.constant 0 : index
    %c0_59 = arith.constant 0 : index
    %119 = vector.load %arg3[%c16, %c0_58, %c0_59] : memref<33x32x32xf32, #tpu.memory_space<vmem>>, vector<1x32x32xf32>
    %120 = vector.shape_cast %119 : vector<1x32x32xf32> to vector<32x32xf32>
    %cst_60 = arith.constant dense<0.000000e+00> : vector<3x32xf32>
    %121 = tpu.matmul %106, %120, %cst_60 {dimension_numbers = #tpu.dot_dimension_numbers<[1], [0], [0], [1], [0, 0, 1, 1], [], []>} : vector<3x32xf32>, vector<32x32xf32>, vector<3x32xf32> -> vector<3x32xf32>
    %c13 = arith.constant 13 : index
    %c0_61 = arith.constant 0 : index
    %122 = vector.load %arg7[%c13, %c0_61] : memref<84x32xf32, #tpu.memory_space<vmem>>, vector<1x32xf32>
    %123 = vector.broadcast %122 : vector<1x32xf32> to vector<3x32xf32>
    %124 = arith.addf %121, %123 : vector<3x32xf32>
    %cst_62 = arith.constant 0.000000e+00 : f32
    %125 = vector.broadcast %cst_62 : f32 to vector<1x32xf32>
    %126 = tpu.concatenate %118, %125 in 0 : vector<7x32xf32>, vector<1x32xf32> -> vector<8x32xf32>
    %127 = tpu.concatenate %126, %126, %126, %126 in 0 : vector<8x32xf32>, vector<8x32xf32>, vector<8x32xf32>, vector<8x32xf32> -> vector<32x32xf32>
    %128 = arith.mulf %127, %8 : vector<32x32xf32>
    %cst_63 = arith.constant dense<0.000000e+00> : vector<32x3xf32>
    %129 = tpu.matmul %128, %124, %cst_63 {dimension_numbers = #tpu.dot_dimension_numbers<[1], [1], [0], [0], [0, 0, 1, 0], [], []>} : vector<32x32xf32>, vector<3x32xf32>, vector<32x3xf32> -> vector<32x3xf32>
    %cst_64 = arith.constant 0.353553385 : f32
    %130 = vector.broadcast %cst_64 : f32 to vector<32x3xf32>
    %131 = arith.mulf %129, %130 : vector<32x3xf32>
    %cst_65 = arith.constant dense<0xFF800000> : vector<32xf32>
    %132 = vector.multi_reduction <maximumf>, %131, %cst_65 [1] : vector<32x3xf32> to vector<32xf32>
    %133 = vector.shape_cast %132 : vector<32xf32> to vector<32x1xf32>
    %134 = vector.broadcast %133 : vector<32x1xf32> to vector<32x3xf32>
    %135 = arith.subf %131, %134 : vector<32x3xf32>
    %136 = math.exp %135 : vector<32x3xf32>
    %cst_66 = arith.constant dense<0.000000e+00> : vector<32xf32>
    %137 = vector.multi_reduction <add>, %136, %cst_66 [1] : vector<32x3xf32> to vector<32xf32>
    %138 = vector.shape_cast %137 : vector<32xf32> to vector<32x1xf32>
    %139 = tpu.reciprocal %138 {approx = true} : vector<32x1xf32> -> vector<32x1xf32>
    %140 = vector.broadcast %139 : vector<32x1xf32> to vector<32x3xf32>
    %141 = arith.mulf %136, %140 : vector<32x3xf32>
    %cst_67 = arith.constant dense<0.000000e+00> : vector<32x32xf32>
    %142 = tpu.matmul %141, %112, %cst_67 {dimension_numbers = #tpu.dot_dimension_numbers<[1], [0], [0], [1], [0, 0, 1, 1], [], []>} : vector<32x3xf32>, vector<3x32xf32>, vector<32x32xf32> -> vector<32x32xf32>
    %143 = arith.mulf %142, %8 : vector<32x32xf32>
    %144 = vector.extract_strided_slice %143 {offsets = [0, 0], sizes = [8, 32], strides = [1, 1]} : vector<32x32xf32> to vector<8x32xf32>
    %145 = vector.extract_strided_slice %143 {offsets = [8, 0], sizes = [8, 32], strides = [1, 1]} : vector<32x32xf32> to vector<8x32xf32>
    %146 = arith.addf %144, %145 : vector<8x32xf32>
    %147 = vector.extract_strided_slice %143 {offsets = [16, 0], sizes = [8, 32], strides = [1, 1]} : vector<32x32xf32> to vector<8x32xf32>
    %148 = arith.addf %146, %147 : vector<8x32xf32>
    %149 = vector.extract_strided_slice %143 {offsets = [24, 0], sizes = [8, 32], strides = [1, 1]} : vector<32x32xf32> to vector<8x32xf32>
    %150 = arith.addf %148, %149 : vector<8x32xf32>
    %151 = vector.extract_strided_slice %150 {offsets = [0, 0], sizes = [7, 32], strides = [1, 1]} : vector<8x32xf32> to vector<7x32xf32>
    %c20 = arith.constant 20 : index
    %c0_68 = arith.constant 0 : index
    %152 = vector.load %arg7[%c20, %c0_68] : memref<84x32xf32, #tpu.memory_space<vmem>>, vector<1x32xf32>
    %153 = vector.broadcast %152 : vector<1x32xf32> to vector<7x32xf32>
    %154 = arith.mulf %153, %151 : vector<7x32xf32>
    %155 = arith.addf %75, %154 : vector<7x32xf32>
    %cst_69 = arith.constant dense<0.000000e+00> : vector<7xf32>
    %156 = vector.multi_reduction <add>, %155, %cst_69 [1] : vector<7x32xf32> to vector<7xf32>
    %157 = vector.shape_cast %156 : vector<7xf32> to vector<7x1xf32>
    %158 = arith.mulf %155, %155 : vector<7x32xf32>
    %cst_70 = arith.constant dense<0.000000e+00> : vector<7xf32>
    %159 = vector.multi_reduction <add>, %158, %cst_70 [1] : vector<7x32xf32> to vector<7xf32>
    %160 = vector.shape_cast %159 : vector<7xf32> to vector<7x1xf32>
    %cst_71 = arith.constant 3.125000e-02 : f32
    %161 = vector.broadcast %cst_71 : f32 to vector<7x1xf32>
    %162 = arith.mulf %157, %161 : vector<7x1xf32>
    %cst_72 = arith.constant 3.125000e-02 : f32
    %163 = vector.broadcast %cst_72 : f32 to vector<7x1xf32>
    %164 = arith.mulf %160, %163 : vector<7x1xf32>
    %165 = arith.mulf %162, %162 : vector<7x1xf32>
    %166 = arith.subf %164, %165 : vector<7x1xf32>
    %167 = vector.broadcast %162 : vector<7x1xf32> to vector<7x32xf32>
    %168 = arith.subf %155, %167 : vector<7x32xf32>
    %cst_73 = arith.constant 9.99999974E-6 : f32
    %169 = vector.broadcast %cst_73 : f32 to vector<7x1xf32>
    %170 = arith.addf %166, %169 : vector<7x1xf32>
    %171 = math.rsqrt %170 : vector<7x1xf32>
    %172 = vector.broadcast %171 : vector<7x1xf32> to vector<7x32xf32>
    %173 = arith.mulf %168, %172 : vector<7x32xf32>
    %c15_74 = arith.constant 15 : index
    %c0_75 = arith.constant 0 : index
    %174 = vector.load %arg7[%c15_74, %c0_75] : memref<84x32xf32, #tpu.memory_space<vmem>>, vector<1x32xf32>
    %175 = vector.broadcast %174 : vector<1x32xf32> to vector<7x32xf32>
    %176 = arith.mulf %173, %175 : vector<7x32xf32>
    %c16_76 = arith.constant 16 : index
    %c0_77 = arith.constant 0 : index
    %177 = vector.load %arg7[%c16_76, %c0_77] : memref<84x32xf32, #tpu.memory_space<vmem>>, vector<1x32xf32>
    %178 = vector.broadcast %177 : vector<1x32xf32> to vector<7x32xf32>
    %179 = arith.addf %176, %178 : vector<7x32xf32>
    %c0_78 = arith.constant 0 : index
    %c0_79 = arith.constant 0 : index
    %c0_80 = arith.constant 0 : index
    %180 = vector.load %arg4[%c0_78, %c0_79, %c0_80] : memref<6x32x128xf32, #tpu.memory_space<vmem>>, vector<1x32x128xf32>
    %181 = vector.shape_cast %180 : vector<1x32x128xf32> to vector<32x128xf32>
    %cst_81 = arith.constant dense<0.000000e+00> : vector<7x128xf32>
    %182 = tpu.matmul %179, %181, %cst_81 {dimension_numbers = #tpu.dot_dimension_numbers<[1], [0], [0], [1], [0, 0, 1, 1], [], []>} : vector<7x32xf32>, vector<32x128xf32>, vector<7x128xf32> -> vector<7x128xf32>
    %c0_82 = arith.constant 0 : index
    %c0_83 = arith.constant 0 : index
    %183 = vector.load %arg8[%c0_82, %c0_83] : memref<7x128xf32, #tpu.memory_space<vmem>>, vector<1x128xf32>
    %184 = vector.broadcast %183 : vector<1x128xf32> to vector<7x128xf32>
    %185 = arith.addf %182, %184 : vector<7x128xf32>
    %cst_84 = arith.constant 5.000000e-01 : f32
    %186 = vector.broadcast %cst_84 : f32 to vector<7x128xf32>
    %187 = arith.mulf %186, %185 : vector<7x128xf32>
    %cst_85 = arith.constant 4.471500e-02 : f32
    %188 = vector.broadcast %cst_85 : f32 to vector<7x128xf32>
    %189 = arith.mulf %188, %185 : vector<7x128xf32>
    %190 = arith.mulf %189, %185 : vector<7x128xf32>
    %191 = arith.mulf %190, %185 : vector<7x128xf32>
    %192 = arith.addf %185, %191 : vector<7x128xf32>
    %cst_86 = arith.constant 0.797884583 : f32
    %193 = vector.broadcast %cst_86 : f32 to vector<7x128xf32>
    %194 = arith.mulf %193, %192 : vector<7x128xf32>
    %195 = math.tanh %194 : vector<7x128xf32>
    %cst_87 = arith.constant 1.000000e+00 : f32
    %196 = vector.broadcast %cst_87 : f32 to vector<7x128xf32>
    %197 = arith.addf %196, %195 : vector<7x128xf32>
    %198 = arith.mulf %187, %197 : vector<7x128xf32>
    %c0_88 = arith.constant 0 : index
    %c0_89 = arith.constant 0 : index
    %c0_90 = arith.constant 0 : index
    %199 = vector.load %arg5[%c0_88, %c0_89, %c0_90] : memref<6x128x32xf32, #tpu.memory_space<vmem>>, vector<1x128x32xf32>
    %200 = vector.shape_cast %199 : vector<1x128x32xf32> to vector<128x32xf32>
    %cst_91 = arith.constant dense<0.000000e+00> : vector<7x32xf32>
    %201 = tpu.matmul %198, %200, %cst_91 {dimension_numbers = #tpu.dot_dimension_numbers<[1], [0], [0], [1], [0, 0, 1, 1], [], []>} : vector<7x128xf32>, vector<128x32xf32>, vector<7x32xf32> -> vector<7x32xf32>
    %c19 = arith.constant 19 : index
    %c0_92 = arith.constant 0 : index
    %202 = vector.load %arg7[%c19, %c0_92] : memref<84x32xf32, #tpu.memory_space<vmem>>, vector<1x32xf32>
    %203 = vector.broadcast %202 : vector<1x32xf32> to vector<7x32xf32>
    %204 = arith.addf %201, %203 : vector<7x32xf32>
    %c21 = arith.constant 21 : index
    %c0_93 = arith.constant 0 : index
    %205 = vector.load %arg7[%c21, %c0_93] : memref<84x32xf32, #tpu.memory_space<vmem>>, vector<1x32xf32>
    %206 = vector.broadcast %205 : vector<1x32xf32> to vector<7x32xf32>
    %207 = arith.mulf %206, %204 : vector<7x32xf32>
    %208 = arith.addf %179, %207 : vector<7x32xf32>
    %cst_94 = arith.constant dense<0.000000e+00> : vector<7xf32>
    %209 = vector.multi_reduction <add>, %208, %cst_94 [1] : vector<7x32xf32> to vector<7xf32>
    %210 = vector.shape_cast %209 : vector<7xf32> to vector<7x1xf32>
    %211 = arith.mulf %208, %208 : vector<7x32xf32>
    %cst_95 = arith.constant dense<0.000000e+00> : vector<7xf32>
    %212 = vector.multi_reduction <add>, %211, %cst_95 [1] : vector<7x32xf32> to vector<7xf32>
    %213 = vector.shape_cast %212 : vector<7xf32> to vector<7x1xf32>
    %cst_96 = arith.constant 3.125000e-02 : f32
    %214 = vector.broadcast %cst_96 : f32 to vector<7x1xf32>
    %215 = arith.mulf %210, %214 : vector<7x1xf32>
    %cst_97 = arith.constant 3.125000e-02 : f32
    %216 = vector.broadcast %cst_97 : f32 to vector<7x1xf32>
    %217 = arith.mulf %213, %216 : vector<7x1xf32>
    %218 = arith.mulf %215, %215 : vector<7x1xf32>
    %219 = arith.subf %217, %218 : vector<7x1xf32>
    %220 = vector.broadcast %215 : vector<7x1xf32> to vector<7x32xf32>
    %221 = arith.subf %208, %220 : vector<7x32xf32>
    %cst_98 = arith.constant 9.99999974E-6 : f32
    %222 = vector.broadcast %cst_98 : f32 to vector<7x1xf32>
    %223 = arith.addf %219, %222 : vector<7x1xf32>
    %224 = math.rsqrt %223 : vector<7x1xf32>
    %225 = vector.broadcast %224 : vector<7x1xf32> to vector<7x32xf32>
    %226 = arith.mulf %221, %225 : vector<7x32xf32>
    %c17_99 = arith.constant 17 : index
    %c0_100 = arith.constant 0 : index
    %227 = vector.load %arg7[%c17_99, %c0_100] : memref<84x32xf32, #tpu.memory_space<vmem>>, vector<1x32xf32>
    %228 = vector.broadcast %227 : vector<1x32xf32> to vector<7x32xf32>
    %229 = arith.mulf %226, %228 : vector<7x32xf32>
    %c18 = arith.constant 18 : index
    %c0_101 = arith.constant 0 : index
    %230 = vector.load %arg7[%c18, %c0_101] : memref<84x32xf32, #tpu.memory_space<vmem>>, vector<1x32xf32>
    %231 = vector.broadcast %230 : vector<1x32xf32> to vector<7x32xf32>
    %232 = arith.addf %229, %231 : vector<7x32xf32>
    %c1_102 = arith.constant 1 : index
    %c0_103 = arith.constant 0 : index
    %c0_104 = arith.constant 0 : index
    %233 = vector.load %arg6[%c1_102, %c0_103, %c0_104] : memref<2x3x8xf32, #tpu.memory_space<vmem>>, vector<1x3x8xf32>
    %234 = vector.shape_cast %233 : vector<1x3x8xf32> to vector<3x8xf32>
    %235 = vector.extract_strided_slice %234 {offsets = [0, 0], sizes = [3, 7], strides = [1, 1]} : vector<3x8xf32> to vector<3x7xf32>
    %cst_105 = arith.constant dense<0.000000e+00> : vector<3x32xf32>
    %236 = tpu.matmul %235, %232, %cst_105 {dimension_numbers = #tpu.dot_dimension_numbers<[1], [0], [0], [1], [0, 0, 1, 1], [], []>} : vector<3x7xf32>, vector<7x32xf32>, vector<3x32xf32> -> vector<3x32xf32>
    %237 = vector.extract_strided_slice %234 {offsets = [0, 7], sizes = [3, 1], strides = [1, 1]} : vector<3x8xf32> to vector<3x1xf32>
    %238 = vector.broadcast %237 : vector<3x1xf32> to vector<3x32xf32>
    %239 = arith.addf %236, %238 : vector<3x32xf32>
    %cst_106 = arith.constant dense<0.000000e+00> : vector<3xf32>
    %240 = vector.multi_reduction <add>, %239, %cst_106 [1] : vector<3x32xf32> to vector<3xf32>
    %241 = vector.shape_cast %240 : vector<3xf32> to vector<3x1xf32>
    %242 = arith.mulf %239, %239 : vector<3x32xf32>
    %cst_107 = arith.constant dense<0.000000e+00> : vector<3xf32>
    %243 = vector.multi_reduction <add>, %242, %cst_107 [1] : vector<3x32xf32> to vector<3xf32>
    %244 = vector.shape_cast %243 : vector<3xf32> to vector<3x1xf32>
    %cst_108 = arith.constant 3.125000e-02 : f32
    %245 = vector.broadcast %cst_108 : f32 to vector<3x1xf32>
    %246 = arith.mulf %241, %245 : vector<3x1xf32>
    %cst_109 = arith.constant 3.125000e-02 : f32
    %247 = vector.broadcast %cst_109 : f32 to vector<3x1xf32>
    %248 = arith.mulf %244, %247 : vector<3x1xf32>
    %249 = arith.mulf %246, %246 : vector<3x1xf32>
    %250 = arith.subf %248, %249 : vector<3x1xf32>
    %251 = vector.broadcast %246 : vector<3x1xf32> to vector<3x32xf32>
    %252 = arith.subf %239, %251 : vector<3x32xf32>
    %cst_110 = arith.constant 9.99999974E-6 : f32
    %253 = vector.broadcast %cst_110 : f32 to vector<3x1xf32>
    %254 = arith.addf %250, %253 : vector<3x1xf32>
    %255 = math.rsqrt %254 : vector<3x1xf32>
    %256 = vector.broadcast %255 : vector<3x1xf32> to vector<3x32xf32>
    %257 = arith.mulf %252, %256 : vector<3x32xf32>
    %c34 = arith.constant 34 : index
    %c0_111 = arith.constant 0 : index
    %258 = vector.load %arg7[%c34, %c0_111] : memref<84x32xf32, #tpu.memory_space<vmem>>, vector<1x32xf32>
    %259 = vector.broadcast %258 : vector<1x32xf32> to vector<3x32xf32>
    %260 = arith.mulf %257, %259 : vector<3x32xf32>
    %c35 = arith.constant 35 : index
    %c0_112 = arith.constant 0 : index
    %261 = vector.load %arg7[%c35, %c0_112] : memref<84x32xf32, #tpu.memory_space<vmem>>, vector<1x32xf32>
    %262 = vector.broadcast %261 : vector<1x32xf32> to vector<3x32xf32>
    %263 = arith.addf %260, %262 : vector<3x32xf32>
    %c20_113 = arith.constant 20 : index
    %c0_114 = arith.constant 0 : index
    %c0_115 = arith.constant 0 : index
    %264 = vector.load %arg3[%c20_113, %c0_114, %c0_115] : memref<33x32x32xf32, #tpu.memory_space<vmem>>, vector<1x32x32xf32>
    %265 = vector.shape_cast %264 : vector<1x32x32xf32> to vector<32x32xf32>
    %cst_116 = arith.constant dense<0.000000e+00> : vector<3x32xf32>
    %266 = tpu.matmul %263, %265, %cst_116 {dimension_numbers = #tpu.dot_dimension_numbers<[1], [0], [0], [1], [0, 0, 1, 1], [], []>} : vector<3x32xf32>, vector<32x32xf32>, vector<3x32xf32> -> vector<3x32xf32>
    %c26 = arith.constant 26 : index
    %c0_117 = arith.constant 0 : index
    %267 = vector.load %arg7[%c26, %c0_117] : memref<84x32xf32, #tpu.memory_space<vmem>>, vector<1x32xf32>
    %268 = vector.broadcast %267 : vector<1x32xf32> to vector<3x32xf32>
    %269 = arith.addf %266, %268 : vector<3x32xf32>
    %c18_118 = arith.constant 18 : index
    %c0_119 = arith.constant 0 : index
    %c0_120 = arith.constant 0 : index
    %270 = vector.load %arg3[%c18_118, %c0_119, %c0_120] : memref<33x32x32xf32, #tpu.memory_space<vmem>>, vector<1x32x32xf32>
    %271 = vector.shape_cast %270 : vector<1x32x32xf32> to vector<32x32xf32>
    %cst_121 = arith.constant dense<0.000000e+00> : vector<7x32xf32>
    %272 = tpu.matmul %232, %271, %cst_121 {dimension_numbers = #tpu.dot_dimension_numbers<[1], [0], [0], [1], [0, 0, 1, 1], [], []>} : vector<7x32xf32>, vector<32x32xf32>, vector<7x32xf32> -> vector<7x32xf32>
    %c24 = arith.constant 24 : index
    %c0_122 = arith.constant 0 : index
    %273 = vector.load %arg7[%c24, %c0_122] : memref<84x32xf32, #tpu.memory_space<vmem>>, vector<1x32xf32>
    %274 = vector.broadcast %273 : vector<1x32xf32> to vector<7x32xf32>
    %275 = arith.addf %272, %274 : vector<7x32xf32>
    %c19_123 = arith.constant 19 : index
    %c0_124 = arith.constant 0 : index
    %c0_125 = arith.constant 0 : index
    %276 = vector.load %arg3[%c19_123, %c0_124, %c0_125] : memref<33x32x32xf32, #tpu.memory_space<vmem>>, vector<1x32x32xf32>
    %277 = vector.shape_cast %276 : vector<1x32x32xf32> to vector<32x32xf32>
    %cst_126 = arith.constant dense<0.000000e+00> : vector<3x32xf32>
    %278 = tpu.matmul %263, %277, %cst_126 {dimension_numbers = #tpu.dot_dimension_numbers<[1], [0], [0], [1], [0, 0, 1, 1], [], []>} : vector<3x32xf32>, vector<32x32xf32>, vector<3x32xf32> -> vector<3x32xf32>
    %c25 = arith.constant 25 : index
    %c0_127 = arith.constant 0 : index
    %279 = vector.load %arg7[%c25, %c0_127] : memref<84x32xf32, #tpu.memory_space<vmem>>, vector<1x32xf32>
    %280 = vector.broadcast %279 : vector<1x32xf32> to vector<3x32xf32>
    %281 = arith.addf %278, %280 : vector<3x32xf32>
    %cst_128 = arith.constant 0.000000e+00 : f32
    %282 = vector.broadcast %cst_128 : f32 to vector<1x32xf32>
    %283 = tpu.concatenate %275, %282 in 0 : vector<7x32xf32>, vector<1x32xf32> -> vector<8x32xf32>
    %284 = tpu.concatenate %283, %283, %283, %283 in 0 : vector<8x32xf32>, vector<8x32xf32>, vector<8x32xf32>, vector<8x32xf32> -> vector<32x32xf32>
    %285 = arith.mulf %284, %8 : vector<32x32xf32>
    %cst_129 = arith.constant dense<0.000000e+00> : vector<32x3xf32>
    %286 = tpu.matmul %285, %281, %cst_129 {dimension_numbers = #tpu.dot_dimension_numbers<[1], [1], [0], [0], [0, 0, 1, 0], [], []>} : vector<32x32xf32>, vector<3x32xf32>, vector<32x3xf32> -> vector<32x3xf32>
    %cst_130 = arith.constant 0.353553385 : f32
    %287 = vector.broadcast %cst_130 : f32 to vector<32x3xf32>
    %288 = arith.mulf %286, %287 : vector<32x3xf32>
    %cst_131 = arith.constant dense<0xFF800000> : vector<32xf32>
    %289 = vector.multi_reduction <maximumf>, %288, %cst_131 [1] : vector<32x3xf32> to vector<32xf32>
    %290 = vector.shape_cast %289 : vector<32xf32> to vector<32x1xf32>
    %291 = vector.broadcast %290 : vector<32x1xf32> to vector<32x3xf32>
    %292 = arith.subf %288, %291 : vector<32x3xf32>
    %293 = math.exp %292 : vector<32x3xf32>
    %cst_132 = arith.constant dense<0.000000e+00> : vector<32xf32>
    %294 = vector.multi_reduction <add>, %293, %cst_132 [1] : vector<32x3xf32> to vector<32xf32>
    %295 = vector.shape_cast %294 : vector<32xf32> to vector<32x1xf32>
    %296 = tpu.reciprocal %295 {approx = true} : vector<32x1xf32> -> vector<32x1xf32>
    %297 = vector.broadcast %296 : vector<32x1xf32> to vector<32x3xf32>
    %298 = arith.mulf %293, %297 : vector<32x3xf32>
    %cst_133 = arith.constant dense<0.000000e+00> : vector<32x32xf32>
    %299 = tpu.matmul %298, %269, %cst_133 {dimension_numbers = #tpu.dot_dimension_numbers<[1], [0], [0], [1], [0, 0, 1, 1], [], []>} : vector<32x3xf32>, vector<3x32xf32>, vector<32x32xf32> -> vector<32x32xf32>
    %300 = arith.mulf %299, %8 : vector<32x32xf32>
    %301 = vector.extract_strided_slice %300 {offsets = [0, 0], sizes = [8, 32], strides = [1, 1]} : vector<32x32xf32> to vector<8x32xf32>
    %302 = vector.extract_strided_slice %300 {offsets = [8, 0], sizes = [8, 32], strides = [1, 1]} : vector<32x32xf32> to vector<8x32xf32>
    %303 = arith.addf %301, %302 : vector<8x32xf32>
    %304 = vector.extract_strided_slice %300 {offsets = [16, 0], sizes = [8, 32], strides = [1, 1]} : vector<32x32xf32> to vector<8x32xf32>
    %305 = arith.addf %303, %304 : vector<8x32xf32>
    %306 = vector.extract_strided_slice %300 {offsets = [24, 0], sizes = [8, 32], strides = [1, 1]} : vector<32x32xf32> to vector<8x32xf32>
    %307 = arith.addf %305, %306 : vector<8x32xf32>
    %308 = vector.extract_strided_slice %307 {offsets = [0, 0], sizes = [7, 32], strides = [1, 1]} : vector<8x32xf32> to vector<7x32xf32>
    %c32 = arith.constant 32 : index
    %c0_134 = arith.constant 0 : index
    %309 = vector.load %arg7[%c32, %c0_134] : memref<84x32xf32, #tpu.memory_space<vmem>>, vector<1x32xf32>
    %310 = vector.broadcast %309 : vector<1x32xf32> to vector<7x32xf32>
    %311 = arith.mulf %310, %308 : vector<7x32xf32>
    %312 = arith.addf %232, %311 : vector<7x32xf32>
    %cst_135 = arith.constant dense<0.000000e+00> : vector<7xf32>
    %313 = vector.multi_reduction <add>, %312, %cst_135 [1] : vector<7x32xf32> to vector<7xf32>
    %314 = vector.shape_cast %313 : vector<7xf32> to vector<7x1xf32>
    %315 = arith.mulf %312, %312 : vector<7x32xf32>
    %cst_136 = arith.constant dense<0.000000e+00> : vector<7xf32>
    %316 = vector.multi_reduction <add>, %315, %cst_136 [1] : vector<7x32xf32> to vector<7xf32>
    %317 = vector.shape_cast %316 : vector<7xf32> to vector<7x1xf32>
    %cst_137 = arith.constant 3.125000e-02 : f32
    %318 = vector.broadcast %cst_137 : f32 to vector<7x1xf32>
    %319 = arith.mulf %314, %318 : vector<7x1xf32>
    %cst_138 = arith.constant 3.125000e-02 : f32
    %320 = vector.broadcast %cst_138 : f32 to vector<7x1xf32>
    %321 = arith.mulf %317, %320 : vector<7x1xf32>
    %322 = arith.mulf %319, %319 : vector<7x1xf32>
    %323 = arith.subf %321, %322 : vector<7x1xf32>
    %324 = vector.broadcast %319 : vector<7x1xf32> to vector<7x32xf32>
    %325 = arith.subf %312, %324 : vector<7x32xf32>
    %cst_139 = arith.constant 9.99999974E-6 : f32
    %326 = vector.broadcast %cst_139 : f32 to vector<7x1xf32>
    %327 = arith.addf %323, %326 : vector<7x1xf32>
    %328 = math.rsqrt %327 : vector<7x1xf32>
    %329 = vector.broadcast %328 : vector<7x1xf32> to vector<7x32xf32>
    %330 = arith.mulf %325, %329 : vector<7x32xf32>
    %c27 = arith.constant 27 : index
    %c0_140 = arith.constant 0 : index
    %331 = vector.load %arg7[%c27, %c0_140] : memref<84x32xf32, #tpu.memory_space<vmem>>, vector<1x32xf32>
    %332 = vector.broadcast %331 : vector<1x32xf32> to vector<7x32xf32>
    %333 = arith.mulf %330, %332 : vector<7x32xf32>
    %c28 = arith.constant 28 : index
    %c0_141 = arith.constant 0 : index
    %334 = vector.load %arg7[%c28, %c0_141] : memref<84x32xf32, #tpu.memory_space<vmem>>, vector<1x32xf32>
    %335 = vector.broadcast %334 : vector<1x32xf32> to vector<7x32xf32>
    %336 = arith.addf %333, %335 : vector<7x32xf32>
    %c1_142 = arith.constant 1 : index
    %c0_143 = arith.constant 0 : index
    %c0_144 = arith.constant 0 : index
    %337 = vector.load %arg4[%c1_142, %c0_143, %c0_144] : memref<6x32x128xf32, #tpu.memory_space<vmem>>, vector<1x32x128xf32>
    %338 = vector.shape_cast %337 : vector<1x32x128xf32> to vector<32x128xf32>
    %cst_145 = arith.constant dense<0.000000e+00> : vector<7x128xf32>
    %339 = tpu.matmul %336, %338, %cst_145 {dimension_numbers = #tpu.dot_dimension_numbers<[1], [0], [0], [1], [0, 0, 1, 1], [], []>} : vector<7x32xf32>, vector<32x128xf32>, vector<7x128xf32> -> vector<7x128xf32>
    %c1_146 = arith.constant 1 : index
    %c0_147 = arith.constant 0 : index
    %340 = vector.load %arg8[%c1_146, %c0_147] : memref<7x128xf32, #tpu.memory_space<vmem>>, vector<1x128xf32>
    %341 = vector.broadcast %340 : vector<1x128xf32> to vector<7x128xf32>
    %342 = arith.addf %339, %341 : vector<7x128xf32>
    %cst_148 = arith.constant 5.000000e-01 : f32
    %343 = vector.broadcast %cst_148 : f32 to vector<7x128xf32>
    %344 = arith.mulf %343, %342 : vector<7x128xf32>
    %cst_149 = arith.constant 4.471500e-02 : f32
    %345 = vector.broadcast %cst_149 : f32 to vector<7x128xf32>
    %346 = arith.mulf %345, %342 : vector<7x128xf32>
    %347 = arith.mulf %346, %342 : vector<7x128xf32>
    %348 = arith.mulf %347, %342 : vector<7x128xf32>
    %349 = arith.addf %342, %348 : vector<7x128xf32>
    %cst_150 = arith.constant 0.797884583 : f32
    %350 = vector.broadcast %cst_150 : f32 to vector<7x128xf32>
    %351 = arith.mulf %350, %349 : vector<7x128xf32>
    %352 = math.tanh %351 : vector<7x128xf32>
    %cst_151 = arith.constant 1.000000e+00 : f32
    %353 = vector.broadcast %cst_151 : f32 to vector<7x128xf32>
    %354 = arith.addf %353, %352 : vector<7x128xf32>
    %355 = arith.mulf %344, %354 : vector<7x128xf32>
    %c1_152 = arith.constant 1 : index
    %c0_153 = arith.constant 0 : index
    %c0_154 = arith.constant 0 : index
    %356 = vector.load %arg5[%c1_152, %c0_153, %c0_154] : memref<6x128x32xf32, #tpu.memory_space<vmem>>, vector<1x128x32xf32>
    %357 = vector.shape_cast %356 : vector<1x128x32xf32> to vector<128x32xf32>
    %cst_155 = arith.constant dense<0.000000e+00> : vector<7x32xf32>
    %358 = tpu.matmul %355, %357, %cst_155 {dimension_numbers = #tpu.dot_dimension_numbers<[1], [0], [0], [1], [0, 0, 1, 1], [], []>} : vector<7x128xf32>, vector<128x32xf32>, vector<7x32xf32> -> vector<7x32xf32>
    %c31 = arith.constant 31 : index
    %c0_156 = arith.constant 0 : index
    %359 = vector.load %arg7[%c31, %c0_156] : memref<84x32xf32, #tpu.memory_space<vmem>>, vector<1x32xf32>
    %360 = vector.broadcast %359 : vector<1x32xf32> to vector<7x32xf32>
    %361 = arith.addf %358, %360 : vector<7x32xf32>
    %c33 = arith.constant 33 : index
    %c0_157 = arith.constant 0 : index
    %362 = vector.load %arg7[%c33, %c0_157] : memref<84x32xf32, #tpu.memory_space<vmem>>, vector<1x32xf32>
    %363 = vector.broadcast %362 : vector<1x32xf32> to vector<7x32xf32>
    %364 = arith.mulf %363, %361 : vector<7x32xf32>
    %365 = arith.addf %336, %364 : vector<7x32xf32>
    %cst_158 = arith.constant dense<0.000000e+00> : vector<7xf32>
    %366 = vector.multi_reduction <add>, %365, %cst_158 [1] : vector<7x32xf32> to vector<7xf32>
    %367 = vector.shape_cast %366 : vector<7xf32> to vector<7x1xf32>
    %368 = arith.mulf %365, %365 : vector<7x32xf32>
    %cst_159 = arith.constant dense<0.000000e+00> : vector<7xf32>
    %369 = vector.multi_reduction <add>, %368, %cst_159 [1] : vector<7x32xf32> to vector<7xf32>
    %370 = vector.shape_cast %369 : vector<7xf32> to vector<7x1xf32>
    %cst_160 = arith.constant 3.125000e-02 : f32
    %371 = vector.broadcast %cst_160 : f32 to vector<7x1xf32>
    %372 = arith.mulf %367, %371 : vector<7x1xf32>
    %cst_161 = arith.constant 3.125000e-02 : f32
    %373 = vector.broadcast %cst_161 : f32 to vector<7x1xf32>
    %374 = arith.mulf %370, %373 : vector<7x1xf32>
    %375 = arith.mulf %372, %372 : vector<7x1xf32>
    %376 = arith.subf %374, %375 : vector<7x1xf32>
    %377 = vector.broadcast %372 : vector<7x1xf32> to vector<7x32xf32>
    %378 = arith.subf %365, %377 : vector<7x32xf32>
    %cst_162 = arith.constant 9.99999974E-6 : f32
    %379 = vector.broadcast %cst_162 : f32 to vector<7x1xf32>
    %380 = arith.addf %376, %379 : vector<7x1xf32>
    %381 = math.rsqrt %380 : vector<7x1xf32>
    %382 = vector.broadcast %381 : vector<7x1xf32> to vector<7x32xf32>
    %383 = arith.mulf %378, %382 : vector<7x32xf32>
    %c29 = arith.constant 29 : index
    %c0_163 = arith.constant 0 : index
    %384 = vector.load %arg7[%c29, %c0_163] : memref<84x32xf32, #tpu.memory_space<vmem>>, vector<1x32xf32>
    %385 = vector.broadcast %384 : vector<1x32xf32> to vector<7x32xf32>
    %386 = arith.mulf %383, %385 : vector<7x32xf32>
    %c30 = arith.constant 30 : index
    %c0_164 = arith.constant 0 : index
    %387 = vector.load %arg7[%c30, %c0_164] : memref<84x32xf32, #tpu.memory_space<vmem>>, vector<1x32xf32>
    %388 = vector.broadcast %387 : vector<1x32xf32> to vector<7x32xf32>
    %389 = arith.addf %386, %388 : vector<7x32xf32>
    %c1_165 = arith.constant 1 : index
    %c0_166 = arith.constant 0 : index
    %c0_167 = arith.constant 0 : index
    %390 = vector.load %arg2[%c1_165, %c0_166, %c0_167] : memref<3x64x32xf32, #tpu.memory_space<vmem>>, vector<1x64x32xf32>
    %391 = vector.shape_cast %390 : vector<1x64x32xf32> to vector<64x32xf32>
    %392 = vector.extract_strided_slice %391 {offsets = [0, 0], sizes = [32, 32], strides = [1, 1]} : vector<64x32xf32> to vector<32x32xf32>
    %c1_168 = arith.constant 1 : index
    %c0_169 = arith.constant 0 : index
    %c0_170 = arith.constant 0 : index
    %393 = vector.load %arg2[%c1_168, %c0_169, %c0_170] : memref<3x64x32xf32, #tpu.memory_space<vmem>>, vector<1x64x32xf32>
    %394 = vector.shape_cast %393 : vector<1x64x32xf32> to vector<64x32xf32>
    %395 = vector.extract_strided_slice %394 {offsets = [32, 0], sizes = [32, 32], strides = [1, 1]} : vector<64x32xf32> to vector<32x32xf32>
    %396 = vector.extract_strided_slice %389 {offsets = [0, 0], sizes = [1, 32], strides = [1, 1]} : vector<7x32xf32> to vector<1x32xf32>
    %397 = vector.extract_strided_slice %389 {offsets = [2, 0], sizes = [1, 32], strides = [1, 1]} : vector<7x32xf32> to vector<1x32xf32>
    %398 = vector.extract_strided_slice %389 {offsets = [4, 0], sizes = [1, 32], strides = [1, 1]} : vector<7x32xf32> to vector<1x32xf32>
    %399 = tpu.concatenate %396, %397, %398 in 0 : vector<1x32xf32>, vector<1x32xf32>, vector<1x32xf32> -> vector<3x32xf32>
    %400 = vector.extract_strided_slice %389 {offsets = [1, 0], sizes = [1, 32], strides = [1, 1]} : vector<7x32xf32> to vector<1x32xf32>
    %401 = vector.extract_strided_slice %389 {offsets = [3, 0], sizes = [1, 32], strides = [1, 1]} : vector<7x32xf32> to vector<1x32xf32>
    %402 = vector.extract_strided_slice %389 {offsets = [5, 0], sizes = [1, 32], strides = [1, 1]} : vector<7x32xf32> to vector<1x32xf32>
    %403 = tpu.concatenate %400, %401, %402 in 0 : vector<1x32xf32>, vector<1x32xf32>, vector<1x32xf32> -> vector<3x32xf32>
    %cst_171 = arith.constant dense<0.000000e+00> : vector<3x32xf32>
    %404 = tpu.matmul %399, %392, %cst_171 {dimension_numbers = #tpu.dot_dimension_numbers<[1], [0], [0], [1], [0, 0, 1, 1], [], []>} : vector<3x32xf32>, vector<32x32xf32>, vector<3x32xf32> -> vector<3x32xf32>
    %cst_172 = arith.constant dense<0.000000e+00> : vector<3x32xf32>
    %405 = tpu.matmul %403, %395, %cst_172 {dimension_numbers = #tpu.dot_dimension_numbers<[1], [0], [0], [1], [0, 0, 1, 1], [], []>} : vector<3x32xf32>, vector<32x32xf32>, vector<3x32xf32> -> vector<3x32xf32>
    %406 = arith.addf %404, %405 : vector<3x32xf32>
    %c4_173 = arith.constant 4 : index
    %c0_174 = arith.constant 0 : index
    %407 = vector.load %arg7[%c4_173, %c0_174] : memref<84x32xf32, #tpu.memory_space<vmem>>, vector<1x32xf32>
    %408 = vector.broadcast %407 : vector<1x32xf32> to vector<3x32xf32>
    %409 = arith.addf %406, %408 : vector<3x32xf32>
    %cst_175 = arith.constant dense<0.000000e+00> : vector<3xf32>
    %410 = vector.multi_reduction <add>, %409, %cst_175 [1] : vector<3x32xf32> to vector<3xf32>
    %411 = vector.shape_cast %410 : vector<3xf32> to vector<3x1xf32>
    %412 = arith.mulf %409, %409 : vector<3x32xf32>
    %cst_176 = arith.constant dense<0.000000e+00> : vector<3xf32>
    %413 = vector.multi_reduction <add>, %412, %cst_176 [1] : vector<3x32xf32> to vector<3xf32>
    %414 = vector.shape_cast %413 : vector<3xf32> to vector<3x1xf32>
    %cst_177 = arith.constant 3.125000e-02 : f32
    %415 = vector.broadcast %cst_177 : f32 to vector<3x1xf32>
    %416 = arith.mulf %411, %415 : vector<3x1xf32>
    %cst_178 = arith.constant 3.125000e-02 : f32
    %417 = vector.broadcast %cst_178 : f32 to vector<3x1xf32>
    %418 = arith.mulf %414, %417 : vector<3x1xf32>
    %419 = arith.mulf %416, %416 : vector<3x1xf32>
    %420 = arith.subf %418, %419 : vector<3x1xf32>
    %421 = vector.broadcast %416 : vector<3x1xf32> to vector<3x32xf32>
    %422 = arith.subf %409, %421 : vector<3x32xf32>
    %cst_179 = arith.constant 9.99999974E-6 : f32
    %423 = vector.broadcast %cst_179 : f32 to vector<3x1xf32>
    %424 = arith.addf %420, %423 : vector<3x1xf32>
    %425 = math.rsqrt %424 : vector<3x1xf32>
    %426 = vector.broadcast %425 : vector<3x1xf32> to vector<3x32xf32>
    %427 = arith.mulf %422, %426 : vector<3x32xf32>
    %c5 = arith.constant 5 : index
    %c0_180 = arith.constant 0 : index
    %428 = vector.load %arg7[%c5, %c0_180] : memref<84x32xf32, #tpu.memory_space<vmem>>, vector<1x32xf32>
    %429 = vector.broadcast %428 : vector<1x32xf32> to vector<3x32xf32>
    %430 = arith.mulf %427, %429 : vector<3x32xf32>
    %c6 = arith.constant 6 : index
    %c0_181 = arith.constant 0 : index
    %431 = vector.load %arg7[%c6, %c0_181] : memref<84x32xf32, #tpu.memory_space<vmem>>, vector<1x32xf32>
    %432 = vector.broadcast %431 : vector<1x32xf32> to vector<3x32xf32>
    %433 = arith.addf %430, %432 : vector<3x32xf32>
    %c7 = arith.constant 7 : index
    %c0_182 = arith.constant 0 : index
    %c0_183 = arith.constant 0 : index
    %434 = vector.load %arg3[%c7, %c0_182, %c0_183] : memref<33x32x32xf32, #tpu.memory_space<vmem>>, vector<1x32x32xf32>
    %435 = vector.shape_cast %434 : vector<1x32x32xf32> to vector<32x32xf32>
    %cst_184 = arith.constant dense<0.000000e+00> : vector<3x32xf32>
    %436 = tpu.matmul %433, %435, %cst_184 {dimension_numbers = #tpu.dot_dimension_numbers<[1], [0], [0], [1], [0, 0, 1, 1], [], []>} : vector<3x32xf32>, vector<32x32xf32>, vector<3x32xf32> -> vector<3x32xf32>
    %cst_185 = arith.constant 0.000000e+00 : f32
    %437 = vector.broadcast %cst_185 : f32 to vector<2x32xf32>
    %438 = vector.extract_strided_slice %433 {offsets = [0, 0], sizes = [1, 32], strides = [1, 1]} : vector<3x32xf32> to vector<1x32xf32>
    %439 = tpu.concatenate %437, %438 in 0 : vector<2x32xf32>, vector<1x32xf32> -> vector<3x32xf32>
    %c5_186 = arith.constant 5 : index
    %c0_187 = arith.constant 0 : index
    %c0_188 = arith.constant 0 : index
    %440 = vector.load %arg3[%c5_186, %c0_187, %c0_188] : memref<33x32x32xf32, #tpu.memory_space<vmem>>, vector<1x32x32xf32>
    %441 = vector.shape_cast %440 : vector<1x32x32xf32> to vector<32x32xf32>
    %cst_189 = arith.constant dense<0.000000e+00> : vector<3x32xf32>
    %442 = tpu.matmul %439, %441, %cst_189 {dimension_numbers = #tpu.dot_dimension_numbers<[1], [0], [0], [1], [0, 0, 1, 1], [], []>} : vector<3x32xf32>, vector<32x32xf32>, vector<3x32xf32> -> vector<3x32xf32>
    %443 = arith.addf %436, %442 : vector<3x32xf32>
    %cst_190 = arith.constant 0.000000e+00 : f32
    %444 = vector.broadcast %cst_190 : f32 to vector<1x32xf32>
    %445 = vector.extract_strided_slice %433 {offsets = [0, 0], sizes = [2, 32], strides = [1, 1]} : vector<3x32xf32> to vector<2x32xf32>
    %446 = tpu.concatenate %444, %445 in 0 : vector<1x32xf32>, vector<2x32xf32> -> vector<3x32xf32>
    %c6_191 = arith.constant 6 : index
    %c0_192 = arith.constant 0 : index
    %c0_193 = arith.constant 0 : index
    %447 = vector.load %arg3[%c6_191, %c0_192, %c0_193] : memref<33x32x32xf32, #tpu.memory_space<vmem>>, vector<1x32x32xf32>
    %448 = vector.shape_cast %447 : vector<1x32x32xf32> to vector<32x32xf32>
    %cst_194 = arith.constant dense<0.000000e+00> : vector<3x32xf32>
    %449 = tpu.matmul %446, %448, %cst_194 {dimension_numbers = #tpu.dot_dimension_numbers<[1], [0], [0], [1], [0, 0, 1, 1], [], []>} : vector<3x32xf32>, vector<32x32xf32>, vector<3x32xf32> -> vector<3x32xf32>
    %450 = arith.addf %443, %449 : vector<3x32xf32>
    %451 = vector.extract_strided_slice %433 {offsets = [1, 0], sizes = [2, 32], strides = [1, 1]} : vector<3x32xf32> to vector<2x32xf32>
    %cst_195 = arith.constant 0.000000e+00 : f32
    %452 = vector.broadcast %cst_195 : f32 to vector<1x32xf32>
    %453 = tpu.concatenate %451, %452 in 0 : vector<2x32xf32>, vector<1x32xf32> -> vector<3x32xf32>
    %c8 = arith.constant 8 : index
    %c0_196 = arith.constant 0 : index
    %c0_197 = arith.constant 0 : index
    %454 = vector.load %arg3[%c8, %c0_196, %c0_197] : memref<33x32x32xf32, #tpu.memory_space<vmem>>, vector<1x32x32xf32>
    %455 = vector.shape_cast %454 : vector<1x32x32xf32> to vector<32x32xf32>
    %cst_198 = arith.constant dense<0.000000e+00> : vector<3x32xf32>
    %456 = tpu.matmul %453, %455, %cst_198 {dimension_numbers = #tpu.dot_dimension_numbers<[1], [0], [0], [1], [0, 0, 1, 1], [], []>} : vector<3x32xf32>, vector<32x32xf32>, vector<3x32xf32> -> vector<3x32xf32>
    %457 = arith.addf %450, %456 : vector<3x32xf32>
    %458 = vector.extract_strided_slice %433 {offsets = [2, 0], sizes = [1, 32], strides = [1, 1]} : vector<3x32xf32> to vector<1x32xf32>
    %cst_199 = arith.constant 0.000000e+00 : f32
    %459 = vector.broadcast %cst_199 : f32 to vector<2x32xf32>
    %460 = tpu.concatenate %458, %459 in 0 : vector<1x32xf32>, vector<2x32xf32> -> vector<3x32xf32>
    %c9 = arith.constant 9 : index
    %c0_200 = arith.constant 0 : index
    %c0_201 = arith.constant 0 : index
    %461 = vector.load %arg3[%c9, %c0_200, %c0_201] : memref<33x32x32xf32, #tpu.memory_space<vmem>>, vector<1x32x32xf32>
    %462 = vector.shape_cast %461 : vector<1x32x32xf32> to vector<32x32xf32>
    %cst_202 = arith.constant dense<0.000000e+00> : vector<3x32xf32>
    %463 = tpu.matmul %460, %462, %cst_202 {dimension_numbers = #tpu.dot_dimension_numbers<[1], [0], [0], [1], [0, 0, 1, 1], [], []>} : vector<3x32xf32>, vector<32x32xf32>, vector<3x32xf32> -> vector<3x32xf32>
    %464 = arith.addf %457, %463 : vector<3x32xf32>
    %c7_203 = arith.constant 7 : index
    %c0_204 = arith.constant 0 : index
    %465 = vector.load %arg7[%c7_203, %c0_204] : memref<84x32xf32, #tpu.memory_space<vmem>>, vector<1x32xf32>
    %466 = vector.broadcast %465 : vector<1x32xf32> to vector<3x32xf32>
    %467 = arith.addf %464, %466 : vector<3x32xf32>
    %468 = arith.addf %433, %467 : vector<3x32xf32>
    %c23_205 = arith.constant 23 : index
    %c0_206 = arith.constant 0 : index
    %c0_207 = arith.constant 0 : index
    %469 = vector.load %arg3[%c23_205, %c0_206, %c0_207] : memref<33x32x32xf32, #tpu.memory_space<vmem>>, vector<1x32x32xf32>
    %470 = vector.shape_cast %469 : vector<1x32x32xf32> to vector<32x32xf32>
    %cst_208 = arith.constant dense<0.000000e+00> : vector<3x32xf32>
    %471 = tpu.matmul %468, %470, %cst_208 {dimension_numbers = #tpu.dot_dimension_numbers<[1], [0], [0], [1], [0, 0, 1, 1], [], []>} : vector<3x32xf32>, vector<32x32xf32>, vector<3x32xf32> -> vector<3x32xf32>
    %c38 = arith.constant 38 : index
    %c0_209 = arith.constant 0 : index
    %472 = vector.load %arg7[%c38, %c0_209] : memref<84x32xf32, #tpu.memory_space<vmem>>, vector<1x32xf32>
    %473 = vector.broadcast %472 : vector<1x32xf32> to vector<3x32xf32>
    %474 = arith.addf %471, %473 : vector<3x32xf32>
    %c21_210 = arith.constant 21 : index
    %c0_211 = arith.constant 0 : index
    %c0_212 = arith.constant 0 : index
    %475 = vector.load %arg3[%c21_210, %c0_211, %c0_212] : memref<33x32x32xf32, #tpu.memory_space<vmem>>, vector<1x32x32xf32>
    %476 = vector.shape_cast %475 : vector<1x32x32xf32> to vector<32x32xf32>
    %cst_213 = arith.constant dense<0.000000e+00> : vector<3x32xf32>
    %477 = tpu.matmul %468, %476, %cst_213 {dimension_numbers = #tpu.dot_dimension_numbers<[1], [0], [0], [1], [0, 0, 1, 1], [], []>} : vector<3x32xf32>, vector<32x32xf32>, vector<3x32xf32> -> vector<3x32xf32>
    %c36 = arith.constant 36 : index
    %c0_214 = arith.constant 0 : index
    %478 = vector.load %arg7[%c36, %c0_214] : memref<84x32xf32, #tpu.memory_space<vmem>>, vector<1x32xf32>
    %479 = vector.broadcast %478 : vector<1x32xf32> to vector<3x32xf32>
    %480 = arith.addf %477, %479 : vector<3x32xf32>
    %c22_215 = arith.constant 22 : index
    %c0_216 = arith.constant 0 : index
    %c0_217 = arith.constant 0 : index
    %481 = vector.load %arg3[%c22_215, %c0_216, %c0_217] : memref<33x32x32xf32, #tpu.memory_space<vmem>>, vector<1x32x32xf32>
    %482 = vector.shape_cast %481 : vector<1x32x32xf32> to vector<32x32xf32>
    %cst_218 = arith.constant dense<0.000000e+00> : vector<3x32xf32>
    %483 = tpu.matmul %468, %482, %cst_218 {dimension_numbers = #tpu.dot_dimension_numbers<[1], [0], [0], [1], [0, 0, 1, 1], [], []>} : vector<3x32xf32>, vector<32x32xf32>, vector<3x32xf32> -> vector<3x32xf32>
    %c37 = arith.constant 37 : index
    %c0_219 = arith.constant 0 : index
    %484 = vector.load %arg7[%c37, %c0_219] : memref<84x32xf32, #tpu.memory_space<vmem>>, vector<1x32xf32>
    %485 = vector.broadcast %484 : vector<1x32xf32> to vector<3x32xf32>
    %486 = arith.addf %483, %485 : vector<3x32xf32>
    %cst_220 = arith.constant 0.000000e+00 : f32
    %487 = vector.broadcast %cst_220 : f32 to vector<5x32xf32>
    %488 = tpu.concatenate %480, %487 in 0 : vector<3x32xf32>, vector<5x32xf32> -> vector<8x32xf32>
    %489 = tpu.concatenate %488, %488, %488, %488 in 0 : vector<8x32xf32>, vector<8x32xf32>, vector<8x32xf32>, vector<8x32xf32> -> vector<32x32xf32>
    %490 = arith.mulf %489, %8 : vector<32x32xf32>
    %cst_221 = arith.constant dense<0.000000e+00> : vector<32x3xf32>
    %491 = tpu.matmul %490, %486, %cst_221 {dimension_numbers = #tpu.dot_dimension_numbers<[1], [1], [0], [0], [0, 0, 1, 0], [], []>} : vector<32x32xf32>, vector<3x32xf32>, vector<32x3xf32> -> vector<32x3xf32>
    %cst_222 = arith.constant 0.353553385 : f32
    %492 = vector.broadcast %cst_222 : f32 to vector<32x3xf32>
    %493 = arith.mulf %491, %492 : vector<32x3xf32>
    %cst_223 = arith.constant dense<0xFF800000> : vector<32xf32>
    %494 = vector.multi_reduction <maximumf>, %493, %cst_223 [1] : vector<32x3xf32> to vector<32xf32>
    %495 = vector.shape_cast %494 : vector<32xf32> to vector<32x1xf32>
    %496 = vector.broadcast %495 : vector<32x1xf32> to vector<32x3xf32>
    %497 = arith.subf %493, %496 : vector<32x3xf32>
    %498 = math.exp %497 : vector<32x3xf32>
    %cst_224 = arith.constant dense<0.000000e+00> : vector<32xf32>
    %499 = vector.multi_reduction <add>, %498, %cst_224 [1] : vector<32x3xf32> to vector<32xf32>
    %500 = vector.shape_cast %499 : vector<32xf32> to vector<32x1xf32>
    %501 = tpu.reciprocal %500 {approx = true} : vector<32x1xf32> -> vector<32x1xf32>
    %502 = vector.broadcast %501 : vector<32x1xf32> to vector<32x3xf32>
    %503 = arith.mulf %498, %502 : vector<32x3xf32>
    %cst_225 = arith.constant dense<0.000000e+00> : vector<32x32xf32>
    %504 = tpu.matmul %503, %474, %cst_225 {dimension_numbers = #tpu.dot_dimension_numbers<[1], [0], [0], [1], [0, 0, 1, 1], [], []>} : vector<32x3xf32>, vector<3x32xf32>, vector<32x32xf32> -> vector<32x32xf32>
    %505 = arith.mulf %504, %8 : vector<32x32xf32>
    %506 = vector.extract_strided_slice %505 {offsets = [0, 0], sizes = [8, 32], strides = [1, 1]} : vector<32x32xf32> to vector<8x32xf32>
    %507 = vector.extract_strided_slice %505 {offsets = [8, 0], sizes = [8, 32], strides = [1, 1]} : vector<32x32xf32> to vector<8x32xf32>
    %508 = arith.addf %506, %507 : vector<8x32xf32>
    %509 = vector.extract_strided_slice %505 {offsets = [16, 0], sizes = [8, 32], strides = [1, 1]} : vector<32x32xf32> to vector<8x32xf32>
    %510 = arith.addf %508, %509 : vector<8x32xf32>
    %511 = vector.extract_strided_slice %505 {offsets = [24, 0], sizes = [8, 32], strides = [1, 1]} : vector<32x32xf32> to vector<8x32xf32>
    %512 = arith.addf %510, %511 : vector<8x32xf32>
    %513 = vector.extract_strided_slice %512 {offsets = [0, 0], sizes = [3, 32], strides = [1, 1]} : vector<8x32xf32> to vector<3x32xf32>
    %c44 = arith.constant 44 : index
    %c0_226 = arith.constant 0 : index
    %514 = vector.load %arg7[%c44, %c0_226] : memref<84x32xf32, #tpu.memory_space<vmem>>, vector<1x32xf32>
    %515 = vector.broadcast %514 : vector<1x32xf32> to vector<3x32xf32>
    %516 = arith.mulf %515, %513 : vector<3x32xf32>
    %517 = arith.addf %468, %516 : vector<3x32xf32>
    %cst_227 = arith.constant dense<0.000000e+00> : vector<3xf32>
    %518 = vector.multi_reduction <add>, %517, %cst_227 [1] : vector<3x32xf32> to vector<3xf32>
    %519 = vector.shape_cast %518 : vector<3xf32> to vector<3x1xf32>
    %520 = arith.mulf %517, %517 : vector<3x32xf32>
    %cst_228 = arith.constant dense<0.000000e+00> : vector<3xf32>
    %521 = vector.multi_reduction <add>, %520, %cst_228 [1] : vector<3x32xf32> to vector<3xf32>
    %522 = vector.shape_cast %521 : vector<3xf32> to vector<3x1xf32>
    %cst_229 = arith.constant 3.125000e-02 : f32
    %523 = vector.broadcast %cst_229 : f32 to vector<3x1xf32>
    %524 = arith.mulf %519, %523 : vector<3x1xf32>
    %cst_230 = arith.constant 3.125000e-02 : f32
    %525 = vector.broadcast %cst_230 : f32 to vector<3x1xf32>
    %526 = arith.mulf %522, %525 : vector<3x1xf32>
    %527 = arith.mulf %524, %524 : vector<3x1xf32>
    %528 = arith.subf %526, %527 : vector<3x1xf32>
    %529 = vector.broadcast %524 : vector<3x1xf32> to vector<3x32xf32>
    %530 = arith.subf %517, %529 : vector<3x32xf32>
    %cst_231 = arith.constant 9.99999974E-6 : f32
    %531 = vector.broadcast %cst_231 : f32 to vector<3x1xf32>
    %532 = arith.addf %528, %531 : vector<3x1xf32>
    %533 = math.rsqrt %532 : vector<3x1xf32>
    %534 = vector.broadcast %533 : vector<3x1xf32> to vector<3x32xf32>
    %535 = arith.mulf %530, %534 : vector<3x32xf32>
    %c39 = arith.constant 39 : index
    %c0_232 = arith.constant 0 : index
    %536 = vector.load %arg7[%c39, %c0_232] : memref<84x32xf32, #tpu.memory_space<vmem>>, vector<1x32xf32>
    %537 = vector.broadcast %536 : vector<1x32xf32> to vector<3x32xf32>
    %538 = arith.mulf %535, %537 : vector<3x32xf32>
    %c40 = arith.constant 40 : index
    %c0_233 = arith.constant 0 : index
    %539 = vector.load %arg7[%c40, %c0_233] : memref<84x32xf32, #tpu.memory_space<vmem>>, vector<1x32xf32>
    %540 = vector.broadcast %539 : vector<1x32xf32> to vector<3x32xf32>
    %541 = arith.addf %538, %540 : vector<3x32xf32>
    %c2_234 = arith.constant 2 : index
    %c0_235 = arith.constant 0 : index
    %c0_236 = arith.constant 0 : index
    %542 = vector.load %arg4[%c2_234, %c0_235, %c0_236] : memref<6x32x128xf32, #tpu.memory_space<vmem>>, vector<1x32x128xf32>
    %543 = vector.shape_cast %542 : vector<1x32x128xf32> to vector<32x128xf32>
    %cst_237 = arith.constant dense<0.000000e+00> : vector<3x128xf32>
    %544 = tpu.matmul %541, %543, %cst_237 {dimension_numbers = #tpu.dot_dimension_numbers<[1], [0], [0], [1], [0, 0, 1, 1], [], []>} : vector<3x32xf32>, vector<32x128xf32>, vector<3x128xf32> -> vector<3x128xf32>
    %c2_238 = arith.constant 2 : index
    %c0_239 = arith.constant 0 : index
    %545 = vector.load %arg8[%c2_238, %c0_239] : memref<7x128xf32, #tpu.memory_space<vmem>>, vector<1x128xf32>
    %546 = vector.broadcast %545 : vector<1x128xf32> to vector<3x128xf32>
    %547 = arith.addf %544, %546 : vector<3x128xf32>
    %cst_240 = arith.constant 5.000000e-01 : f32
    %548 = vector.broadcast %cst_240 : f32 to vector<3x128xf32>
    %549 = arith.mulf %548, %547 : vector<3x128xf32>
    %cst_241 = arith.constant 4.471500e-02 : f32
    %550 = vector.broadcast %cst_241 : f32 to vector<3x128xf32>
    %551 = arith.mulf %550, %547 : vector<3x128xf32>
    %552 = arith.mulf %551, %547 : vector<3x128xf32>
    %553 = arith.mulf %552, %547 : vector<3x128xf32>
    %554 = arith.addf %547, %553 : vector<3x128xf32>
    %cst_242 = arith.constant 0.797884583 : f32
    %555 = vector.broadcast %cst_242 : f32 to vector<3x128xf32>
    %556 = arith.mulf %555, %554 : vector<3x128xf32>
    %557 = math.tanh %556 : vector<3x128xf32>
    %cst_243 = arith.constant 1.000000e+00 : f32
    %558 = vector.broadcast %cst_243 : f32 to vector<3x128xf32>
    %559 = arith.addf %558, %557 : vector<3x128xf32>
    %560 = arith.mulf %549, %559 : vector<3x128xf32>
    %c2_244 = arith.constant 2 : index
    %c0_245 = arith.constant 0 : index
    %c0_246 = arith.constant 0 : index
    %561 = vector.load %arg5[%c2_244, %c0_245, %c0_246] : memref<6x128x32xf32, #tpu.memory_space<vmem>>, vector<1x128x32xf32>
    %562 = vector.shape_cast %561 : vector<1x128x32xf32> to vector<128x32xf32>
    %cst_247 = arith.constant dense<0.000000e+00> : vector<3x32xf32>
    %563 = tpu.matmul %560, %562, %cst_247 {dimension_numbers = #tpu.dot_dimension_numbers<[1], [0], [0], [1], [0, 0, 1, 1], [], []>} : vector<3x128xf32>, vector<128x32xf32>, vector<3x32xf32> -> vector<3x32xf32>
    %c43 = arith.constant 43 : index
    %c0_248 = arith.constant 0 : index
    %564 = vector.load %arg7[%c43, %c0_248] : memref<84x32xf32, #tpu.memory_space<vmem>>, vector<1x32xf32>
    %565 = vector.broadcast %564 : vector<1x32xf32> to vector<3x32xf32>
    %566 = arith.addf %563, %565 : vector<3x32xf32>
    %c45 = arith.constant 45 : index
    %c0_249 = arith.constant 0 : index
    %567 = vector.load %arg7[%c45, %c0_249] : memref<84x32xf32, #tpu.memory_space<vmem>>, vector<1x32xf32>
    %568 = vector.broadcast %567 : vector<1x32xf32> to vector<3x32xf32>
    %569 = arith.mulf %568, %566 : vector<3x32xf32>
    %570 = arith.addf %541, %569 : vector<3x32xf32>
    %cst_250 = arith.constant dense<0.000000e+00> : vector<3xf32>
    %571 = vector.multi_reduction <add>, %570, %cst_250 [1] : vector<3x32xf32> to vector<3xf32>
    %572 = vector.shape_cast %571 : vector<3xf32> to vector<3x1xf32>
    %573 = arith.mulf %570, %570 : vector<3x32xf32>
    %cst_251 = arith.constant dense<0.000000e+00> : vector<3xf32>
    %574 = vector.multi_reduction <add>, %573, %cst_251 [1] : vector<3x32xf32> to vector<3xf32>
    %575 = vector.shape_cast %574 : vector<3xf32> to vector<3x1xf32>
    %cst_252 = arith.constant 3.125000e-02 : f32
    %576 = vector.broadcast %cst_252 : f32 to vector<3x1xf32>
    %577 = arith.mulf %572, %576 : vector<3x1xf32>
    %cst_253 = arith.constant 3.125000e-02 : f32
    %578 = vector.broadcast %cst_253 : f32 to vector<3x1xf32>
    %579 = arith.mulf %575, %578 : vector<3x1xf32>
    %580 = arith.mulf %577, %577 : vector<3x1xf32>
    %581 = arith.subf %579, %580 : vector<3x1xf32>
    %582 = vector.broadcast %577 : vector<3x1xf32> to vector<3x32xf32>
    %583 = arith.subf %570, %582 : vector<3x32xf32>
    %cst_254 = arith.constant 9.99999974E-6 : f32
    %584 = vector.broadcast %cst_254 : f32 to vector<3x1xf32>
    %585 = arith.addf %581, %584 : vector<3x1xf32>
    %586 = math.rsqrt %585 : vector<3x1xf32>
    %587 = vector.broadcast %586 : vector<3x1xf32> to vector<3x32xf32>
    %588 = arith.mulf %583, %587 : vector<3x32xf32>
    %c41 = arith.constant 41 : index
    %c0_255 = arith.constant 0 : index
    %589 = vector.load %arg7[%c41, %c0_255] : memref<84x32xf32, #tpu.memory_space<vmem>>, vector<1x32xf32>
    %590 = vector.broadcast %589 : vector<1x32xf32> to vector<3x32xf32>
    %591 = arith.mulf %588, %590 : vector<3x32xf32>
    %c42 = arith.constant 42 : index
    %c0_256 = arith.constant 0 : index
    %592 = vector.load %arg7[%c42, %c0_256] : memref<84x32xf32, #tpu.memory_space<vmem>>, vector<1x32xf32>
    %593 = vector.broadcast %592 : vector<1x32xf32> to vector<3x32xf32>
    %594 = arith.addf %591, %593 : vector<3x32xf32>
    %c26_257 = arith.constant 26 : index
    %c0_258 = arith.constant 0 : index
    %c0_259 = arith.constant 0 : index
    %595 = vector.load %arg3[%c26_257, %c0_258, %c0_259] : memref<33x32x32xf32, #tpu.memory_space<vmem>>, vector<1x32x32xf32>
    %596 = vector.shape_cast %595 : vector<1x32x32xf32> to vector<32x32xf32>
    %cst_260 = arith.constant dense<0.000000e+00> : vector<3x32xf32>
    %597 = tpu.matmul %594, %596, %cst_260 {dimension_numbers = #tpu.dot_dimension_numbers<[1], [0], [0], [1], [0, 0, 1, 1], [], []>} : vector<3x32xf32>, vector<32x32xf32>, vector<3x32xf32> -> vector<3x32xf32>
    %c50 = arith.constant 50 : index
    %c0_261 = arith.constant 0 : index
    %598 = vector.load %arg7[%c50, %c0_261] : memref<84x32xf32, #tpu.memory_space<vmem>>, vector<1x32xf32>
    %599 = vector.broadcast %598 : vector<1x32xf32> to vector<3x32xf32>
    %600 = arith.addf %597, %599 : vector<3x32xf32>
    %c24_262 = arith.constant 24 : index
    %c0_263 = arith.constant 0 : index
    %c0_264 = arith.constant 0 : index
    %601 = vector.load %arg3[%c24_262, %c0_263, %c0_264] : memref<33x32x32xf32, #tpu.memory_space<vmem>>, vector<1x32x32xf32>
    %602 = vector.shape_cast %601 : vector<1x32x32xf32> to vector<32x32xf32>
    %cst_265 = arith.constant dense<0.000000e+00> : vector<3x32xf32>
    %603 = tpu.matmul %594, %602, %cst_265 {dimension_numbers = #tpu.dot_dimension_numbers<[1], [0], [0], [1], [0, 0, 1, 1], [], []>} : vector<3x32xf32>, vector<32x32xf32>, vector<3x32xf32> -> vector<3x32xf32>
    %c48 = arith.constant 48 : index
    %c0_266 = arith.constant 0 : index
    %604 = vector.load %arg7[%c48, %c0_266] : memref<84x32xf32, #tpu.memory_space<vmem>>, vector<1x32xf32>
    %605 = vector.broadcast %604 : vector<1x32xf32> to vector<3x32xf32>
    %606 = arith.addf %603, %605 : vector<3x32xf32>
    %c25_267 = arith.constant 25 : index
    %c0_268 = arith.constant 0 : index
    %c0_269 = arith.constant 0 : index
    %607 = vector.load %arg3[%c25_267, %c0_268, %c0_269] : memref<33x32x32xf32, #tpu.memory_space<vmem>>, vector<1x32x32xf32>
    %608 = vector.shape_cast %607 : vector<1x32x32xf32> to vector<32x32xf32>
    %cst_270 = arith.constant dense<0.000000e+00> : vector<3x32xf32>
    %609 = tpu.matmul %594, %608, %cst_270 {dimension_numbers = #tpu.dot_dimension_numbers<[1], [0], [0], [1], [0, 0, 1, 1], [], []>} : vector<3x32xf32>, vector<32x32xf32>, vector<3x32xf32> -> vector<3x32xf32>
    %c49 = arith.constant 49 : index
    %c0_271 = arith.constant 0 : index
    %610 = vector.load %arg7[%c49, %c0_271] : memref<84x32xf32, #tpu.memory_space<vmem>>, vector<1x32xf32>
    %611 = vector.broadcast %610 : vector<1x32xf32> to vector<3x32xf32>
    %612 = arith.addf %609, %611 : vector<3x32xf32>
    %cst_272 = arith.constant 0.000000e+00 : f32
    %613 = vector.broadcast %cst_272 : f32 to vector<5x32xf32>
    %614 = tpu.concatenate %606, %613 in 0 : vector<3x32xf32>, vector<5x32xf32> -> vector<8x32xf32>
    %615 = tpu.concatenate %614, %614, %614, %614 in 0 : vector<8x32xf32>, vector<8x32xf32>, vector<8x32xf32>, vector<8x32xf32> -> vector<32x32xf32>
    %616 = arith.mulf %615, %8 : vector<32x32xf32>
    %cst_273 = arith.constant dense<0.000000e+00> : vector<32x3xf32>
    %617 = tpu.matmul %616, %612, %cst_273 {dimension_numbers = #tpu.dot_dimension_numbers<[1], [1], [0], [0], [0, 0, 1, 0], [], []>} : vector<32x32xf32>, vector<3x32xf32>, vector<32x3xf32> -> vector<32x3xf32>
    %cst_274 = arith.constant 0.353553385 : f32
    %618 = vector.broadcast %cst_274 : f32 to vector<32x3xf32>
    %619 = arith.mulf %617, %618 : vector<32x3xf32>
    %cst_275 = arith.constant dense<0xFF800000> : vector<32xf32>
    %620 = vector.multi_reduction <maximumf>, %619, %cst_275 [1] : vector<32x3xf32> to vector<32xf32>
    %621 = vector.shape_cast %620 : vector<32xf32> to vector<32x1xf32>
    %622 = vector.broadcast %621 : vector<32x1xf32> to vector<32x3xf32>
    %623 = arith.subf %619, %622 : vector<32x3xf32>
    %624 = math.exp %623 : vector<32x3xf32>
    %cst_276 = arith.constant dense<0.000000e+00> : vector<32xf32>
    %625 = vector.multi_reduction <add>, %624, %cst_276 [1] : vector<32x3xf32> to vector<32xf32>
    %626 = vector.shape_cast %625 : vector<32xf32> to vector<32x1xf32>
    %627 = tpu.reciprocal %626 {approx = true} : vector<32x1xf32> -> vector<32x1xf32>
    %628 = vector.broadcast %627 : vector<32x1xf32> to vector<32x3xf32>
    %629 = arith.mulf %624, %628 : vector<32x3xf32>
    %cst_277 = arith.constant dense<0.000000e+00> : vector<32x32xf32>
    %630 = tpu.matmul %629, %600, %cst_277 {dimension_numbers = #tpu.dot_dimension_numbers<[1], [0], [0], [1], [0, 0, 1, 1], [], []>} : vector<32x3xf32>, vector<3x32xf32>, vector<32x32xf32> -> vector<32x32xf32>
    %631 = arith.mulf %630, %8 : vector<32x32xf32>
    %632 = vector.extract_strided_slice %631 {offsets = [0, 0], sizes = [8, 32], strides = [1, 1]} : vector<32x32xf32> to vector<8x32xf32>
    %633 = vector.extract_strided_slice %631 {offsets = [8, 0], sizes = [8, 32], strides = [1, 1]} : vector<32x32xf32> to vector<8x32xf32>
    %634 = arith.addf %632, %633 : vector<8x32xf32>
    %635 = vector.extract_strided_slice %631 {offsets = [16, 0], sizes = [8, 32], strides = [1, 1]} : vector<32x32xf32> to vector<8x32xf32>
    %636 = arith.addf %634, %635 : vector<8x32xf32>
    %637 = vector.extract_strided_slice %631 {offsets = [24, 0], sizes = [8, 32], strides = [1, 1]} : vector<32x32xf32> to vector<8x32xf32>
    %638 = arith.addf %636, %637 : vector<8x32xf32>
    %639 = vector.extract_strided_slice %638 {offsets = [0, 0], sizes = [3, 32], strides = [1, 1]} : vector<8x32xf32> to vector<3x32xf32>
    %c56 = arith.constant 56 : index
    %c0_278 = arith.constant 0 : index
    %640 = vector.load %arg7[%c56, %c0_278] : memref<84x32xf32, #tpu.memory_space<vmem>>, vector<1x32xf32>
    %641 = vector.broadcast %640 : vector<1x32xf32> to vector<3x32xf32>
    %642 = arith.mulf %641, %639 : vector<3x32xf32>
    %643 = arith.addf %594, %642 : vector<3x32xf32>
    %cst_279 = arith.constant dense<0.000000e+00> : vector<3xf32>
    %644 = vector.multi_reduction <add>, %643, %cst_279 [1] : vector<3x32xf32> to vector<3xf32>
    %645 = vector.shape_cast %644 : vector<3xf32> to vector<3x1xf32>
    %646 = arith.mulf %643, %643 : vector<3x32xf32>
    %cst_280 = arith.constant dense<0.000000e+00> : vector<3xf32>
    %647 = vector.multi_reduction <add>, %646, %cst_280 [1] : vector<3x32xf32> to vector<3xf32>
    %648 = vector.shape_cast %647 : vector<3xf32> to vector<3x1xf32>
    %cst_281 = arith.constant 3.125000e-02 : f32
    %649 = vector.broadcast %cst_281 : f32 to vector<3x1xf32>
    %650 = arith.mulf %645, %649 : vector<3x1xf32>
    %cst_282 = arith.constant 3.125000e-02 : f32
    %651 = vector.broadcast %cst_282 : f32 to vector<3x1xf32>
    %652 = arith.mulf %648, %651 : vector<3x1xf32>
    %653 = arith.mulf %650, %650 : vector<3x1xf32>
    %654 = arith.subf %652, %653 : vector<3x1xf32>
    %655 = vector.broadcast %650 : vector<3x1xf32> to vector<3x32xf32>
    %656 = arith.subf %643, %655 : vector<3x32xf32>
    %cst_283 = arith.constant 9.99999974E-6 : f32
    %657 = vector.broadcast %cst_283 : f32 to vector<3x1xf32>
    %658 = arith.addf %654, %657 : vector<3x1xf32>
    %659 = math.rsqrt %658 : vector<3x1xf32>
    %660 = vector.broadcast %659 : vector<3x1xf32> to vector<3x32xf32>
    %661 = arith.mulf %656, %660 : vector<3x32xf32>
    %c51 = arith.constant 51 : index
    %c0_284 = arith.constant 0 : index
    %662 = vector.load %arg7[%c51, %c0_284] : memref<84x32xf32, #tpu.memory_space<vmem>>, vector<1x32xf32>
    %663 = vector.broadcast %662 : vector<1x32xf32> to vector<3x32xf32>
    %664 = arith.mulf %661, %663 : vector<3x32xf32>
    %c52 = arith.constant 52 : index
    %c0_285 = arith.constant 0 : index
    %665 = vector.load %arg7[%c52, %c0_285] : memref<84x32xf32, #tpu.memory_space<vmem>>, vector<1x32xf32>
    %666 = vector.broadcast %665 : vector<1x32xf32> to vector<3x32xf32>
    %667 = arith.addf %664, %666 : vector<3x32xf32>
    %c3_286 = arith.constant 3 : index
    %c0_287 = arith.constant 0 : index
    %c0_288 = arith.constant 0 : index
    %668 = vector.load %arg4[%c3_286, %c0_287, %c0_288] : memref<6x32x128xf32, #tpu.memory_space<vmem>>, vector<1x32x128xf32>
    %669 = vector.shape_cast %668 : vector<1x32x128xf32> to vector<32x128xf32>
    %cst_289 = arith.constant dense<0.000000e+00> : vector<3x128xf32>
    %670 = tpu.matmul %667, %669, %cst_289 {dimension_numbers = #tpu.dot_dimension_numbers<[1], [0], [0], [1], [0, 0, 1, 1], [], []>} : vector<3x32xf32>, vector<32x128xf32>, vector<3x128xf32> -> vector<3x128xf32>
    %c3_290 = arith.constant 3 : index
    %c0_291 = arith.constant 0 : index
    %671 = vector.load %arg8[%c3_290, %c0_291] : memref<7x128xf32, #tpu.memory_space<vmem>>, vector<1x128xf32>
    %672 = vector.broadcast %671 : vector<1x128xf32> to vector<3x128xf32>
    %673 = arith.addf %670, %672 : vector<3x128xf32>
    %cst_292 = arith.constant 5.000000e-01 : f32
    %674 = vector.broadcast %cst_292 : f32 to vector<3x128xf32>
    %675 = arith.mulf %674, %673 : vector<3x128xf32>
    %cst_293 = arith.constant 4.471500e-02 : f32
    %676 = vector.broadcast %cst_293 : f32 to vector<3x128xf32>
    %677 = arith.mulf %676, %673 : vector<3x128xf32>
    %678 = arith.mulf %677, %673 : vector<3x128xf32>
    %679 = arith.mulf %678, %673 : vector<3x128xf32>
    %680 = arith.addf %673, %679 : vector<3x128xf32>
    %cst_294 = arith.constant 0.797884583 : f32
    %681 = vector.broadcast %cst_294 : f32 to vector<3x128xf32>
    %682 = arith.mulf %681, %680 : vector<3x128xf32>
    %683 = math.tanh %682 : vector<3x128xf32>
    %cst_295 = arith.constant 1.000000e+00 : f32
    %684 = vector.broadcast %cst_295 : f32 to vector<3x128xf32>
    %685 = arith.addf %684, %683 : vector<3x128xf32>
    %686 = arith.mulf %675, %685 : vector<3x128xf32>
    %c3_296 = arith.constant 3 : index
    %c0_297 = arith.constant 0 : index
    %c0_298 = arith.constant 0 : index
    %687 = vector.load %arg5[%c3_296, %c0_297, %c0_298] : memref<6x128x32xf32, #tpu.memory_space<vmem>>, vector<1x128x32xf32>
    %688 = vector.shape_cast %687 : vector<1x128x32xf32> to vector<128x32xf32>
    %cst_299 = arith.constant dense<0.000000e+00> : vector<3x32xf32>
    %689 = tpu.matmul %686, %688, %cst_299 {dimension_numbers = #tpu.dot_dimension_numbers<[1], [0], [0], [1], [0, 0, 1, 1], [], []>} : vector<3x128xf32>, vector<128x32xf32>, vector<3x32xf32> -> vector<3x32xf32>
    %c55 = arith.constant 55 : index
    %c0_300 = arith.constant 0 : index
    %690 = vector.load %arg7[%c55, %c0_300] : memref<84x32xf32, #tpu.memory_space<vmem>>, vector<1x32xf32>
    %691 = vector.broadcast %690 : vector<1x32xf32> to vector<3x32xf32>
    %692 = arith.addf %689, %691 : vector<3x32xf32>
    %c57 = arith.constant 57 : index
    %c0_301 = arith.constant 0 : index
    %693 = vector.load %arg7[%c57, %c0_301] : memref<84x32xf32, #tpu.memory_space<vmem>>, vector<1x32xf32>
    %694 = vector.broadcast %693 : vector<1x32xf32> to vector<3x32xf32>
    %695 = arith.mulf %694, %692 : vector<3x32xf32>
    %696 = arith.addf %667, %695 : vector<3x32xf32>
    %cst_302 = arith.constant dense<0.000000e+00> : vector<3xf32>
    %697 = vector.multi_reduction <add>, %696, %cst_302 [1] : vector<3x32xf32> to vector<3xf32>
    %698 = vector.shape_cast %697 : vector<3xf32> to vector<3x1xf32>
    %699 = arith.mulf %696, %696 : vector<3x32xf32>
    %cst_303 = arith.constant dense<0.000000e+00> : vector<3xf32>
    %700 = vector.multi_reduction <add>, %699, %cst_303 [1] : vector<3x32xf32> to vector<3xf32>
    %701 = vector.shape_cast %700 : vector<3xf32> to vector<3x1xf32>
    %cst_304 = arith.constant 3.125000e-02 : f32
    %702 = vector.broadcast %cst_304 : f32 to vector<3x1xf32>
    %703 = arith.mulf %698, %702 : vector<3x1xf32>
    %cst_305 = arith.constant 3.125000e-02 : f32
    %704 = vector.broadcast %cst_305 : f32 to vector<3x1xf32>
    %705 = arith.mulf %701, %704 : vector<3x1xf32>
    %706 = arith.mulf %703, %703 : vector<3x1xf32>
    %707 = arith.subf %705, %706 : vector<3x1xf32>
    %708 = vector.broadcast %703 : vector<3x1xf32> to vector<3x32xf32>
    %709 = arith.subf %696, %708 : vector<3x32xf32>
    %cst_306 = arith.constant 9.99999974E-6 : f32
    %710 = vector.broadcast %cst_306 : f32 to vector<3x1xf32>
    %711 = arith.addf %707, %710 : vector<3x1xf32>
    %712 = math.rsqrt %711 : vector<3x1xf32>
    %713 = vector.broadcast %712 : vector<3x1xf32> to vector<3x32xf32>
    %714 = arith.mulf %709, %713 : vector<3x32xf32>
    %c53 = arith.constant 53 : index
    %c0_307 = arith.constant 0 : index
    %715 = vector.load %arg7[%c53, %c0_307] : memref<84x32xf32, #tpu.memory_space<vmem>>, vector<1x32xf32>
    %716 = vector.broadcast %715 : vector<1x32xf32> to vector<3x32xf32>
    %717 = arith.mulf %714, %716 : vector<3x32xf32>
    %c54 = arith.constant 54 : index
    %c0_308 = arith.constant 0 : index
    %718 = vector.load %arg7[%c54, %c0_308] : memref<84x32xf32, #tpu.memory_space<vmem>>, vector<1x32xf32>
    %719 = vector.broadcast %718 : vector<1x32xf32> to vector<3x32xf32>
    %720 = arith.addf %717, %719 : vector<3x32xf32>
    %c2_309 = arith.constant 2 : index
    %c0_310 = arith.constant 0 : index
    %c0_311 = arith.constant 0 : index
    %721 = vector.load %arg2[%c2_309, %c0_310, %c0_311] : memref<3x64x32xf32, #tpu.memory_space<vmem>>, vector<1x64x32xf32>
    %722 = vector.shape_cast %721 : vector<1x64x32xf32> to vector<64x32xf32>
    %723 = vector.extract_strided_slice %722 {offsets = [0, 0], sizes = [32, 32], strides = [1, 1]} : vector<64x32xf32> to vector<32x32xf32>
    %c2_312 = arith.constant 2 : index
    %c0_313 = arith.constant 0 : index
    %c0_314 = arith.constant 0 : index
    %724 = vector.load %arg2[%c2_312, %c0_313, %c0_314] : memref<3x64x32xf32, #tpu.memory_space<vmem>>, vector<1x64x32xf32>
    %725 = vector.shape_cast %724 : vector<1x64x32xf32> to vector<64x32xf32>
    %726 = vector.extract_strided_slice %725 {offsets = [32, 0], sizes = [32, 32], strides = [1, 1]} : vector<64x32xf32> to vector<32x32xf32>
    %727 = vector.extract_strided_slice %720 {offsets = [0, 0], sizes = [1, 32], strides = [1, 1]} : vector<3x32xf32> to vector<1x32xf32>
    %cst_315 = arith.constant dense<0.000000e+00> : vector<1x32xf32>
    %728 = tpu.matmul %727, %723, %cst_315 {dimension_numbers = #tpu.dot_dimension_numbers<[1], [0], [0], [1], [0, 0, 1, 1], [], []>} : vector<1x32xf32>, vector<32x32xf32>, vector<1x32xf32> -> vector<1x32xf32>
    %729 = vector.extract_strided_slice %720 {offsets = [1, 0], sizes = [1, 32], strides = [1, 1]} : vector<3x32xf32> to vector<1x32xf32>
    %cst_316 = arith.constant dense<0.000000e+00> : vector<1x32xf32>
    %730 = tpu.matmul %729, %726, %cst_316 {dimension_numbers = #tpu.dot_dimension_numbers<[1], [0], [0], [1], [0, 0, 1, 1], [], []>} : vector<1x32xf32>, vector<32x32xf32>, vector<1x32xf32> -> vector<1x32xf32>
    %731 = arith.addf %728, %730 : vector<1x32xf32>
    %c8_317 = arith.constant 8 : index
    %c0_318 = arith.constant 0 : index
    %732 = vector.load %arg7[%c8_317, %c0_318] : memref<84x32xf32, #tpu.memory_space<vmem>>, vector<1x32xf32>
    %733 = arith.addf %731, %732 : vector<1x32xf32>
    %cst_319 = arith.constant dense<0.000000e+00> : vector<1xf32>
    %734 = vector.multi_reduction <add>, %733, %cst_319 [1] : vector<1x32xf32> to vector<1xf32>
    %735 = vector.shape_cast %734 : vector<1xf32> to vector<1x1xf32>
    %736 = arith.mulf %733, %733 : vector<1x32xf32>
    %cst_320 = arith.constant dense<0.000000e+00> : vector<1xf32>
    %737 = vector.multi_reduction <add>, %736, %cst_320 [1] : vector<1x32xf32> to vector<1xf32>
    %738 = vector.shape_cast %737 : vector<1xf32> to vector<1x1xf32>
    %cst_321 = arith.constant 3.125000e-02 : f32
    %739 = vector.broadcast %cst_321 : f32 to vector<1x1xf32>
    %740 = arith.mulf %735, %739 : vector<1x1xf32>
    %cst_322 = arith.constant 3.125000e-02 : f32
    %741 = vector.broadcast %cst_322 : f32 to vector<1x1xf32>
    %742 = arith.mulf %738, %741 : vector<1x1xf32>
    %743 = arith.mulf %740, %740 : vector<1x1xf32>
    %744 = arith.subf %742, %743 : vector<1x1xf32>
    %745 = vector.broadcast %740 : vector<1x1xf32> to vector<1x32xf32>
    %746 = arith.subf %733, %745 : vector<1x32xf32>
    %cst_323 = arith.constant 9.99999974E-6 : f32
    %747 = vector.broadcast %cst_323 : f32 to vector<1x1xf32>
    %748 = arith.addf %744, %747 : vector<1x1xf32>
    %749 = math.rsqrt %748 : vector<1x1xf32>
    %750 = vector.broadcast %749 : vector<1x1xf32> to vector<1x32xf32>
    %751 = arith.mulf %746, %750 : vector<1x32xf32>
    %c9_324 = arith.constant 9 : index
    %c0_325 = arith.constant 0 : index
    %752 = vector.load %arg7[%c9_324, %c0_325] : memref<84x32xf32, #tpu.memory_space<vmem>>, vector<1x32xf32>
    %753 = arith.mulf %751, %752 : vector<1x32xf32>
    %c10 = arith.constant 10 : index
    %c0_326 = arith.constant 0 : index
    %754 = vector.load %arg7[%c10, %c0_326] : memref<84x32xf32, #tpu.memory_space<vmem>>, vector<1x32xf32>
    %755 = arith.addf %753, %754 : vector<1x32xf32>
    %c12_327 = arith.constant 12 : index
    %c0_328 = arith.constant 0 : index
    %c0_329 = arith.constant 0 : index
    %756 = vector.load %arg3[%c12_327, %c0_328, %c0_329] : memref<33x32x32xf32, #tpu.memory_space<vmem>>, vector<1x32x32xf32>
    %757 = vector.shape_cast %756 : vector<1x32x32xf32> to vector<32x32xf32>
    %cst_330 = arith.constant dense<0.000000e+00> : vector<1x32xf32>
    %758 = tpu.matmul %755, %757, %cst_330 {dimension_numbers = #tpu.dot_dimension_numbers<[1], [0], [0], [1], [0, 0, 1, 1], [], []>} : vector<1x32xf32>, vector<32x32xf32>, vector<1x32xf32> -> vector<1x32xf32>
    %c11 = arith.constant 11 : index
    %c0_331 = arith.constant 0 : index
    %759 = vector.load %arg7[%c11, %c0_331] : memref<84x32xf32, #tpu.memory_space<vmem>>, vector<1x32xf32>
    %760 = arith.addf %758, %759 : vector<1x32xf32>
    %761 = arith.addf %755, %760 : vector<1x32xf32>
    %c29_332 = arith.constant 29 : index
    %c0_333 = arith.constant 0 : index
    %c0_334 = arith.constant 0 : index
    %762 = vector.load %arg3[%c29_332, %c0_333, %c0_334] : memref<33x32x32xf32, #tpu.memory_space<vmem>>, vector<1x32x32xf32>
    %763 = vector.shape_cast %762 : vector<1x32x32xf32> to vector<32x32xf32>
    %cst_335 = arith.constant dense<0.000000e+00> : vector<1x32xf32>
    %764 = tpu.matmul %761, %763, %cst_335 {dimension_numbers = #tpu.dot_dimension_numbers<[1], [0], [0], [1], [0, 0, 1, 1], [], []>} : vector<1x32xf32>, vector<32x32xf32>, vector<1x32xf32> -> vector<1x32xf32>
    %c62 = arith.constant 62 : index
    %c0_336 = arith.constant 0 : index
    %765 = vector.load %arg7[%c62, %c0_336] : memref<84x32xf32, #tpu.memory_space<vmem>>, vector<1x32xf32>
    %766 = arith.addf %764, %765 : vector<1x32xf32>
    %c68 = arith.constant 68 : index
    %c0_337 = arith.constant 0 : index
    %767 = vector.load %arg7[%c68, %c0_337] : memref<84x32xf32, #tpu.memory_space<vmem>>, vector<1x32xf32>
    %768 = arith.mulf %767, %766 : vector<1x32xf32>
    %769 = arith.addf %761, %768 : vector<1x32xf32>
    %cst_338 = arith.constant dense<0.000000e+00> : vector<1xf32>
    %770 = vector.multi_reduction <add>, %769, %cst_338 [1] : vector<1x32xf32> to vector<1xf32>
    %771 = vector.shape_cast %770 : vector<1xf32> to vector<1x1xf32>
    %772 = arith.mulf %769, %769 : vector<1x32xf32>
    %cst_339 = arith.constant dense<0.000000e+00> : vector<1xf32>
    %773 = vector.multi_reduction <add>, %772, %cst_339 [1] : vector<1x32xf32> to vector<1xf32>
    %774 = vector.shape_cast %773 : vector<1xf32> to vector<1x1xf32>
    %cst_340 = arith.constant 3.125000e-02 : f32
    %775 = vector.broadcast %cst_340 : f32 to vector<1x1xf32>
    %776 = arith.mulf %771, %775 : vector<1x1xf32>
    %cst_341 = arith.constant 3.125000e-02 : f32
    %777 = vector.broadcast %cst_341 : f32 to vector<1x1xf32>
    %778 = arith.mulf %774, %777 : vector<1x1xf32>
    %779 = arith.mulf %776, %776 : vector<1x1xf32>
    %780 = arith.subf %778, %779 : vector<1x1xf32>
    %781 = vector.broadcast %776 : vector<1x1xf32> to vector<1x32xf32>
    %782 = arith.subf %769, %781 : vector<1x32xf32>
    %cst_342 = arith.constant 9.99999974E-6 : f32
    %783 = vector.broadcast %cst_342 : f32 to vector<1x1xf32>
    %784 = arith.addf %780, %783 : vector<1x1xf32>
    %785 = math.rsqrt %784 : vector<1x1xf32>
    %786 = vector.broadcast %785 : vector<1x1xf32> to vector<1x32xf32>
    %787 = arith.mulf %782, %786 : vector<1x32xf32>
    %c63 = arith.constant 63 : index
    %c0_343 = arith.constant 0 : index
    %788 = vector.load %arg7[%c63, %c0_343] : memref<84x32xf32, #tpu.memory_space<vmem>>, vector<1x32xf32>
    %789 = arith.mulf %787, %788 : vector<1x32xf32>
    %c64 = arith.constant 64 : index
    %c0_344 = arith.constant 0 : index
    %790 = vector.load %arg7[%c64, %c0_344] : memref<84x32xf32, #tpu.memory_space<vmem>>, vector<1x32xf32>
    %791 = arith.addf %789, %790 : vector<1x32xf32>
    %c4_345 = arith.constant 4 : index
    %c0_346 = arith.constant 0 : index
    %c0_347 = arith.constant 0 : index
    %792 = vector.load %arg4[%c4_345, %c0_346, %c0_347] : memref<6x32x128xf32, #tpu.memory_space<vmem>>, vector<1x32x128xf32>
    %793 = vector.shape_cast %792 : vector<1x32x128xf32> to vector<32x128xf32>
    %cst_348 = arith.constant dense<0.000000e+00> : vector<1x128xf32>
    %794 = tpu.matmul %791, %793, %cst_348 {dimension_numbers = #tpu.dot_dimension_numbers<[1], [0], [0], [1], [0, 0, 1, 1], [], []>} : vector<1x32xf32>, vector<32x128xf32>, vector<1x128xf32> -> vector<1x128xf32>
    %c4_349 = arith.constant 4 : index
    %c0_350 = arith.constant 0 : index
    %795 = vector.load %arg8[%c4_349, %c0_350] : memref<7x128xf32, #tpu.memory_space<vmem>>, vector<1x128xf32>
    %796 = arith.addf %794, %795 : vector<1x128xf32>
    %cst_351 = arith.constant 5.000000e-01 : f32
    %797 = vector.broadcast %cst_351 : f32 to vector<1x128xf32>
    %798 = arith.mulf %797, %796 : vector<1x128xf32>
    %cst_352 = arith.constant 4.471500e-02 : f32
    %799 = vector.broadcast %cst_352 : f32 to vector<1x128xf32>
    %800 = arith.mulf %799, %796 : vector<1x128xf32>
    %801 = arith.mulf %800, %796 : vector<1x128xf32>
    %802 = arith.mulf %801, %796 : vector<1x128xf32>
    %803 = arith.addf %796, %802 : vector<1x128xf32>
    %cst_353 = arith.constant 0.797884583 : f32
    %804 = vector.broadcast %cst_353 : f32 to vector<1x128xf32>
    %805 = arith.mulf %804, %803 : vector<1x128xf32>
    %806 = math.tanh %805 : vector<1x128xf32>
    %cst_354 = arith.constant 1.000000e+00 : f32
    %807 = vector.broadcast %cst_354 : f32 to vector<1x128xf32>
    %808 = arith.addf %807, %806 : vector<1x128xf32>
    %809 = arith.mulf %798, %808 : vector<1x128xf32>
    %c4_355 = arith.constant 4 : index
    %c0_356 = arith.constant 0 : index
    %c0_357 = arith.constant 0 : index
    %810 = vector.load %arg5[%c4_355, %c0_356, %c0_357] : memref<6x128x32xf32, #tpu.memory_space<vmem>>, vector<1x128x32xf32>
    %811 = vector.shape_cast %810 : vector<1x128x32xf32> to vector<128x32xf32>
    %cst_358 = arith.constant dense<0.000000e+00> : vector<1x32xf32>
    %812 = tpu.matmul %809, %811, %cst_358 {dimension_numbers = #tpu.dot_dimension_numbers<[1], [0], [0], [1], [0, 0, 1, 1], [], []>} : vector<1x128xf32>, vector<128x32xf32>, vector<1x32xf32> -> vector<1x32xf32>
    %c67 = arith.constant 67 : index
    %c0_359 = arith.constant 0 : index
    %813 = vector.load %arg7[%c67, %c0_359] : memref<84x32xf32, #tpu.memory_space<vmem>>, vector<1x32xf32>
    %814 = arith.addf %812, %813 : vector<1x32xf32>
    %c69 = arith.constant 69 : index
    %c0_360 = arith.constant 0 : index
    %815 = vector.load %arg7[%c69, %c0_360] : memref<84x32xf32, #tpu.memory_space<vmem>>, vector<1x32xf32>
    %816 = arith.mulf %815, %814 : vector<1x32xf32>
    %817 = arith.addf %791, %816 : vector<1x32xf32>
    %cst_361 = arith.constant dense<0.000000e+00> : vector<1xf32>
    %818 = vector.multi_reduction <add>, %817, %cst_361 [1] : vector<1x32xf32> to vector<1xf32>
    %819 = vector.shape_cast %818 : vector<1xf32> to vector<1x1xf32>
    %820 = arith.mulf %817, %817 : vector<1x32xf32>
    %cst_362 = arith.constant dense<0.000000e+00> : vector<1xf32>
    %821 = vector.multi_reduction <add>, %820, %cst_362 [1] : vector<1x32xf32> to vector<1xf32>
    %822 = vector.shape_cast %821 : vector<1xf32> to vector<1x1xf32>
    %cst_363 = arith.constant 3.125000e-02 : f32
    %823 = vector.broadcast %cst_363 : f32 to vector<1x1xf32>
    %824 = arith.mulf %819, %823 : vector<1x1xf32>
    %cst_364 = arith.constant 3.125000e-02 : f32
    %825 = vector.broadcast %cst_364 : f32 to vector<1x1xf32>
    %826 = arith.mulf %822, %825 : vector<1x1xf32>
    %827 = arith.mulf %824, %824 : vector<1x1xf32>
    %828 = arith.subf %826, %827 : vector<1x1xf32>
    %829 = vector.broadcast %824 : vector<1x1xf32> to vector<1x32xf32>
    %830 = arith.subf %817, %829 : vector<1x32xf32>
    %cst_365 = arith.constant 9.99999974E-6 : f32
    %831 = vector.broadcast %cst_365 : f32 to vector<1x1xf32>
    %832 = arith.addf %828, %831 : vector<1x1xf32>
    %833 = math.rsqrt %832 : vector<1x1xf32>
    %834 = vector.broadcast %833 : vector<1x1xf32> to vector<1x32xf32>
    %835 = arith.mulf %830, %834 : vector<1x32xf32>
    %c65 = arith.constant 65 : index
    %c0_366 = arith.constant 0 : index
    %836 = vector.load %arg7[%c65, %c0_366] : memref<84x32xf32, #tpu.memory_space<vmem>>, vector<1x32xf32>
    %837 = arith.mulf %835, %836 : vector<1x32xf32>
    %c66 = arith.constant 66 : index
    %c0_367 = arith.constant 0 : index
    %838 = vector.load %arg7[%c66, %c0_367] : memref<84x32xf32, #tpu.memory_space<vmem>>, vector<1x32xf32>
    %839 = arith.addf %837, %838 : vector<1x32xf32>
    %c32_368 = arith.constant 32 : index
    %c0_369 = arith.constant 0 : index
    %c0_370 = arith.constant 0 : index
    %840 = vector.load %arg3[%c32_368, %c0_369, %c0_370] : memref<33x32x32xf32, #tpu.memory_space<vmem>>, vector<1x32x32xf32>
    %841 = vector.shape_cast %840 : vector<1x32x32xf32> to vector<32x32xf32>
    %cst_371 = arith.constant dense<0.000000e+00> : vector<1x32xf32>
    %842 = tpu.matmul %839, %841, %cst_371 {dimension_numbers = #tpu.dot_dimension_numbers<[1], [0], [0], [1], [0, 0, 1, 1], [], []>} : vector<1x32xf32>, vector<32x32xf32>, vector<1x32xf32> -> vector<1x32xf32>
    %c74 = arith.constant 74 : index
    %c0_372 = arith.constant 0 : index
    %843 = vector.load %arg7[%c74, %c0_372] : memref<84x32xf32, #tpu.memory_space<vmem>>, vector<1x32xf32>
    %844 = arith.addf %842, %843 : vector<1x32xf32>
    %c80 = arith.constant 80 : index
    %c0_373 = arith.constant 0 : index
    %845 = vector.load %arg7[%c80, %c0_373] : memref<84x32xf32, #tpu.memory_space<vmem>>, vector<1x32xf32>
    %846 = arith.mulf %845, %844 : vector<1x32xf32>
    %847 = arith.addf %839, %846 : vector<1x32xf32>
    %cst_374 = arith.constant dense<0.000000e+00> : vector<1xf32>
    %848 = vector.multi_reduction <add>, %847, %cst_374 [1] : vector<1x32xf32> to vector<1xf32>
    %849 = vector.shape_cast %848 : vector<1xf32> to vector<1x1xf32>
    %850 = arith.mulf %847, %847 : vector<1x32xf32>
    %cst_375 = arith.constant dense<0.000000e+00> : vector<1xf32>
    %851 = vector.multi_reduction <add>, %850, %cst_375 [1] : vector<1x32xf32> to vector<1xf32>
    %852 = vector.shape_cast %851 : vector<1xf32> to vector<1x1xf32>
    %cst_376 = arith.constant 3.125000e-02 : f32
    %853 = vector.broadcast %cst_376 : f32 to vector<1x1xf32>
    %854 = arith.mulf %849, %853 : vector<1x1xf32>
    %cst_377 = arith.constant 3.125000e-02 : f32
    %855 = vector.broadcast %cst_377 : f32 to vector<1x1xf32>
    %856 = arith.mulf %852, %855 : vector<1x1xf32>
    %857 = arith.mulf %854, %854 : vector<1x1xf32>
    %858 = arith.subf %856, %857 : vector<1x1xf32>
    %859 = vector.broadcast %854 : vector<1x1xf32> to vector<1x32xf32>
    %860 = arith.subf %847, %859 : vector<1x32xf32>
    %cst_378 = arith.constant 9.99999974E-6 : f32
    %861 = vector.broadcast %cst_378 : f32 to vector<1x1xf32>
    %862 = arith.addf %858, %861 : vector<1x1xf32>
    %863 = math.rsqrt %862 : vector<1x1xf32>
    %864 = vector.broadcast %863 : vector<1x1xf32> to vector<1x32xf32>
    %865 = arith.mulf %860, %864 : vector<1x32xf32>
    %c75 = arith.constant 75 : index
    %c0_379 = arith.constant 0 : index
    %866 = vector.load %arg7[%c75, %c0_379] : memref<84x32xf32, #tpu.memory_space<vmem>>, vector<1x32xf32>
    %867 = arith.mulf %865, %866 : vector<1x32xf32>
    %c76 = arith.constant 76 : index
    %c0_380 = arith.constant 0 : index
    %868 = vector.load %arg7[%c76, %c0_380] : memref<84x32xf32, #tpu.memory_space<vmem>>, vector<1x32xf32>
    %869 = arith.addf %867, %868 : vector<1x32xf32>
    %c5_381 = arith.constant 5 : index
    %c0_382 = arith.constant 0 : index
    %c0_383 = arith.constant 0 : index
    %870 = vector.load %arg4[%c5_381, %c0_382, %c0_383] : memref<6x32x128xf32, #tpu.memory_space<vmem>>, vector<1x32x128xf32>
    %871 = vector.shape_cast %870 : vector<1x32x128xf32> to vector<32x128xf32>
    %cst_384 = arith.constant dense<0.000000e+00> : vector<1x128xf32>
    %872 = tpu.matmul %869, %871, %cst_384 {dimension_numbers = #tpu.dot_dimension_numbers<[1], [0], [0], [1], [0, 0, 1, 1], [], []>} : vector<1x32xf32>, vector<32x128xf32>, vector<1x128xf32> -> vector<1x128xf32>
    %c5_385 = arith.constant 5 : index
    %c0_386 = arith.constant 0 : index
    %873 = vector.load %arg8[%c5_385, %c0_386] : memref<7x128xf32, #tpu.memory_space<vmem>>, vector<1x128xf32>
    %874 = arith.addf %872, %873 : vector<1x128xf32>
    %cst_387 = arith.constant 5.000000e-01 : f32
    %875 = vector.broadcast %cst_387 : f32 to vector<1x128xf32>
    %876 = arith.mulf %875, %874 : vector<1x128xf32>
    %cst_388 = arith.constant 4.471500e-02 : f32
    %877 = vector.broadcast %cst_388 : f32 to vector<1x128xf32>
    %878 = arith.mulf %877, %874 : vector<1x128xf32>
    %879 = arith.mulf %878, %874 : vector<1x128xf32>
    %880 = arith.mulf %879, %874 : vector<1x128xf32>
    %881 = arith.addf %874, %880 : vector<1x128xf32>
    %cst_389 = arith.constant 0.797884583 : f32
    %882 = vector.broadcast %cst_389 : f32 to vector<1x128xf32>
    %883 = arith.mulf %882, %881 : vector<1x128xf32>
    %884 = math.tanh %883 : vector<1x128xf32>
    %cst_390 = arith.constant 1.000000e+00 : f32
    %885 = vector.broadcast %cst_390 : f32 to vector<1x128xf32>
    %886 = arith.addf %885, %884 : vector<1x128xf32>
    %887 = arith.mulf %876, %886 : vector<1x128xf32>
    %c5_391 = arith.constant 5 : index
    %c0_392 = arith.constant 0 : index
    %c0_393 = arith.constant 0 : index
    %888 = vector.load %arg5[%c5_391, %c0_392, %c0_393] : memref<6x128x32xf32, #tpu.memory_space<vmem>>, vector<1x128x32xf32>
    %889 = vector.shape_cast %888 : vector<1x128x32xf32> to vector<128x32xf32>
    %cst_394 = arith.constant dense<0.000000e+00> : vector<1x32xf32>
    %890 = tpu.matmul %887, %889, %cst_394 {dimension_numbers = #tpu.dot_dimension_numbers<[1], [0], [0], [1], [0, 0, 1, 1], [], []>} : vector<1x128xf32>, vector<128x32xf32>, vector<1x32xf32> -> vector<1x32xf32>
    %c79 = arith.constant 79 : index
    %c0_395 = arith.constant 0 : index
    %891 = vector.load %arg7[%c79, %c0_395] : memref<84x32xf32, #tpu.memory_space<vmem>>, vector<1x32xf32>
    %892 = arith.addf %890, %891 : vector<1x32xf32>
    %c81 = arith.constant 81 : index
    %c0_396 = arith.constant 0 : index
    %893 = vector.load %arg7[%c81, %c0_396] : memref<84x32xf32, #tpu.memory_space<vmem>>, vector<1x32xf32>
    %894 = arith.mulf %893, %892 : vector<1x32xf32>
    %895 = arith.addf %869, %894 : vector<1x32xf32>
    %cst_397 = arith.constant dense<0.000000e+00> : vector<1xf32>
    %896 = vector.multi_reduction <add>, %895, %cst_397 [1] : vector<1x32xf32> to vector<1xf32>
    %897 = vector.shape_cast %896 : vector<1xf32> to vector<1x1xf32>
    %898 = arith.mulf %895, %895 : vector<1x32xf32>
    %cst_398 = arith.constant dense<0.000000e+00> : vector<1xf32>
    %899 = vector.multi_reduction <add>, %898, %cst_398 [1] : vector<1x32xf32> to vector<1xf32>
    %900 = vector.shape_cast %899 : vector<1xf32> to vector<1x1xf32>
    %cst_399 = arith.constant 3.125000e-02 : f32
    %901 = vector.broadcast %cst_399 : f32 to vector<1x1xf32>
    %902 = arith.mulf %897, %901 : vector<1x1xf32>
    %cst_400 = arith.constant 3.125000e-02 : f32
    %903 = vector.broadcast %cst_400 : f32 to vector<1x1xf32>
    %904 = arith.mulf %900, %903 : vector<1x1xf32>
    %905 = arith.mulf %902, %902 : vector<1x1xf32>
    %906 = arith.subf %904, %905 : vector<1x1xf32>
    %907 = vector.broadcast %902 : vector<1x1xf32> to vector<1x32xf32>
    %908 = arith.subf %895, %907 : vector<1x32xf32>
    %cst_401 = arith.constant 9.99999974E-6 : f32
    %909 = vector.broadcast %cst_401 : f32 to vector<1x1xf32>
    %910 = arith.addf %906, %909 : vector<1x1xf32>
    %911 = math.rsqrt %910 : vector<1x1xf32>
    %912 = vector.broadcast %911 : vector<1x1xf32> to vector<1x32xf32>
    %913 = arith.mulf %908, %912 : vector<1x32xf32>
    %c77 = arith.constant 77 : index
    %c0_402 = arith.constant 0 : index
    %914 = vector.load %arg7[%c77, %c0_402] : memref<84x32xf32, #tpu.memory_space<vmem>>, vector<1x32xf32>
    %915 = arith.mulf %913, %914 : vector<1x32xf32>
    %c78 = arith.constant 78 : index
    %c0_403 = arith.constant 0 : index
    %916 = vector.load %arg7[%c78, %c0_403] : memref<84x32xf32, #tpu.memory_space<vmem>>, vector<1x32xf32>
    %917 = arith.addf %915, %916 : vector<1x32xf32>
    %c0_404 = arith.constant 0 : index
    %c0_405 = arith.constant 0 : index
    %918 = vector.load %arg9[%c0_404, %c0_405] : memref<32x128xf32, #tpu.memory_space<vmem>>, vector<32x128xf32>
    %cst_406 = arith.constant dense<0.000000e+00> : vector<1x128xf32>
    %919 = tpu.matmul %917, %918, %cst_406 {dimension_numbers = #tpu.dot_dimension_numbers<[1], [0], [0], [1], [0, 0, 1, 1], [], []>} : vector<1x32xf32>, vector<32x128xf32>, vector<1x128xf32> -> vector<1x128xf32>
    %c6_407 = arith.constant 6 : index
    %c0_408 = arith.constant 0 : index
    %920 = vector.load %arg8[%c6_407, %c0_408] : memref<7x128xf32, #tpu.memory_space<vmem>>, vector<1x128xf32>
    %921 = arith.addf %919, %920 : vector<1x128xf32>
    %c0_409 = arith.constant 0 : index
    %c0_410 = arith.constant 0 : index
    %c0_411 = arith.constant 0 : index
    %922 = vector.load %arg10[%c0_409, %c0_410, %c0_411] : memref<1x1x128xf32, #tpu.memory_space<vmem>>, vector<1x1x128xf32>
    %923 = vector.shape_cast %922 : vector<1x1x128xf32> to vector<1x128xf32>
    %924 = vector.shape_cast %921 : vector<1x128xf32> to vector<1x1x128xf32>
    tpu.vector_store %arg10[%c0_409, %c0_410, %c0_411], %924 {strides = array<i32>} : memref<1x1x128xf32, #tpu.memory_space<vmem>>, vector<1x1x128xf32>,
    return
  }
  func.func @transform_0(%arg0: i32) -> (i32, i32, i32) {
    %c0_i32 = arith.constant 0 : i32
    %c0_i32_0 = arith.constant 0 : i32
    %c0_i32_1 = arith.constant 0 : i32
    return %arg0, %c0_i32, %c0_i32_0 : i32, i32, i32
  }
  func.func @transform_1(%arg0: i32) -> (i32, i32, i32) {
    %c0_i32 = arith.constant 0 : i32
    %c0_i32_0 = arith.constant 0 : i32
    %c0_i32_1 = arith.constant 0 : i32
    %c0_i32_2 = arith.constant 0 : i32
    return %c0_i32, %c0_i32_0, %c0_i32_1 : i32, i32, i32
  }
  func.func @transform_2(%arg0: i32) -> (i32, i32, i32) {
    %c0_i32 = arith.constant 0 : i32
    %c0_i32_0 = arith.constant 0 : i32
    %c0_i32_1 = arith.constant 0 : i32
    %c0_i32_2 = arith.constant 0 : i32
    return %c0_i32, %c0_i32_0, %c0_i32_1 : i32, i32, i32
  }
  func.func @transform_3(%arg0: i32) -> (i32, i32, i32) {
    %c0_i32 = arith.constant 0 : i32
    %c0_i32_0 = arith.constant 0 : i32
    %c0_i32_1 = arith.constant 0 : i32
    %c0_i32_2 = arith.constant 0 : i32
    return %c0_i32, %c0_i32_0, %c0_i32_1 : i32, i32, i32
  }
  func.func @transform_4(%arg0: i32) -> (i32, i32, i32) {
    %c0_i32 = arith.constant 0 : i32
    %c0_i32_0 = arith.constant 0 : i32
    %c0_i32_1 = arith.constant 0 : i32
    %c0_i32_2 = arith.constant 0 : i32
    return %c0_i32, %c0_i32_0, %c0_i32_1 : i32, i32, i32
  }
  func.func @transform_5(%arg0: i32) -> (i32, i32, i32) {
    %c0_i32 = arith.constant 0 : i32
    %c0_i32_0 = arith.constant 0 : i32
    %c0_i32_1 = arith.constant 0 : i32
    %c0_i32_2 = arith.constant 0 : i32
    return %c0_i32, %c0_i32_0, %c0_i32_1 : i32, i32, i32
  }
  func.func @transform_6(%arg0: i32) -> (i32, i32) {
    %c0_i32 = arith.constant 0 : i32
    %c0_i32_0 = arith.constant 0 : i32
    %c0_i32_1 = arith.constant 0 : i32
    return %c0_i32, %c0_i32_0 : i32, i32
  }
  func.func @transform_7(%arg0: i32) -> (i32, i32) {
    %c0_i32 = arith.constant 0 : i32
    %c0_i32_0 = arith.constant 0 : i32
    %c0_i32_1 = arith.constant 0 : i32
    return %c0_i32, %c0_i32_0 : i32, i32
  }
  func.func @transform_8(%arg0: i32) -> (i32, i32) {
    %c0_i32 = arith.constant 0 : i32
    %c0_i32_0 = arith.constant 0 : i32
    %c0_i32_1 = arith.constant 0 : i32
    return %c0_i32, %c0_i32_0 : i32, i32
  }
  func.func @transform_9(%arg0: i32) -> (i32, i32, i32) {
    %c0_i32 = arith.constant 0 : i32
    %c0_i32_0 = arith.constant 0 : i32
    %c0_i32_1 = arith.constant 0 : i32
    return %arg0, %c0_i32, %c0_i32_0 : i32, i32, i32
  }
}

</mosaic_0001>

<llo_original>
// kernel: model_forward.1
$region0: #{model_forward.1}
  #allocation0 [shape = 'u32[]', space=smem, size = 0x4, offset = 0x4, fixed_abs, tag = 'smem constant byte address 0x4 - core index']
  #allocation1 [shape = 'u32[72,128]{1,0:T(1,128)}', space=vmem, size = 0x9000, scoped, tag = 'internal scratch']
  %s0 = inlined_call_operand.vmem [shape: f32[2,7,64], index: 0, kind: input, shape index: {}]
  %s1 = inlined_call_operand.vmem [shape: f32[3,64,32], index: 1, kind: input, shape index: {}]
  %s2 = inlined_call_operand.vmem [shape: f32[33,32,32], index: 2, kind: input, shape index: {}]
  %s3 = inlined_call_operand.vmem [shape: f32[6,32,128], index: 3, kind: input, shape index: {}]
  %s4 = inlined_call_operand.vmem [shape: f32[6,128,32], index: 4, kind: input, shape index: {}]
  %s5 = inlined_call_operand.vmem [shape: f32[2,3,8], index: 5, kind: input, shape index: {}]
  %s6 = inlined_call_operand.vmem [shape: f32[84,32], index: 6, kind: input, shape index: {}]
  %s7 = inlined_call_operand.vmem [shape: f32[7,128], index: 7, kind: input, shape index: {}]
  %s8 = inlined_call_operand.vmem [shape: f32[32,128], index: 8, kind: input, shape index: {}]
  %s9 = inlined_call_operand.hbm [shape: f32[2,1,128], index: 9, kind: output, shape index: {}]
  %s10 = sld [smem:[#allocation0]]
  $region69: #{model_forward.1} parent=0
    _
  %s12 = ssub.s32 1, %s10
  %s13 = scalar_select 0, %s12, %s10
  $region1: #{model_forward.1} parent=0
    #allocation2 [shape = 'u8[1024]{0}', space=vmem, size = 0x400, scoped, tag = 'output window, operand 0']
    #allocation3 [shape = 's32[2]{0}', space=sflag, size = 0x8, scoped, tag = 'scoped memory for model_forward.1']
    %14 = vsyncpa [#allocation3], 0
    %s15 = scalar_lea.sflag [#allocation3], 1
    %16 = vsyncpa %s15, 0
    loop: start=0, step=1, limit=4
    $region2: #{model_forward.1} parent=1 // loop_pre_header
      _
    $region3: #{model_forward.1} parent=1 // loop_header
      %s18 = sphi 0, %s22
      %p19 = scmp.ge.s32.totalorder %s18, 4
      %s28 = sphi 0, %s30
      %s31 = sphi 0, %s28
      %s32 = sphi 0, %s31
      %s48 = sphi 0, %s32
      %s52 = sphi 0, %s52
      %s54 = sphi 0, %s52
      %s55 = sphi 0, %s54
      %s69 = sphi 0, %s55
      %s73 = sphi 0, %s73
      %s75 = sphi 0, %s73
      %s76 = sphi 0, %s75
      %s90 = sphi 0, %s76
      %s94 = sphi 0, %s94
      %s96 = sphi 0, %s94
      %s97 = sphi 0, %s96
      %s111 = sphi 0, %s97
      %s115 = sphi 0, %s115
      %s117 = sphi 0, %s115
      %s118 = sphi 0, %s117
      %s132 = sphi 0, %s118
      %s136 = sphi 0, %s136
      %s138 = sphi 0, %s136
      %s139 = sphi 0, %s138
      %s153 = sphi 0, %s139
      %s157 = sphi 0, %s157
      %s159 = sphi 0, %s157
      %s160 = sphi 0, %s159
      %s174 = sphi 0, %s160
      %s178 = sphi 0, %s178
      %s180 = sphi 0, %s178
      %s181 = sphi 0, %s180
      %s195 = sphi 0, %s181
      %s199 = sphi 0, %s199
      %s201 = sphi 0, %s199
      %s202 = sphi 0, %s201
      %s216 = sphi 0, %s202
      %s222 = sphi 0, %s224
      %s225 = sphi 0, %s222
      %s226 = sphi 0, %s225
      %s242 = sphi 0, %s226
    $region4: #{model_forward.1} parent=1 // loop_header_branch
      %21 = sbr.rel (%p19) target = $region8
    $region5: #{model_forward.1} parent=1 // loop_body
      %s23 = ssub.s32 %s18, 1
      %s24 = ssub.s32 %s18, 2
      %s25 = sadd.s32 %s18, 1
      %s26 = ssub.s32 %s18, %s25
      %p27 = scmp.eq.s32.totalorder %s26, 0
      %s29 = sadd.s32 %s28, 1
      %s30 = scalar_select %p27, %s28, %s29
      %p33 = pneg %p27
      %p34 = scmp.eq.s32.totalorder %s18, 1
      %p35 = por %p33, %p34
      %p36 = scmp.ne.s32.totalorder %s28, %s31
      %p37 = scmp.eq.s32.totalorder %s18, 0
      %p38 = por %p36, %p37
      %p39 = scmp.ne.s32.totalorder %s28, %s31
      %p40 = scmp.eq.s32.totalorder %s23, 1
      %p41 = por %p39, %p40
      %p42 = scmp.ne.s32.totalorder %s31, %s32
      %p43 = scmp.eq.s32.totalorder %s23, 0
      %p44 = por %p42, %p43
      %p45 = scmp.ne.s32.totalorder %s31, %s32
      %p46 = scmp.eq.s32.totalorder %s24, 1
      %p47 = por %p45, %p46
      %p49 = scmp.ne.s32.totalorder %s32, %s48
      %p50 = scmp.eq.s32.totalorder %s24, 0
      %p51 = por %p49, %p50
      %s53 = sadd.s32 %s52, 1
      %p56 = scmp.eq.s32.totalorder %s18, 1
      %p57 = scmp.ne.s32.totalorder %s52, %s54
      %p58 = scmp.eq.s32.totalorder %s18, 0
      %p59 = por %p57, %p58
      %p60 = scmp.ne.s32.totalorder %s52, %s54
      %p61 = scmp.eq.s32.totalorder %s23, 1
      %p62 = por %p60, %p61
      %p63 = scmp.ne.s32.totalorder %s54, %s55
      %p64 = scmp.eq.s32.totalorder %s23, 0
      %p65 = por %p63, %p64
      %p66 = scmp.ne.s32.totalorder %s54, %s55
      %p67 = scmp.eq.s32.totalorder %s24, 1
      %p68 = por %p66, %p67
      %p70 = scmp.ne.s32.totalorder %s55, %s69
      %p71 = scmp.eq.s32.totalorder %s24, 0
      %p72 = por %p70, %p71
      %s74 = sadd.s32 %s73, 1
      %p77 = scmp.eq.s32.totalorder %s18, 1
      %p78 = scmp.ne.s32.totalorder %s73, %s75
      %p79 = scmp.eq.s32.totalorder %s18, 0
      %p80 = por %p78, %p79
      %p81 = scmp.ne.s32.totalorder %s73, %s75
      %p82 = scmp.eq.s32.totalorder %s23, 1
      %p83 = por %p81, %p82
      %p84 = scmp.ne.s32.totalorder %s75, %s76
      %p85 = scmp.eq.s32.totalorder %s23, 0
      %p86 = por %p84, %p85
      %p87 = scmp.ne.s32.totalorder %s75, %s76
      %p88 = scmp.eq.s32.totalorder %s24, 1
      %p89 = por %p87, %p88
      %p91 = scmp.ne.s32.totalorder %s76, %s90
      %p92 = scmp.eq.s32.totalorder %s24, 0
      %p93 = por %p91, %p92
      %s95 = sadd.s32 %s94, 1
      %p98 = scmp.eq.s32.totalorder %s18, 1
      %p99 = scmp.ne.s32.totalorder %s94, %s96
      %p100 = scmp.eq.s32.totalorder %s18, 0
      %p101 = por %p99, %p100
      %p102 = scmp.ne.s32.totalorder %s94, %s96
      %p103 = scmp.eq.s32.totalorder %s23, 1
      %p104 = por %p102, %p103
      %p105 = scmp.ne.s32.totalorder %s96, %s97
      %p106 = scmp.eq.s32.totalorder %s23, 0
      %p107 = por %p105, %p106
      %p108 = scmp.ne.s32.totalorder %s96, %s97
      %p109 = scmp.eq.s32.totalorder %s24, 1
      %p110 = por %p108, %p109
      %p112 = scmp.ne.s32.totalorder %s97, %s111
      %p113 = scmp.eq.s32.totalorder %s24, 0
      %p114 = por %p112, %p113
      %s116 = sadd.s32 %s115, 1
      %p119 = scmp.eq.s32.totalorder %s18, 1
      %p120 = scmp.ne.s32.totalorder %s115, %s117
      %p121 = scmp.eq.s32.totalorder %s18, 0
      %p122 = por %p120, %p121
      %p123 = scmp.ne.s32.totalorder %s115, %s117
      %p124 = scmp.eq.s32.totalorder %s23, 1
      %p125 = por %p123, %p124
      %p126 = scmp.ne.s32.totalorder %s117, %s118
      %p127 = scmp.eq.s32.totalorder %s23, 0
      %p128 = por %p126, %p127
      %p129 = scmp.ne.s32.totalorder %s117, %s118
      %p130 = scmp.eq.s32.totalorder %s24, 1
      %p131 = por %p129, %p130
      %p133 = scmp.ne.s32.totalorder %s118, %s132
      %p134 = scmp.eq.s32.totalorder %s24, 0
      %p135 = por %p133, %p134
      %s137 = sadd.s32 %s136, 1
      %p140 = scmp.eq.s32.totalorder %s18, 1
      %p141 = scmp.ne.s32.totalorder %s136, %s138
      %p142 = scmp.eq.s32.totalorder %s18, 0
      %p143 = por %p141, %p142
      %p144 = scmp.ne.s32.totalorder %s136, %s138
      %p145 = scmp.eq.s32.totalorder %s23, 1
      %p146 = por %p144, %p145
      %p147 = scmp.ne.s32.totalorder %s138, %s139
      %p148 = scmp.eq.s32.totalorder %s23, 0
      %p149 = por %p147, %p148
      %p150 = scmp.ne.s32.totalorder %s138, %s139
      %p151 = scmp.eq.s32.totalorder %s24, 1
      %p152 = por %p150, %p151
      %p154 = scmp.ne.s32.totalorder %s139, %s153
      %p155 = scmp.eq.s32.totalorder %s24, 0
      %p156 = por %p154, %p155
      %s158 = sadd.s32 %s157, 1
      %p161 = scmp.eq.s32.totalorder %s18, 1
      %p162 = scmp.ne.s32.totalorder %s157, %s159
      %p163 = scmp.eq.s32.totalorder %s18, 0
      %p164 = por %p162, %p163
      %p165 = scmp.ne.s32.totalorder %s157, %s159
      %p166 = scmp.eq.s32.totalorder %s23, 1
      %p167 = por %p165, %p166
      %p168 = scmp.ne.s32.totalorder %s159, %s160
      %p169 = scmp.eq.s32.totalorder %s23, 0
      %p170 = por %p168, %p169
      %p171 = scmp.ne.s32.totalorder %s159, %s160
      %p172 = scmp.eq.s32.totalorder %s24, 1
      %p173 = por %p171, %p172
      %p175 = scmp.ne.s32.totalorder %s160, %s174
      %p176 = scmp.eq.s32.totalorder %s24, 0
      %p177 = por %p175, %p176
      %s179 = sadd.s32 %s178, 1
      %p182 = scmp.eq.s32.totalorder %s18, 1
      %p183 = scmp.ne.s32.totalorder %s178, %s180
      %p184 = scmp.eq.s32.totalorder %s18, 0
      %p185 = por %p183, %p184
      %p186 = scmp.ne.s32.totalorder %s178, %s180
      %p187 = scmp.eq.s32.totalorder %s23, 1
      %p188 = por %p186, %p187
      %p189 = scmp.ne.s32.totalorder %s180, %s181
      %p190 = scmp.eq.s32.totalorder %s23, 0
      %p191 = por %p189, %p190
      %p192 = scmp.ne.s32.totalorder %s180, %s181
      %p193 = scmp.eq.s32.totalorder %s24, 1
      %p194 = por %p192, %p193
      %p196 = scmp.ne.s32.totalorder %s181, %s195
      %p197 = scmp.eq.s32.totalorder %s24, 0
      %p198 = por %p196, %p197
      %s200 = sadd.s32 %s199, 1
      %p203 = scmp.eq.s32.totalorder %s18, 1
      %p204 = scmp.ne.s32.totalorder %s199, %s201
      %p205 = scmp.eq.s32.totalorder %s18, 0
      %p206 = por %p204, %p205
      %p207 = scmp.ne.s32.totalorder %s199, %s201
      %p208 = scmp.eq.s32.totalorder %s23, 1
      %p209 = por %p207, %p208
      %p210 = scmp.ne.s32.totalorder %s201, %s202
      %p211 = scmp.eq.s32.totalorder %s23, 0
      %p212 = por %p210, %p211
      %p213 = scmp.ne.s32.totalorder %s201, %s202
      %p214 = scmp.eq.s32.totalorder %s24, 1
      %p215 = por %p213, %p214
      %p217 = scmp.ne.s32.totalorder %s202, %s216
      %p218 = scmp.eq.s32.totalorder %s24, 0
      %p219 = por %p217, %p218
      %s220 = ssub.s32 %s18, %s25
      %p221 = scmp.eq.s32.totalorder %s220, 0
      %s223 = sadd.s32 %s222, 1
      %s224 = scalar_select %p221, %s222, %s223
      %p227 = pneg %p221
      %p228 = scmp.eq.s32.totalorder %s18, 1
      %p229 = por %p227, %p228
      %p230 = scmp.ne.s32.totalorder %s222, %s225
      %p231 = scmp.eq.s32.totalorder %s18, 0
      %p232 = por %p230, %p231
      %p233 = scmp.ne.s32.totalorder %s222, %s225
      %p234 = scmp.eq.s32.totalorder %s23, 1
      %p235 = por %p233, %p234
      %p236 = scmp.ne.s32.totalorder %s225, %s226
      %p237 = scmp.eq.s32.totalorder %s23, 0
      %p238 = por %p236, %p237
      %p239 = scmp.ne.s32.totalorder %s225, %s226
      %p240 = scmp.eq.s32.totalorder %s24, 1
      %p241 = por %p239, %p240
      %p243 = scmp.ne.s32.totalorder %s226, %s242
      %p244 = scmp.eq.s32.totalorder %s24, 0
      %p245 = por %p243, %p244
      %p246 = scmp.le.s32.totalorder 1, %s18
      %p247 = scmp.lt.s32.totalorder %s18, 3
      %p248 = pnand %p246, %p247
      %p249 = pneg %p248
      // Predicated region
      $region9: #{model_forward.1} parent=5 // pred_check
        _
      $region10: #{model_forward.1} parent=5 // pred_check_branch
        %251 = sbr.rel (%p248) target = $region12
      $region11: #{model_forward.1} parent=5 // pred_region
        %s252 = ssub.s32 %s18, 1
        // Predicated region
        $region13: #{model_forward.1} parent=11 // pred_check
          %p253 = pneg %p65
        $region14: #{model_forward.1} parent=11 // pred_check_branch
          %255 = sbr.rel (%p253) target = $region16
        $region15: #{model_forward.1} parent=11 // pred_region
          _
        $region16: #{model_forward.1} parent=11 // pred_fallthru
          _
        // Predicated region
        $region17: #{model_forward.1} parent=11 // pred_check
          %p256 = pneg %p86
        $region18: #{model_forward.1} parent=11 // pred_check_branch
          %258 = sbr.rel (%p256) target = $region20
        $region19: #{model_forward.1} parent=11 // pred_region
          _
        $region20: #{model_forward.1} parent=11 // pred_fallthru
          _
        // Predicated region
        $region21: #{model_forward.1} parent=11 // pred_check
          %p259 = pneg %p107
        $region22: #{model_forward.1} parent=11 // pred_check_branch
          %261 = sbr.rel (%p259) target = $region24
        $region23: #{model_forward.1} parent=11 // pred_region
          _
        $region24: #{model_forward.1} parent=11 // pred_fallthru
          _
        // Predicated region
        $region25: #{model_forward.1} parent=11 // pred_check
          %p262 = pneg %p128
        $region26: #{model_forward.1} parent=11 // pred_check_branch
          %264 = sbr.rel (%p262) target = $region28
        $region27: #{model_forward.1} parent=11 // pred_region
          _
        $region28: #{model_forward.1} parent=11 // pred_fallthru
          _
        // Predicated region
        $region29: #{model_forward.1} parent=11 // pred_check
          %p265 = pneg %p149
        $region30: #{model_forward.1} parent=11 // pred_check_branch
          %267 = sbr.rel (%p265) target = $region32
        $region31: #{model_forward.1} parent=11 // pred_region
          _
        $region32: #{model_forward.1} parent=11 // pred_fallthru
          _
        // Predicated region
        $region33: #{model_forward.1} parent=11 // pred_check
          %p268 = pneg %p170
        $region34: #{model_forward.1} parent=11 // pred_check_branch
          %270 = sbr.rel (%p268) target = $region36
        $region35: #{model_forward.1} parent=11 // pred_region
          _
        $region36: #{model_forward.1} parent=11 // pred_fallthru
          _
        // Predicated region
        $region37: #{model_forward.1} parent=11 // pred_check
          %p271 = pneg %p191
        $region38: #{model_forward.1} parent=11 // pred_check_branch
          %273 = sbr.rel (%p271) target = $region40
        $region39: #{model_forward.1} parent=11 // pred_region
          _
        $region40: #{model_forward.1} parent=11 // pred_fallthru
          _
        // Predicated region
        $region41: #{model_forward.1} parent=11 // pred_check
          %p274 = pneg %p212
        $region42: #{model_forward.1} parent=11 // pred_check_branch
          %276 = sbr.rel (%p274) target = $region44
        $region43: #{model_forward.1} parent=11 // pred_region
          _
        $region44: #{model_forward.1} parent=11 // pred_fallthru
          _
      $region12: #{model_forward.1} parent=5 // pred_fallthru
        _
      %p277 = scmp.lt.s32.totalorder %s18, 2
      // Predicated region
      $region45: #{model_forward.1} parent=5 // pred_check
        %p278 = pneg %p277
      $region46: #{model_forward.1} parent=5 // pred_check_branch
        %280 = sbr.rel (%p278) target = $region48
      $region47: #{model_forward.1} parent=5 // pred_region
        // Predicated region
        $region49: #{model_forward.1} parent=47 // pred_check
          %p281 = pneg %p38
        $region50: #{model_forward.1} parent=47 // pred_check_branch
          %283 = sbr.rel (%p281) target = $region52
        $region51: #{model_forward.1} parent=47 // pred_region
          %p284 = scmp.lt.s32.totalorder %s18, 1
          %s285 = scalar_select %p284, %s18, 1
          %s286 = smul.addr %s285, 8
          %s287 = scalar_lea.vmem %s0, %s286
        $region52: #{model_forward.1} parent=47 // pred_fallthru
          _
      $region48: #{model_forward.1} parent=5 // pred_fallthru
        _
      %p288 = scmp.le.s32.totalorder 1, %s18
      %p289 = scmp.lt.s32.totalorder %s18, 3
      %p290 = pnand %p288, %p289
      %p291 = pneg %p290
      // Predicated region
      $region53: #{model_forward.1} parent=5 // pred_check
        _
      $region54: #{model_forward.1} parent=5 // pred_check_branch
        %293 = sbr.rel (%p290) target = $region56
      $region55: #{model_forward.1} parent=5 // pred_region
        %s294 = ssub.s32 %s18, 1
        %p295 = scmp.lt.s32.totalorder %s23, 1
        %s296 = scalar_select %p295, %s23, 1
        %s297 = smul.addr %s296, 8
        %s298 = scalar_lea.vmem %s0, %s297
        %p299 = pneg %p44
        %p300 = pneg %p41
        %p301 = pneg %p65
        %p302 = pneg %p62
        %p303 = pneg %p86
        %p304 = pneg %p83
        %p305 = pneg %p107
        %p306 = pneg %p104
        %p307 = pneg %p128
        %p308 = pneg %p125
        %p309 = pneg %p149
        %p310 = pneg %p146
        %p311 = pneg %p170
        %p312 = pneg %p167
        %p313 = pneg %p191
        %p314 = pneg %p188
        %p315 = pneg %p212
        %p316 = pneg %p209
        %p317 = pneg %p238
        %p318 = pneg %p235
        %s319 = sand.u32 %s225, 1
        %s320 = scalar_lea.sflag [#allocation3], %s319
        %s321 = sand.u32 %s225, 1
        %s322 = scalar_lea.vmem [#allocation2], %s321
        %p323 = scmp.lt.s32.totalorder %s23, 1
        %s324 = scalar_select %p323, %s23, 1
        %s325 = smul.addr %s324, 8
        %s326 = scalar_lea.vmem %s0, %s325
        %v327 = vlaneseq
        %v328 = vshrl.u32 %v327, 7
        %v329 = vadd.s32 %v328, 8
        %v330 = vadd.s32 %v328, 16
        %v331 = vadd.s32 %v328, 24
        %v332 = vlaneseq
        %v333 = vand.u32 %v332, 127
        %v334 = vshrl.u32 %v328, 3
        %v335 = vshrl.u32 %v329, 3
        %v336 = vshrl.u32 %v330, 3
        %v337 = vshrl.u32 %v331, 3
        %v338 = vshrl.u32 %v333, 3
        %vm339 = vcmp.eq.s32.totalorder %v334, %v338
        %vm340 = vcmp.eq.s32.totalorder %v335, %v338
        %vm341 = vcmp.eq.s32.totalorder %v336, %v338
        %vm342 = vcmp.eq.s32.totalorder %v337, %v338
        %v343 = vsel %vm339, 1, 0
        %v344 = vsel %vm340, 1, 0
        %v345 = vsel %vm341, 1, 0
        %v346 = vsel %vm342, 1, 0
        %v347 = vcvt.s32.f32 %v343
        %v348 = vcvt.s32.f32 %v344
        %v349 = vcvt.s32.f32 %v345
        %v350 = vcvt.s32.f32 %v346
        %v351 = vld [vmem:[%s326] sm:$0x7f]
        %v352 = vld [vmem:[%s1] sm:$0xff]
        %v353 = vld [vmem:[%s1 + $0x8] sm:$0xff]
        %v354 = vld [vmem:[%s1 + $0x10] sm:$0xff]
        %v355 = vld [vmem:[%s1 + $0x18] sm:$0xff]
        %v356 = vld [vmem:[%s1 + $0x20] sm:$0xff]
        %v357 = vld [vmem:[%s1 + $0x28] sm:$0xff]
        %v358 = vld [vmem:[%s1 + $0x30] sm:$0xff]
        %v359 = vld [vmem:[%s1 + $0x38] sm:$0xff]
        %v360 = vld [vmem:[%s6] sm:$0x1]
        %v361 = vperm.slane %v360, 0
        %vm362 = vcmask 523264
        %v364 = vsel %vm362, %v351, 0
        %366 = vmatpush.msra.mxu0 0.0
        %367 = vmatpush.msra.mxu0 0.0
        %368 = vmatpush.msra.mxu0 0.0
        %369 = vmatpush.msra.mxu0 0.0
        %370 = vmatpush.msra.mxu0 0.0
        %371 = vmatpush.msra.mxu0 0.0
        %372 = vmatpush.msra.mxu0 0.0
        %373 = vmatpush.msra.mxu0 0.0
        %374 = vmatpush.msra.mxu0 %v359
        %375 = vmatpush.msra.mxu0 %v358
        %376 = vmatpush.msra.mxu0 %v357
        %377 = vmatpush.msra.mxu0 %v356
        %378 = vmatpush.msra.mxu0 %v355
        %379 = vmatpush.msra.mxu0 %v354
        %380 = vmatpush.msra.mxu0 %v353
        %381 = vmatpush.msra.mxu0 %v352
        %382 = vmatmul.f32.gmra.mxu0 %v364
        %v383 = vpop.f32.mrf.mxu0
        %v384 = vadd.f32 %v361, %v383
        %385 = vdwg.mxu0
        %vm386 = vcmask 260096
        %v387 = vsel %vm386, %v384, 0.0
        %388 = vadd.xlane.f32.xlu0 %v387
        %v389 = vpop.xlane.xlu0 %388
        %v390 = vmul.f32 %v384, %v384
        %v391 = vsel %vm386, %v390, 0.0
        %392 = vadd.xlane.f32.xlu0 %v391
        %v393 = vpop.xlane.xlu0 %392
        %v394 = vmul.f32 %v389, 0.03125
        %v395 = vmul.f32 %v393, 0.03125
        %v396 = vmul.f32 %v394, %v394
        %v397 = vsub.f32 %v395, %v396
        %v398 = vsub.f32 %v384, %v394
        %v399 = vadd.f32 %v397, 1e-05
        %v400 = vrsqrt.pop %v399
        %v401 = vmul.f32 %v400, %v399
        %v402 = vmul.f32 %v401, %v400
        %v403 = vmul.f32 0.5, %v402
        %v404 = vsub.f32 1.5, %v403
        %v405 = vmul.f32 %v400, %v404
        %vm406 = vweird.f32 %v399
        %vm407 = vweird.f32 %v400
        %vm408 = vmor %vm406, %vm407
        %v409 = vsel %vm408, %v400, %v405
        %v410 = vmul.f32 %v398, %v409
        %v411 = vld [vmem:[%s6 + $0x1] sm:$0x1]
        %v412 = vperm.slane %v411, 0
        %v413 = vmul.f32 %v410, %v412
        %v414 = vld [vmem:[%s6 + $0x2] sm:$0x1]
        %v415 = vperm.slane %v414, 0
        %v416 = vadd.f32 %v413, %v415
        %s417 = scalar_lea.vmem %s2, 64
        %v418 = vld [vmem:[%s417] sm:$0xff]
        %v419 = vld [vmem:[%s417 + $0x8] sm:$0xff]
        %v420 = vld [vmem:[%s417 + $0x10] sm:$0xff]
        %v421 = vld [vmem:[%s417 + $0x18] sm:$0xff]
        %v423 = vrot.slane %v416, 6
        %vm425 = vcmask 1041408
        %v426 = vsel %vm425, 0.0, %v423
        %v427 = vld [vmem:[%s2] sm:$0xff]
        %v428 = vld [vmem:[%s2 + $0x8] sm:$0xff]
        %v429 = vld [vmem:[%s2 + $0x10] sm:$0xff]
        %v430 = vld [vmem:[%s2 + $0x18] sm:$0xff]
        %vm431 = vcmask 261120
        %v433 = vsel %vm431, %v426, 0
        %435 = vmatpush.msra.mxu0 0.0
        %436 = vmatpush.msra.mxu0 0.0
        %437 = vmatpush.msra.mxu0 0.0
        %438 = vmatpush.msra.mxu0 0.0
        %439 = vmatpush.msra.mxu0 0.0
        %440 = vmatpush.msra.mxu0 0.0
        %441 = vmatpush.msra.mxu0 0.0
        %442 = vmatpush.msra.mxu0 0.0
        %443 = vmatpush.msra.mxu0 0.0
        %444 = vmatpush.msra.mxu0 0.0
        %445 = vmatpush.msra.mxu0 0.0
        %446 = vmatpush.msra.mxu0 0.0
        %447 = vmatpush.msra.mxu0 %v430
        %448 = vmatpush.msra.mxu0 %v429
        %449 = vmatpush.msra.mxu0 %v428
        %450 = vmatpush.msra.mxu0 %v427
        %451 = vmatmul.f32.gmra.mxu0 %v433
        %v452 = vpop.f32.mrf.mxu0
        %v453 = vadd.f32 0.0, %v452
        %454 = vdwg.mxu0
        %v455 = vsel %vm431, %v416, 0
        %457 = vmatpush.msra.mxu0 0.0
        %458 = vmatpush.msra.mxu0 0.0
        %459 = vmatpush.msra.mxu0 0.0
        %460 = vmatpush.msra.mxu0 0.0
        %461 = vmatpush.msra.mxu0 0.0
        %462 = vmatpush.msra.mxu0 0.0
        %463 = vmatpush.msra.mxu0 0.0
        %464 = vmatpush.msra.mxu0 0.0
        %465 = vmatpush.msra.mxu0 0.0
        %466 = vmatpush.msra.mxu0 0.0
        %467 = vmatpush.msra.mxu0 0.0
        %468 = vmatpush.msra.mxu0 0.0
        %469 = vmatpush.msra.mxu0 %v421
        %470 = vmatpush.msra.mxu0 %v420
        %471 = vmatpush.msra.mxu0 %v419
        %472 = vmatpush.msra.mxu0 %v418
        %473 = vmatmul.f32.gmra.mxu0 %v455
        %v474 = vpop.f32.mrf.mxu0
        %v475 = vadd.f32 %v453, %v474
        %476 = vdwg.mxu0
        %v477 = vrot.slane %v416, 7
        %vm479 = vcmask 1040384
        %v480 = vsel %vm479, 0.0, %v477
        %s481 = scalar_lea.vmem %s2, 32
        %v482 = vld [vmem:[%s481] sm:$0xff]
        %v483 = vld [vmem:[%s481 + $0x8] sm:$0xff]
        %v484 = vld [vmem:[%s481 + $0x10] sm:$0xff]
        %v485 = vld [vmem:[%s481 + $0x18] sm:$0xff]
        %v487 = vsel %vm431, %v480, 0
        %489 = vmatpush.msra.mxu0 0.0
        %490 = vmatpush.msra.mxu0 0.0
        %491 = vmatpush.msra.mxu0 0.0
        %492 = vmatpush.msra.mxu0 0.0
        %493 = vmatpush.msra.mxu0 0.0
        %494 = vmatpush.msra.mxu0 0.0
        %495 = vmatpush.msra.mxu0 0.0
        %496 = vmatpush.msra.mxu0 0.0
        %497 = vmatpush.msra.mxu0 0.0
        %498 = vmatpush.msra.mxu0 0.0
        %499 = vmatpush.msra.mxu0 0.0
        %500 = vmatpush.msra.mxu0 0.0
        %501 = vmatpush.msra.mxu0 %v485
        %502 = vmatpush.msra.mxu0 %v484
        %503 = vmatpush.msra.mxu0 %v483
        %504 = vmatpush.msra.mxu0 %v482
        %505 = vmatmul.f32.gmra.mxu0 %v487
        %v506 = vpop.f32.mrf.mxu0
        %v507 = vadd.f32 0.0, %v506
        %508 = vdwg.mxu0
        %v509 = vadd.f32 %v475, %v507
        %v510 = vrot.slane %v416, 1
        %vm512 = vcmask 1045504
        %v513 = vsel %vm512, %v510, 0.0
        %s514 = scalar_lea.vmem %s2, 96
        %v515 = vld [vmem:[%s514] sm:$0xff]
        %v516 = vld [vmem:[%s514 + $0x8] sm:$0xff]
        %v517 = vld [vmem:[%s514 + $0x10] sm:$0xff]
        %v518 = vld [vmem:[%s514 + $0x18] sm:$0xff]
        %v520 = vsel %vm431, %v513, 0
        %522 = vmatpush.msra.mxu0 0.0
        %523 = vmatpush.msra.mxu0 0.0
        %524 = vmatpush.msra.mxu0 0.0
        %525 = vmatpush.msra.mxu0 0.0
        %526 = vmatpush.msra.mxu0 0.0
        %527 = vmatpush.msra.mxu0 0.0
        %528 = vmatpush.msra.mxu0 0.0
        %529 = vmatpush.msra.mxu0 0.0
        %530 = vmatpush.msra.mxu0 0.0
        %531 = vmatpush.msra.mxu0 0.0
        %532 = vmatpush.msra.mxu0 0.0
        %533 = vmatpush.msra.mxu0 0.0
        %534 = vmatpush.msra.mxu0 %v518
        %535 = vmatpush.msra.mxu0 %v517
        %536 = vmatpush.msra.mxu0 %v516
        %537 = vmatpush.msra.mxu0 %v515
        %538 = vmatmul.f32.gmra.mxu0 %v520
        %v539 = vpop.f32.mrf.mxu0
        %v540 = vadd.f32 0.0, %v539
        %541 = vdwg.mxu0
        %v542 = vadd.f32 %v509, %v540
        %v543 = vrot.slane %v416, 2
        %vm545 = vcmask 1044480
        %v546 = vsel %vm545, %v543, 0.0
        %s547 = scalar_lea.vmem %s2, 128
        %v548 = vld [vmem:[%s547] sm:$0xff]
        %v549 = vld [vmem:[%s547 + $0x8] sm:$0xff]
        %v550 = vld [vmem:[%s547 + $0x10] sm:$0xff]
        %v551 = vld [vmem:[%s547 + $0x18] sm:$0xff]
        %v553 = vsel %vm431, %v546, 0
        %555 = vmatpush.msra.mxu0 0.0
        %556 = vmatpush.msra.mxu0 0.0
        %557 = vmatpush.msra.mxu0 0.0
        %558 = vmatpush.msra.mxu0 0.0
        %559 = vmatpush.msra.mxu0 0.0
        %560 = vmatpush.msra.mxu0 0.0
        %561 = vmatpush.msra.mxu0 0.0
        %562 = vmatpush.msra.mxu0 0.0
        %563 = vmatpush.msra.mxu0 0.0
        %564 = vmatpush.msra.mxu0 0.0
        %565 = vmatpush.msra.mxu0 0.0
        %566 = vmatpush.msra.mxu0 0.0
        %567 = vmatpush.msra.mxu0 %v551
        %568 = vmatpush.msra.mxu0 %v550
        %569 = vmatpush.msra.mxu0 %v549
        %570 = vmatpush.msra.mxu0 %v548
        %571 = vmatmul.f32.gmra.mxu0 %v553
        %v572 = vpop.f32.mrf.mxu0
        %v573 = vadd.f32 0.0, %v572
        %574 = vdwg.mxu0
        %v575 = vadd.f32 %v542, %v573
        %v576 = vld [vmem:[%s6 + $0x3] sm:$0x1]
        %v577 = vperm.slane %v576, 0
        %v578 = vadd.f32 %v575, %v577
        %v579 = vadd.f32 %v416, %v578
        %v580 = vld [vmem:[%s5] sm:$0x7]
        %582 = vset.pattern.permute.xlu0 7
        %583 = vperm.xlu0 %582, %v580
        %v584 = vpop.permute.xlu0 %583
        %vm586 = vcmask 56320
        %v587 = vsel %vm586, %v580, 0
        %vm589 = vcmask 1046528
        %v591 = vsel %vm589, %v579, 0
        %593 = vmatpush.msra.mxu0 0.0
        %594 = vmatpush.msra.mxu0 0.0
        %595 = vmatpush.msra.mxu0 0.0
        %596 = vmatpush.msra.mxu0 0.0
        %597 = vmatpush.msra.mxu0 0.0
        %598 = vmatpush.msra.mxu0 0.0
        %599 = vmatpush.msra.mxu0 0.0
        %600 = vmatpush.msra.mxu0 0.0
        %601 = vmatpush.msra.mxu0 0.0
        %602 = vmatpush.msra.mxu0 0.0
        %603 = vmatpush.msra.mxu0 0.0
        %604 = vmatpush.msra.mxu0 0.0
        %605 = vmatpush.msra.mxu0 0.0
        %606 = vmatpush.msra.mxu0 0.0
        %607 = vmatpush.msra.mxu0 0.0
        %608 = vmatpush.msra.mxu0 %v591
        %609 = vmatmul.f32.gmra.mxu0 %v587
        %v610 = vpop.f32.mrf.mxu0
        %v611 = vadd.f32 %v584, %v610
        %612 = vdwg.mxu0
        %vm613 = vcmask 256000
        %v614 = vsel %vm613, %v611, 0.0
        %615 = vadd.xlane.f32.xlu0 %v614
        %v616 = vpop.xlane.xlu0 %615
        %v617 = vmul.f32 %v611, %v611
        %v618 = vsel %vm613, %v617, 0.0
        %619 = vadd.xlane.f32.xlu0 %v618
        %v620 = vpop.xlane.xlu0 %619
        %v621 = vmul.f32 %v616, 0.03125
        %v622 = vmul.f32 %v620, 0.03125
        %v623 = vmul.f32 %v621, %v621
        %v624 = vsub.f32 %v622, %v623
        %v625 = vsub.f32 %v611, %v621
        %v626 = vadd.f32 %v624, 1e-05
        %v627 = vrsqrt.pop %v626
        %v628 = vmul.f32 %v627, %v626
        %v629 = vmul.f32 %v628, %v627
        %v630 = vmul.f32 0.5, %v629
        %v631 = vsub.f32 1.5, %v630
        %v632 = vmul.f32 %v627, %v631
        %vm633 = vweird.f32 %v626
        %vm634 = vweird.f32 %v627
        %vm635 = vmor %vm633, %vm634
        %v636 = vsel %vm635, %v627, %v632
        %v637 = vmul.f32 %v625, %v636
        %v638 = vld [vmem:[%s6 + $0x16] sm:$0x1]
        %v639 = vperm.slane %v638, 0
        %v640 = vmul.f32 %v637, %v639
        %v641 = vld [vmem:[%s6 + $0x17] sm:$0x1]
        %v642 = vperm.slane %v641, 0
        %v643 = vadd.f32 %v640, %v642
        %s644 = scalar_lea.vmem %s2, 544
        %v645 = vld [vmem:[%s644] sm:$0xff]
        %v646 = vld [vmem:[%s644 + $0x8] sm:$0xff]
        %v647 = vld [vmem:[%s644 + $0x10] sm:$0xff]
        %v648 = vld [vmem:[%s644 + $0x18] sm:$0xff]
        %v649 = vld [vmem:[%s6 + $0xe] sm:$0x1]
        %v650 = vperm.slane %v649, 0
        %v652 = vsel %vm431, %v643, 0
        %654 = vmatpush.msra.mxu0 0.0
        %655 = vmatpush.msra.mxu0 0.0
        %656 = vmatpush.msra.mxu0 0.0
        %657 = vmatpush.msra.mxu0 0.0
        %658 = vmatpush.msra.mxu0 0.0
        %659 = vmatpush.msra.mxu0 0.0
        %660 = vmatpush.msra.mxu0 0.0
        %661 = vmatpush.msra.mxu0 0.0
        %662 = vmatpush.msra.mxu0 0.0
        %663 = vmatpush.msra.mxu0 0.0
        %664 = vmatpush.msra.mxu0 0.0
        %665 = vmatpush.msra.mxu0 0.0
        %666 = vmatpush.msra.mxu0 %v648
        %667 = vmatpush.msra.mxu0 %v647
        %668 = vmatpush.msra.mxu0 %v646
        %669 = vmatpush.msra.mxu0 %v645
        %670 = vmatmul.f32.gmra.mxu0 %v652
        %v671 = vpop.f32.mrf.mxu0
        %v672 = vadd.f32 %v650, %v671
        %673 = vdwg.mxu0
        %s674 = scalar_lea.vmem %s2, 480
        %v675 = vld [vmem:[%s674] sm:$0xff]
        %v676 = vld [vmem:[%s674 + $0x8] sm:$0xff]
        %v677 = vld [vmem:[%s674 + $0x10] sm:$0xff]
        %v678 = vld [vmem:[%s674 + $0x18] sm:$0xff]
        %v679 = vld [vmem:[%s6 + $0xc] sm:$0x1]
        %v680 = vperm.slane %v679, 0
        %v681 = vsel %vm431, %v579, 0
        %683 = vmatpush.msra.mxu0 0.0
        %684 = vmatpush.msra.mxu0 0.0
        %685 = vmatpush.msra.mxu0 0.0
        %686 = vmatpush.msra.mxu0 0.0
        %687 = vmatpush.msra.mxu0 0.0
        %688 = vmatpush.msra.mxu0 0.0
        %689 = vmatpush.msra.mxu0 0.0
        %690 = vmatpush.msra.mxu0 0.0
        %691 = vmatpush.msra.mxu0 0.0
        %692 = vmatpush.msra.mxu0 0.0
        %693 = vmatpush.msra.mxu0 0.0
        %694 = vmatpush.msra.mxu0 0.0
        %695 = vmatpush.msra.mxu0 %v678
        %696 = vmatpush.msra.mxu0 %v677
        %697 = vmatpush.msra.mxu0 %v676
        %698 = vmatpush.msra.mxu0 %v675
        %699 = vmatmul.f32.gmra.mxu0 %v681
        %v700 = vpop.f32.mrf.mxu0
        %v701 = vadd.f32 %v680, %v700
        %702 = vdwg.mxu0
        %s703 = scalar_lea.vmem %s2, 512
        %v704 = vld [vmem:[%s703] sm:$0xff]
        %v705 = vld [vmem:[%s703 + $0x8] sm:$0xff]
        %v706 = vld [vmem:[%s703 + $0x10] sm:$0xff]
        %v707 = vld [vmem:[%s703 + $0x18] sm:$0xff]
        %v708 = vld [vmem:[%s6 + $0xd] sm:$0x1]
        %v709 = vperm.slane %v708, 0
        %710 = vmatpush.msra.mxu0 0.0
        %711 = vmatpush.msra.mxu0 0.0
        %712 = vmatpush.msra.mxu0 0.0
        %713 = vmatpush.msra.mxu0 0.0
        %714 = vmatpush.msra.mxu0 0.0
        %715 = vmatpush.msra.mxu0 0.0
        %716 = vmatpush.msra.mxu0 0.0
        %717 = vmatpush.msra.mxu0 0.0
        %718 = vmatpush.msra.mxu0 0.0
        %719 = vmatpush.msra.mxu0 0.0
        %720 = vmatpush.msra.mxu0 0.0
        %721 = vmatpush.msra.mxu0 0.0
        %722 = vmatpush.msra.mxu0 %v707
        %723 = vmatpush.msra.mxu0 %v706
        %724 = vmatpush.msra.mxu0 %v705
        %725 = vmatpush.msra.mxu0 %v704
        %726 = vmatmul.f32.gmra.mxu0 %v652
        %v727 = vpop.f32.mrf.mxu0
        %v728 = vadd.f32 %v709, %v727
        %729 = vdwg.mxu0
        %v730 = vsel %vm589, %v701, 0.0
        %v731 = vmul.f32 %v730, %v347
        %v732 = vmul.f32 %v730, %v348
        %v733 = vmul.f32 %v730, %v349
        %v734 = vmul.f32 %v730, %v350
        %v736 = vsel %vm431, %v731, 0
        %v739 = vsel %vm431, %v732, 0
        %v742 = vsel %vm431, %v733, 0
        %v745 = vsel %vm431, %v734, 0
        %v748 = vsel %vm431, %v728, 0
        %750 = vmatpush.xpose.msra.mxu0 0.0
        %751 = vmatpush.xpose.msra.mxu0 0.0
        %752 = vmatpush.xpose.msra.mxu0 0.0
        %753 = vmatpush.xpose.msra.mxu0 0.0
        %754 = vmatpush.xpose.msra.mxu0 0.0
        %755 = vmatpush.xpose.msra.mxu0 0.0
        %756 = vmatpush.xpose.msra.mxu0 0.0
        %757 = vmatpush.xpose.msra.mxu0 0.0
        %758 = vmatpush.xpose.msra.mxu0 0.0
        %759 = vmatpush.xpose.msra.mxu0 0.0
        %760 = vmatpush.xpose.msra.mxu0 0.0
        %761 = vmatpush.xpose.msra.mxu0 0.0
        %762 = vmatpush.xpose.msra.mxu0 0.0
        %763 = vmatpush.xpose.msra.mxu0 0.0
        %764 = vmatpush.xpose.msra.mxu0 0.0
        %765 = vmatpush.xpose.msra.mxu0 %v748
        %766 = vmatmul.f32.gmra.mxu0 %v736
        %v767 = vpop.f32.mrf.mxu0
        %v768 = vadd.f32 0.0, %v767
        %769 = vmatmul.f32.gmra.mxu0 %v739
        %v770 = vpop.f32.mrf.mxu0
        %v771 = vadd.f32 0.0, %v770
        %772 = vmatmul.f32.gmra.mxu0 %v742
        %v773 = vpop.f32.mrf.mxu0
        %v774 = vadd.f32 0.0, %v773
        %775 = vmatmul.f32.gmra.mxu0 %v745
        %v776 = vpop.f32.mrf.mxu0
        %v777 = vadd.f32 0.0, %v776
        %778 = vdwg.mxu0
        %v779 = vmul.f32 %v768, 0.35355338
        %v780 = vmul.f32 %v771, 0.35355338
        %v781 = vmul.f32 %v774, 0.35355338
        %v782 = vmul.f32 %v777, 0.35355338
        %vm783 = vcmask 23552
        %v784 = vsel %vm783, %v779, -inf
        %785 = vmax.xlane.f32.xlu0 %v784
        %v786 = vpop.xlane.xlu0 %785
        %v787 = vsel %vm783, %v780, -inf
        %788 = vmax.xlane.f32.xlu0 %v787
        %v789 = vpop.xlane.xlu0 %788
        %v790 = vsel %vm783, %v781, -inf
        %791 = vmax.xlane.f32.xlu0 %v790
        %v792 = vpop.xlane.xlu0 %791
        %v793 = vsel %vm783, %v782, -inf
        %794 = vmax.xlane.f32.xlu0 %v793
        %v795 = vpop.xlane.xlu0 %794
        %v796 = vsub.f32 %v779, %v786
        %v797 = vsub.f32 %v780, %v789
        %v798 = vsub.f32 %v781, %v792
        %v799 = vsub.f32 %v782, %v795
        %v800 = vmul.f32 %v796, 1.442695
        %v801 = vpow.pop %v800
        %v802 = vmul.f32 %v797, 1.442695
        %v803 = vpow.pop %v802
        %v804 = vmul.f32 %v798, 1.442695
        %v805 = vpow.pop %v804
        %v806 = vmul.f32 %v799, 1.442695
        %v807 = vpow.pop %v806
        %v808 = vsel %vm783, %v801, 0.0
        %809 = vadd.xlane.f32.xlu0 %v808
        %v810 = vpop.xlane.xlu0 %809
        %v811 = vsel %vm783, %v803, 0.0
        %812 = vadd.xlane.f32.xlu0 %v811
        %v813 = vpop.xlane.xlu0 %812
        %v814 = vsel %vm783, %v805, 0.0
        %815 = vadd.xlane.f32.xlu0 %v814
        %v816 = vpop.xlane.xlu0 %815
        %v817 = vsel %vm783, %v807, 0.0
        %818 = vadd.xlane.f32.xlu0 %v817
        %v819 = vpop.xlane.xlu0 %818
        %v820 = vrcp.pop %v810
        %v821 = vrcp.pop %v813
        %v822 = vrcp.pop %v816
        %v823 = vrcp.pop %v819
        %v824 = vmul.f32 %v801, %v820
        %v825 = vmul.f32 %v803, %v821
        %v826 = vmul.f32 %v805, %v822
        %v827 = vmul.f32 %v807, %v823
        %v829 = vsel %vm783, %v824, 0
        %v832 = vsel %vm783, %v825, 0
        %v835 = vsel %vm783, %v826, 0
        %v838 = vsel %vm783, %v827, 0
        %vm840 = vcmask 1042432
        %v842 = vsel %vm840, %v672, 0
        %844 = vmatpush.msra.mxu0 0.0
        %845 = vmatpush.msra.mxu0 0.0
        %846 = vmatpush.msra.mxu0 0.0
        %847 = vmatpush.msra.mxu0 0.0
        %848 = vmatpush.msra.mxu0 0.0
        %849 = vmatpush.msra.mxu0 0.0
        %850 = vmatpush.msra.mxu0 0.0
        %851 = vmatpush.msra.mxu0 0.0
        %852 = vmatpush.msra.mxu0 0.0
        %853 = vmatpush.msra.mxu0 0.0
        %854 = vmatpush.msra.mxu0 0.0
        %855 = vmatpush.msra.mxu0 0.0
        %856 = vmatpush.msra.mxu0 0.0
        %857 = vmatpush.msra.mxu0 0.0
        %858 = vmatpush.msra.mxu0 0.0
        %859 = vmatpush.msra.mxu0 %v842
        %860 = vmatmul.f32.gmra.mxu0 %v829
        %v861 = vpop.f32.mrf.mxu0
        %v862 = vadd.f32 0.0, %v861
        %863 = vmatmul.f32.gmra.mxu0 %v832
        %v864 = vpop.f32.mrf.mxu0
        %v865 = vadd.f32 0.0, %v864
        %866 = vmatmul.f32.gmra.mxu0 %v835
        %v867 = vpop.f32.mrf.mxu0
        %v868 = vadd.f32 0.0, %v867
        %869 = vmatmul.f32.gmra.mxu0 %v838
        %v870 = vpop.f32.mrf.mxu0
        %v871 = vadd.f32 0.0, %v870
        %872 = vdwg.mxu0
        %v873 = vmul.f32 %v862, %v347
        %v874 = vmul.f32 %v865, %v348
        %v875 = vmul.f32 %v868, %v349
        %v876 = vmul.f32 %v871, %v350
        %v877 = vadd.f32 %v873, %v874
        %v878 = vadd.f32 %v877, %v875
        %v879 = vadd.f32 %v878, %v876
        %v880 = vld [vmem:[%s6 + $0x14] sm:$0x1]
        %v881 = vperm.slane %v880, 0
        %v882 = vmul.f32 %v881, %v879
        %v883 = vadd.f32 %v579, %v882
        %v884 = vsel %vm386, %v883, 0.0
        %885 = vadd.xlane.f32.xlu0 %v884
        %v886 = vpop.xlane.xlu0 %885
        %v887 = vmul.f32 %v883, %v883
        %v888 = vsel %vm386, %v887, 0.0
        %889 = vadd.xlane.f32.xlu0 %v888
        %v890 = vpop.xlane.xlu0 %889
        %v891 = vmul.f32 %v886, 0.03125
        %v892 = vmul.f32 %v890, 0.03125
        %v893 = vmul.f32 %v891, %v891
        %v894 = vsub.f32 %v892, %v893
        %v895 = vsub.f32 %v883, %v891
        %v896 = vadd.f32 %v894, 1e-05
        %v897 = vrsqrt.pop %v896
        %v898 = vmul.f32 %v897, %v896
        %v899 = vmul.f32 %v898, %v897
        %v900 = vmul.f32 0.5, %v899
        %v901 = vsub.f32 1.5, %v900
        %v902 = vmul.f32 %v897, %v901
        %vm903 = vweird.f32 %v896
        %vm904 = vweird.f32 %v897
        %vm905 = vmor %vm903, %vm904
        %v906 = vsel %vm905, %v897, %v902
        %v907 = vmul.f32 %v895, %v906
        %v908 = vld [vmem:[%s6 + $0xf] sm:$0x1]
        %v909 = vperm.slane %v908, 0
        %v910 = vmul.f32 %v907, %v909
        %v911 = vld [vmem:[%s6 + $0x10] sm:$0x1]
        %v912 = vperm.slane %v911, 0
        %v913 = vadd.f32 %v910, %v912
        %v914 = vld [vmem:[%s3] sm:$0xff]
        %v915 = vld [vmem:[%s3 + $0x8] sm:$0xff]
        %v916 = vld [vmem:[%s3 + $0x10] sm:$0xff]
        %v917 = vld [vmem:[%s3 + $0x18] sm:$0xff]
        %v918 = vld [vmem:[%s7] sm:$0x1]
        %v919 = vperm.slane %v918, 0
        %v921 = vsel %vm431, %v913, 0
        %923 = vmatpush.msra.mxu0 0.0
        %924 = vmatpush.msra.mxu0 0.0
        %925 = vmatpush.msra.mxu0 0.0
        %926 = vmatpush.msra.mxu0 0.0
        %927 = vmatpush.msra.mxu0 0.0
        %928 = vmatpush.msra.mxu0 0.0
        %929 = vmatpush.msra.mxu0 0.0
        %930 = vmatpush.msra.mxu0 0.0
        %931 = vmatpush.msra.mxu0 0.0
        %932 = vmatpush.msra.mxu0 0.0
        %933 = vmatpush.msra.mxu0 0.0
        %934 = vmatpush.msra.mxu0 0.0
        %935 = vmatpush.msra.mxu0 %v917
        %936 = vmatpush.msra.mxu0 %v916
        %937 = vmatpush.msra.mxu0 %v915
        %938 = vmatpush.msra.mxu0 %v914
        %939 = vmatmul.f32.gmra.mxu0 %v921
        %v940 = vpop.f32.mrf.mxu0
        %v941 = vadd.f32 %v919, %v940
        %942 = vdwg.mxu0
        %v943 = vmul.f32 %v941, 0.5
        %v944 = vmul.f32 %v941, 0.044715
        %v945 = vmul.f32 %v944, %v941
        %v946 = vmul.f32 %v945, %v941
        %v947 = vadd.f32 %v941, %v946
        %v948 = vmul.f32 %v947, 0.7978846
        %v949 = vtanh.pop %v948
        %v950 = vadd.f32 %v949, 1.0
        %v951 = vmul.f32 %v943, %v950
        %v952 = vld [vmem:[%s4] sm:$0xff]
        %v953 = vld [vmem:[%s4 + $0x8] sm:$0xff]
        %v954 = vld [vmem:[%s4 + $0x10] sm:$0xff]
        %v955 = vld [vmem:[%s4 + $0x18] sm:$0xff]
        %v956 = vld [vmem:[%s4 + $0x20] sm:$0xff]
        %v957 = vld [vmem:[%s4 + $0x28] sm:$0xff]
        %v958 = vld [vmem:[%s4 + $0x30] sm:$0xff]
        %v959 = vld [vmem:[%s4 + $0x38] sm:$0xff]
        %v960 = vld [vmem:[%s4 + $0x40] sm:$0xff]
        %v961 = vld [vmem:[%s4 + $0x48] sm:$0xff]
        %v962 = vld [vmem:[%s4 + $0x50] sm:$0xff]
        %v963 = vld [vmem:[%s4 + $0x58] sm:$0xff]
        %v964 = vld [vmem:[%s4 + $0x60] sm:$0xff]
        %v965 = vld [vmem:[%s4 + $0x68] sm:$0xff]
        %v966 = vld [vmem:[%s4 + $0x70] sm:$0xff]
        %v967 = vld [vmem:[%s4 + $0x78] sm:$0xff]
        %v968 = vld [vmem:[%s6 + $0x13] sm:$0x1]
        %v969 = vperm.slane %v968, 0
        %970 = vmatpush.msra.mxu0 %v967
        %971 = vmatpush.msra.mxu0 %v966
        %972 = vmatpush.msra.mxu0 %v965
        %973 = vmatpush.msra.mxu0 %v964
        %974 = vmatpush.msra.mxu0 %v963
        %975 = vmatpush.msra.mxu0 %v962
        %976 = vmatpush.msra.mxu0 %v961
        %977 = vmatpush.msra.mxu0 %v960
        %978 = vmatpush.msra.mxu0 %v959
        %979 = vmatpush.msra.mxu0 %v958
        %980 = vmatpush.msra.mxu0 %v957
        %981 = vmatpush.msra.mxu0 %v956
        %982 = vmatpush.msra.mxu0 %v955
        %983 = vmatpush.msra.mxu0 %v954
        %984 = vmatpush.msra.mxu0 %v953
        %985 = vmatpush.msra.mxu0 %v952
        %986 = vmatmul.f32.gmra.mxu0 %v951
        %v987 = vpop.f32.mrf.mxu0
        %v988 = vadd.f32 %v969, %v987
        %989 = vdwg.mxu0
        %v990 = vld [vmem:[%s6 + $0x15] sm:$0x1]
        %v991 = vperm.slane %v990, 0
        %v992 = vmul.f32 %v991, %v988
        %v993 = vadd.f32 %v913, %v992
        %v994 = vsel %vm386, %v993, 0.0
        %995 = vadd.xlane.f32.xlu0 %v994
        %v996 = vpop.xlane.xlu0 %995
        %v997 = vmul.f32 %v993, %v993
        %v998 = vsel %vm386, %v997, 0.0
        %999 = vadd.xlane.f32.xlu0 %v998
        %v1000 = vpop.xlane.xlu0 %999
        %v1001 = vmul.f32 %v996, 0.03125
        %v1002 = vmul.f32 %v1000, 0.03125
        %v1003 = vmul.f32 %v1001, %v1001
        %v1004 = vsub.f32 %v1002, %v1003
        %v1005 = vsub.f32 %v993, %v1001
        %v1006 = vadd.f32 %v1004, 1e-05
        %v1007 = vrsqrt.pop %v1006
        %v1008 = vmul.f32 %v1007, %v1006
        %v1009 = vmul.f32 %v1008, %v1007
        %v1010 = vmul.f32 0.5, %v1009
        %v1011 = vsub.f32 1.5, %v1010
        %v1012 = vmul.f32 %v1007, %v1011
        %vm1013 = vweird.f32 %v1006
        %vm1014 = vweird.f32 %v1007
        %vm1015 = vmor %vm1013, %vm1014
        %v1016 = vsel %vm1015, %v1007, %v1012
        %v1017 = vmul.f32 %v1005, %v1016
        %v1018 = vld [vmem:[%s6 + $0x11] sm:$0x1]
        %v1019 = vperm.slane %v1018, 0
        %v1020 = vmul.f32 %v1017, %v1019
        %v1021 = vld [vmem:[%s6 + $0x12] sm:$0x1]
        %v1022 = vperm.slane %v1021, 0
        %v1023 = vadd.f32 %v1020, %v1022
        %s1024 = scalar_lea.vmem %s5, 4
        %v1025 = vld [vmem:[%s1024] sm:$0x7]
        %1027 = vset.pattern.permute.xlu0 7
        %1028 = vperm.xlu0 %1027, %v1025
        %v1029 = vpop.permute.xlu0 %1028
        %v1031 = vsel %vm586, %v1025, 0
        %v1034 = vsel %vm589, %v1023, 0
        %1036 = vmatpush.msra.mxu0 0.0
        %1037 = vmatpush.msra.mxu0 0.0
        %1038 = vmatpush.msra.mxu0 0.0
        %1039 = vmatpush.msra.mxu0 0.0
        %1040 = vmatpush.msra.mxu0 0.0
        %1041 = vmatpush.msra.mxu0 0.0
        %1042 = vmatpush.msra.mxu0 0.0
        %1043 = vmatpush.msra.mxu0 0.0
        %1044 = vmatpush.msra.mxu0 0.0
        %1045 = vmatpush.msra.mxu0 0.0
        %1046 = vmatpush.msra.mxu0 0.0
        %1047 = vmatpush.msra.mxu0 0.0
        %1048 = vmatpush.msra.mxu0 0.0
        %1049 = vmatpush.msra.mxu0 0.0
        %1050 = vmatpush.msra.mxu0 0.0
        %1051 = vmatpush.msra.mxu0 %v1034
        %1052 = vmatmul.f32.gmra.mxu0 %v1031
        %v1053 = vpop.f32.mrf.mxu0
        %v1054 = vadd.f32 %v1029, %v1053
        %1055 = vdwg.mxu0
        %v1056 = vsel %vm613, %v1054, 0.0
        %1057 = vadd.xlane.f32.xlu0 %v1056
        %v1058 = vpop.xlane.xlu0 %1057
        %v1059 = vmul.f32 %v1054, %v1054
        %v1060 = vsel %vm613, %v1059, 0.0
        %1061 = vadd.xlane.f32.xlu0 %v1060
        %v1062 = vpop.xlane.xlu0 %1061
        %v1063 = vmul.f32 %v1058, 0.03125
        %v1064 = vmul.f32 %v1062, 0.03125
        %v1065 = vmul.f32 %v1063, %v1063
        %v1066 = vsub.f32 %v1064, %v1065
        %v1067 = vsub.f32 %v1054, %v1063
        %v1068 = vadd.f32 %v1066, 1e-05
        %v1069 = vrsqrt.pop %v1068
        %v1070 = vmul.f32 %v1069, %v1068
        %v1071 = vmul.f32 %v1070, %v1069
        %v1072 = vmul.f32 0.5, %v1071
        %v1073 = vsub.f32 1.5, %v1072
        %v1074 = vmul.f32 %v1069, %v1073
        %vm1075 = vweird.f32 %v1068
        %vm1076 = vweird.f32 %v1069
        %vm1077 = vmor %vm1075, %vm1076
        %v1078 = vsel %vm1077, %v1069, %v1074
        %v1079 = vmul.f32 %v1067, %v1078
        %v1080 = vld [vmem:[%s6 + $0x22] sm:$0x1]
        %v1081 = vperm.slane %v1080, 0
        %v1082 = vmul.f32 %v1079, %v1081
        %v1083 = vld [vmem:[%s6 + $0x23] sm:$0x1]
        %v1084 = vperm.slane %v1083, 0
        %v1085 = vadd.f32 %v1082, %v1084
        %s1086 = scalar_lea.vmem %s2, 640
        %v1087 = vld [vmem:[%s1086] sm:$0xff]
        %v1088 = vld [vmem:[%s1086 + $0x8] sm:$0xff]
        %v1089 = vld [vmem:[%s1086 + $0x10] sm:$0xff]
        %v1090 = vld [vmem:[%s1086 + $0x18] sm:$0xff]
        %v1091 = vld [vmem:[%s6 + $0x1a] sm:$0x1]
        %v1092 = vperm.slane %v1091, 0
        %v1094 = vsel %vm431, %v1085, 0
        %1096 = vmatpush.msra.mxu0 0.0
        %1097 = vmatpush.msra.mxu0 0.0
        %1098 = vmatpush.msra.mxu0 0.0
        %1099 = vmatpush.msra.mxu0 0.0
        %1100 = vmatpush.msra.mxu0 0.0
        %1101 = vmatpush.msra.mxu0 0.0
        %1102 = vmatpush.msra.mxu0 0.0
        %1103 = vmatpush.msra.mxu0 0.0
        %1104 = vmatpush.msra.mxu0 0.0
        %1105 = vmatpush.msra.mxu0 0.0
        %1106 = vmatpush.msra.mxu0 0.0
        %1107 = vmatpush.msra.mxu0 0.0
        %1108 = vmatpush.msra.mxu0 %v1090
        %1109 = vmatpush.msra.mxu0 %v1089
        %1110 = vmatpush.msra.mxu0 %v1088
        %1111 = vmatpush.msra.mxu0 %v1087
        %1112 = vmatmul.f32.gmra.mxu0 %v1094
        %v1113 = vpop.f32.mrf.mxu0
        %v1114 = vadd.f32 %v1092, %v1113
        %1115 = vdwg.mxu0
        %s1116 = scalar_lea.vmem %s2, 576
        %v1117 = vld [vmem:[%s1116] sm:$0xff]
        %v1118 = vld [vmem:[%s1116 + $0x8] sm:$0xff]
        %v1119 = vld [vmem:[%s1116 + $0x10] sm:$0xff]
        %v1120 = vld [vmem:[%s1116 + $0x18] sm:$0xff]
        %v1121 = vld [vmem:[%s6 + $0x18] sm:$0x1]
        %v1122 = vperm.slane %v1121, 0
        %v1123 = vsel %vm431, %v1023, 0
        %1125 = vmatpush.msra.mxu0 0.0
        %1126 = vmatpush.msra.mxu0 0.0
        %1127 = vmatpush.msra.mxu0 0.0
        %1128 = vmatpush.msra.mxu0 0.0
        %1129 = vmatpush.msra.mxu0 0.0
        %1130 = vmatpush.msra.mxu0 0.0
        %1131 = vmatpush.msra.mxu0 0.0
        %1132 = vmatpush.msra.mxu0 0.0
        %1133 = vmatpush.msra.mxu0 0.0
        %1134 = vmatpush.msra.mxu0 0.0
        %1135 = vmatpush.msra.mxu0 0.0
        %1136 = vmatpush.msra.mxu0 0.0
        %1137 = vmatpush.msra.mxu0 %v1120
        %1138 = vmatpush.msra.mxu0 %v1119
        %1139 = vmatpush.msra.mxu0 %v1118
        %1140 = vmatpush.msra.mxu0 %v1117
        %1141 = vmatmul.f32.gmra.mxu0 %v1123
        %v1142 = vpop.f32.mrf.mxu0
        %v1143 = vadd.f32 %v1122, %v1142
        %1144 = vdwg.mxu0
        %s1145 = scalar_lea.vmem %s2, 608
        %v1146 = vld [vmem:[%s1145] sm:$0xff]
        %v1147 = vld [vmem:[%s1145 + $0x8] sm:$0xff]
        %v1148 = vld [vmem:[%s1145 + $0x10] sm:$0xff]
        %v1149 = vld [vmem:[%s1145 + $0x18] sm:$0xff]
        %v1150 = vld [vmem:[%s6 + $0x19] sm:$0x1]
        %v1151 = vperm.slane %v1150, 0
        %1152 = vmatpush.msra.mxu0 0.0
        %1153 = vmatpush.msra.mxu0 0.0
        %1154 = vmatpush.msra.mxu0 0.0
        %1155 = vmatpush.msra.mxu0 0.0
        %1156 = vmatpush.msra.mxu0 0.0
        %1157 = vmatpush.msra.mxu0 0.0
        %1158 = vmatpush.msra.mxu0 0.0
        %1159 = vmatpush.msra.mxu0 0.0
        %1160 = vmatpush.msra.mxu0 0.0
        %1161 = vmatpush.msra.mxu0 0.0
        %1162 = vmatpush.msra.mxu0 0.0
        %1163 = vmatpush.msra.mxu0 0.0
        %1164 = vmatpush.msra.mxu0 %v1149
        %1165 = vmatpush.msra.mxu0 %v1148
        %1166 = vmatpush.msra.mxu0 %v1147
        %1167 = vmatpush.msra.mxu0 %v1146
        %1168 = vmatmul.f32.gmra.mxu0 %v1094
        %v1169 = vpop.f32.mrf.mxu0
        %v1170 = vadd.f32 %v1151, %v1169
        %1171 = vdwg.mxu0
        %v1172 = vsel %vm589, %v1143, 0.0
        %v1173 = vmul.f32 %v1172, %v347
        %v1174 = vmul.f32 %v1172, %v348
        %v1175 = vmul.f32 %v1172, %v349
        %v1176 = vmul.f32 %v1172, %v350
        %v1178 = vsel %vm431, %v1173, 0
        %v1181 = vsel %vm431, %v1174, 0
        %v1184 = vsel %vm431, %v1175, 0
        %v1187 = vsel %vm431, %v1176, 0
        %v1190 = vsel %vm431, %v1170, 0
        %1192 = vmatpush.xpose.msra.mxu0 0.0
        %1193 = vmatpush.xpose.msra.mxu0 0.0
        %1194 = vmatpush.xpose.msra.mxu0 0.0
        %1195 = vmatpush.xpose.msra.mxu0 0.0
        %1196 = vmatpush.xpose.msra.mxu0 0.0
        %1197 = vmatpush.xpose.msra.mxu0 0.0
        %1198 = vmatpush.xpose.msra.mxu0 0.0
        %1199 = vmatpush.xpose.msra.mxu0 0.0
        %1200 = vmatpush.xpose.msra.mxu0 0.0
        %1201 = vmatpush.xpose.msra.mxu0 0.0
        %1202 = vmatpush.xpose.msra.mxu0 0.0
        %1203 = vmatpush.xpose.msra.mxu0 0.0
        %1204 = vmatpush.xpose.msra.mxu0 0.0
        %1205 = vmatpush.xpose.msra.mxu0 0.0
        %1206 = vmatpush.xpose.msra.mxu0 0.0
        %1207 = vmatpush.xpose.msra.mxu0 %v1190
        %1208 = vmatmul.f32.gmra.mxu0 %v1178
        %v1209 = vpop.f32.mrf.mxu0
        %v1210 = vadd.f32 0.0, %v1209
        %1211 = vmatmul.f32.gmra.mxu0 %v1181
        %v1212 = vpop.f32.mrf.mxu0
        %v1213 = vadd.f32 0.0, %v1212
        %1214 = vmatmul.f32.gmra.mxu0 %v1184
        %v1215 = vpop.f32.mrf.mxu0
        %v1216 = vadd.f32 0.0, %v1215
        %1217 = vmatmul.f32.gmra.mxu0 %v1187
        %v1218 = vpop.f32.mrf.mxu0
        %v1219 = vadd.f32 0.0, %v1218
        %1220 = vdwg.mxu0
        %v1221 = vmul.f32 %v1210, 0.35355338
        %v1222 = vmul.f32 %v1213, 0.35355338
        %v1223 = vmul.f32 %v1216, 0.35355338
        %v1224 = vmul.f32 %v1219, 0.35355338
        %v1225 = vsel %vm783, %v1221, -inf
        %1226 = vmax.xlane.f32.xlu0 %v1225
        %v1227 = vpop.xlane.xlu0 %1226
        %v1228 = vsel %vm783, %v1222, -inf
        %1229 = vmax.xlane.f32.xlu0 %v1228
        %v1230 = vpop.xlane.xlu0 %1229
        %v1231 = vsel %vm783, %v1223, -inf
        %1232 = vmax.xlane.f32.xlu0 %v1231
        %v1233 = vpop.xlane.xlu0 %1232
        %v1234 = vsel %vm783, %v1224, -inf
        %1235 = vmax.xlane.f32.xlu0 %v1234
        %v1236 = vpop.xlane.xlu0 %1235
        %v1237 = vsub.f32 %v1221, %v1227
        %v1238 = vsub.f32 %v1222, %v1230
        %v1239 = vsub.f32 %v1223, %v1233
        %v1240 = vsub.f32 %v1224, %v1236
        %v1241 = vmul.f32 %v1237, 1.442695
        %v1242 = vpow.pop %v1241
        %v1243 = vmul.f32 %v1238, 1.442695
        %v1244 = vpow.pop %v1243
        %v1245 = vmul.f32 %v1239, 1.442695
        %v1246 = vpow.pop %v1245
        %v1247 = vmul.f32 %v1240, 1.442695
        %v1248 = vpow.pop %v1247
        %v1249 = vsel %vm783, %v1242, 0.0
        %1250 = vadd.xlane.f32.xlu0 %v1249
        %v1251 = vpop.xlane.xlu0 %1250
        %v1252 = vsel %vm783, %v1244, 0.0
        %1253 = vadd.xlane.f32.xlu0 %v1252
        %v1254 = vpop.xlane.xlu0 %1253
        %v1255 = vsel %vm783, %v1246, 0.0
        %1256 = vadd.xlane.f32.xlu0 %v1255
        %v1257 = vpop.xlane.xlu0 %1256
        %v1258 = vsel %vm783, %v1248, 0.0
        %1259 = vadd.xlane.f32.xlu0 %v1258
        %v1260 = vpop.xlane.xlu0 %1259
        %v1261 = vrcp.pop %v1251
        %v1262 = vrcp.pop %v1254
        %v1263 = vrcp.pop %v1257
        %v1264 = vrcp.pop %v1260
        %v1265 = vmul.f32 %v1242, %v1261
        %v1266 = vmul.f32 %v1244, %v1262
        %v1267 = vmul.f32 %v1246, %v1263
        %v1268 = vmul.f32 %v1248, %v1264
        %v1270 = vsel %vm783, %v1265, 0
        %v1273 = vsel %vm783, %v1266, 0
        %v1276 = vsel %vm783, %v1267, 0
        %v1279 = vsel %vm783, %v1268, 0
        %v1282 = vsel %vm840, %v1114, 0
        %1284 = vmatpush.msra.mxu0 0.0
        %1285 = vmatpush.msra.mxu0 0.0
        %1286 = vmatpush.msra.mxu0 0.0
        %1287 = vmatpush.msra.mxu0 0.0
        %1288 = vmatpush.msra.mxu0 0.0
        %1289 = vmatpush.msra.mxu0 0.0
        %1290 = vmatpush.msra.mxu0 0.0
        %1291 = vmatpush.msra.mxu0 0.0
        %1292 = vmatpush.msra.mxu0 0.0
        %1293 = vmatpush.msra.mxu0 0.0
        %1294 = vmatpush.msra.mxu0 0.0
        %1295 = vmatpush.msra.mxu0 0.0
        %1296 = vmatpush.msra.mxu0 0.0
        %1297 = vmatpush.msra.mxu0 0.0
        %1298 = vmatpush.msra.mxu0 0.0
        %1299 = vmatpush.msra.mxu0 %v1282
        %1300 = vmatmul.f32.gmra.mxu0 %v1270
        %v1301 = vpop.f32.mrf.mxu0
        %v1302 = vadd.f32 0.0, %v1301
        %1303 = vmatmul.f32.gmra.mxu0 %v1273
        %v1304 = vpop.f32.mrf.mxu0
        %v1305 = vadd.f32 0.0, %v1304
        %1306 = vmatmul.f32.gmra.mxu0 %v1276
        %v1307 = vpop.f32.mrf.mxu0
        %v1308 = vadd.f32 0.0, %v1307
        %1309 = vmatmul.f32.gmra.mxu0 %v1279
        %v1310 = vpop.f32.mrf.mxu0
        %v1311 = vadd.f32 0.0, %v1310
        %1312 = vdwg.mxu0
        %v1313 = vmul.f32 %v1302, %v347
        %v1314 = vmul.f32 %v1305, %v348
        %v1315 = vmul.f32 %v1308, %v349
        %v1316 = vmul.f32 %v1311, %v350
        %v1317 = vadd.f32 %v1313, %v1314
        %v1318 = vadd.f32 %v1317, %v1315
        %v1319 = vadd.f32 %v1318, %v1316
        %v1320 = vld [vmem:[%s6 + $0x20] sm:$0x1]
        %v1321 = vperm.slane %v1320, 0
        %v1322 = vmul.f32 %v1321, %v1319
        %v1323 = vadd.f32 %v1023, %v1322
        %v1324 = vsel %vm386, %v1323, 0.0
        %1325 = vadd.xlane.f32.xlu0 %v1324
        %v1326 = vpop.xlane.xlu0 %1325
        %v1327 = vmul.f32 %v1323, %v1323
        %v1328 = vsel %vm386, %v1327, 0.0
        %1329 = vadd.xlane.f32.xlu0 %v1328
        %v1330 = vpop.xlane.xlu0 %1329
        %v1331 = vmul.f32 %v1326, 0.03125
        %v1332 = vmul.f32 %v1330, 0.03125
        %v1333 = vmul.f32 %v1331, %v1331
        %v1334 = vsub.f32 %v1332, %v1333
        %v1335 = vsub.f32 %v1323, %v1331
        %v1336 = vadd.f32 %v1334, 1e-05
        %v1337 = vrsqrt.pop %v1336
        %v1338 = vmul.f32 %v1337, %v1336
        %v1339 = vmul.f32 %v1338, %v1337
        %v1340 = vmul.f32 0.5, %v1339
        %v1341 = vsub.f32 1.5, %v1340
        %v1342 = vmul.f32 %v1337, %v1341
        %vm1343 = vweird.f32 %v1336
        %vm1344 = vweird.f32 %v1337
        %vm1345 = vmor %vm1343, %vm1344
        %v1346 = vsel %vm1345, %v1337, %v1342
        %v1347 = vmul.f32 %v1335, %v1346
        %v1348 = vld [vmem:[%s6 + $0x1b] sm:$0x1]
        %v1349 = vperm.slane %v1348, 0
        %v1350 = vmul.f32 %v1347, %v1349
        %v1351 = vld [vmem:[%s6 + $0x1c] sm:$0x1]
        %v1352 = vperm.slane %v1351, 0
        %v1353 = vadd.f32 %v1350, %v1352
        %s1354 = scalar_lea.vmem %s3, 32
        %v1355 = vld [vmem:[%s1354] sm:$0xff]
        %v1356 = vld [vmem:[%s1354 + $0x8] sm:$0xff]
        %v1357 = vld [vmem:[%s1354 + $0x10] sm:$0xff]
        %v1358 = vld [vmem:[%s1354 + $0x18] sm:$0xff]
        %v1359 = vld [vmem:[%s7 + $0x1] sm:$0x1]
        %v1360 = vperm.slane %v1359, 0
        %v1362 = vsel %vm431, %v1353, 0
        %1364 = vmatpush.msra.mxu0 0.0
        %1365 = vmatpush.msra.mxu0 0.0
        %1366 = vmatpush.msra.mxu0 0.0
        %1367 = vmatpush.msra.mxu0 0.0
        %1368 = vmatpush.msra.mxu0 0.0
        %1369 = vmatpush.msra.mxu0 0.0
        %1370 = vmatpush.msra.mxu0 0.0
        %1371 = vmatpush.msra.mxu0 0.0
        %1372 = vmatpush.msra.mxu0 0.0
        %1373 = vmatpush.msra.mxu0 0.0
        %1374 = vmatpush.msra.mxu0 0.0
        %1375 = vmatpush.msra.mxu0 0.0
        %1376 = vmatpush.msra.mxu0 %v1358
        %1377 = vmatpush.msra.mxu0 %v1357
        %1378 = vmatpush.msra.mxu0 %v1356
        %1379 = vmatpush.msra.mxu0 %v1355
        %1380 = vmatmul.f32.gmra.mxu0 %v1362
        %v1381 = vpop.f32.mrf.mxu0
        %v1382 = vadd.f32 %v1360, %v1381
        %1383 = vdwg.mxu0
        %v1384 = vmul.f32 %v1382, 0.5
        %v1385 = vmul.f32 %v1382, 0.044715
        %v1386 = vmul.f32 %v1385, %v1382
        %v1387 = vmul.f32 %v1386, %v1382
        %v1388 = vadd.f32 %v1382, %v1387
        %v1389 = vmul.f32 %v1388, 0.7978846
        %v1390 = vtanh.pop %v1389
        %v1391 = vadd.f32 %v1390, 1.0
        %v1392 = vmul.f32 %v1384, %v1391
        %s1393 = scalar_lea.vmem %s4, 128
        %v1394 = vld [vmem:[%s1393] sm:$0xff]
        %v1395 = vld [vmem:[%s1393 + $0x8] sm:$0xff]
        %v1396 = vld [vmem:[%s1393 + $0x10] sm:$0xff]
        %v1397 = vld [vmem:[%s1393 + $0x18] sm:$0xff]
        %v1398 = vld [vmem:[%s1393 + $0x20] sm:$0xff]
        %v1399 = vld [vmem:[%s1393 + $0x28] sm:$0xff]
        %v1400 = vld [vmem:[%s1393 + $0x30] sm:$0xff]
        %v1401 = vld [vmem:[%s1393 + $0x38] sm:$0xff]
        %v1402 = vld [vmem:[%s1393 + $0x40] sm:$0xff]
        %v1403 = vld [vmem:[%s1393 + $0x48] sm:$0xff]
        %v1404 = vld [vmem:[%s1393 + $0x50] sm:$0xff]
        %v1405 = vld [vmem:[%s1393 + $0x58] sm:$0xff]
        %v1406 = vld [vmem:[%s1393 + $0x60] sm:$0xff]
        %v1407 = vld [vmem:[%s1393 + $0x68] sm:$0xff]
        %v1408 = vld [vmem:[%s1393 + $0x70] sm:$0xff]
        %v1409 = vld [vmem:[%s1393 + $0x78] sm:$0xff]
        %v1410 = vld [vmem:[%s6 + $0x1f] sm:$0x1]
        %v1411 = vperm.slane %v1410, 0
        %1412 = vmatpush.msra.mxu0 %v1409
        %1413 = vmatpush.msra.mxu0 %v1408
        %1414 = vmatpush.msra.mxu0 %v1407
        %1415 = vmatpush.msra.mxu0 %v1406
        %1416 = vmatpush.msra.mxu0 %v1405
        %1417 = vmatpush.msra.mxu0 %v1404
        %1418 = vmatpush.msra.mxu0 %v1403
        %1419 = vmatpush.msra.mxu0 %v1402
        %1420 = vmatpush.msra.mxu0 %v1401
        %1421 = vmatpush.msra.mxu0 %v1400
        %1422 = vmatpush.msra.mxu0 %v1399
        %1423 = vmatpush.msra.mxu0 %v1398
        %1424 = vmatpush.msra.mxu0 %v1397
        %1425 = vmatpush.msra.mxu0 %v1396
        %1426 = vmatpush.msra.mxu0 %v1395
        %1427 = vmatpush.msra.mxu0 %v1394
        %1428 = vmatmul.f32.gmra.mxu0 %v1392
        %v1429 = vpop.f32.mrf.mxu0
        %v1430 = vadd.f32 %v1411, %v1429
        %1431 = vdwg.mxu0
        %v1432 = vld [vmem:[%s6 + $0x21] sm:$0x1]
        %v1433 = vperm.slane %v1432, 0
        %v1434 = vmul.f32 %v1433, %v1430
        %v1435 = vadd.f32 %v1353, %v1434
        %v1436 = vsel %vm386, %v1435, 0.0
        %1437 = vadd.xlane.f32.xlu0 %v1436
        %v1438 = vpop.xlane.xlu0 %1437
        %v1439 = vmul.f32 %v1435, %v1435
        %v1440 = vsel %vm386, %v1439, 0.0
        %1441 = vadd.xlane.f32.xlu0 %v1440
        %v1442 = vpop.xlane.xlu0 %1441
        %v1443 = vmul.f32 %v1438, 0.03125
        %v1444 = vmul.f32 %v1442, 0.03125
        %v1445 = vmul.f32 %v1443, %v1443
        %v1446 = vsub.f32 %v1444, %v1445
        %v1447 = vsub.f32 %v1435, %v1443
        %v1448 = vadd.f32 %v1446, 1e-05
        %v1449 = vrsqrt.pop %v1448
        %v1450 = vmul.f32 %v1449, %v1448
        %v1451 = vmul.f32 %v1450, %v1449
        %v1452 = vmul.f32 0.5, %v1451
        %v1453 = vsub.f32 1.5, %v1452
        %v1454 = vmul.f32 %v1449, %v1453
        %vm1455 = vweird.f32 %v1448
        %vm1456 = vweird.f32 %v1449
        %vm1457 = vmor %vm1455, %vm1456
        %v1458 = vsel %vm1457, %v1449, %v1454
        %v1459 = vmul.f32 %v1447, %v1458
        %v1460 = vld [vmem:[%s6 + $0x1d] sm:$0x1]
        %v1461 = vperm.slane %v1460, 0
        %v1462 = vmul.f32 %v1459, %v1461
        %v1463 = vld [vmem:[%s6 + $0x1e] sm:$0x1]
        %v1464 = vperm.slane %v1463, 0
        %v1465 = vadd.f32 %v1462, %v1464
        %s1466 = scalar_lea.vmem %s1, 64
        %v1467 = vld [vmem:[%s1466] sm:$0xff]
        %v1468 = vld [vmem:[%s1466 + $0x8] sm:$0xff]
        %v1469 = vld [vmem:[%s1466 + $0x10] sm:$0xff]
        %v1470 = vld [vmem:[%s1466 + $0x18] sm:$0xff]
        %v1471 = vld [vmem:[%s1466 + $0x20] sm:$0xff]
        %v1472 = vld [vmem:[%s1466 + $0x28] sm:$0xff]
        %v1473 = vld [vmem:[%s1466 + $0x30] sm:$0xff]
        %v1474 = vld [vmem:[%s1466 + $0x38] sm:$0xff]
        %v1476 = vrot.slane %v1465, 1
        %v1478 = vrot.slane %v1465, 2
        %v1480 = vsel %vm479, %v1465, %v1476
        %v1481 = vsel %vm425, %v1480, %v1478
        %v1482 = vrot.slane %v1465, 3
        %v1484 = vsel %vm479, %v1476, %v1478
        %v1485 = vsel %vm425, %v1484, %v1482
        %v1487 = vsel %vm431, %v1485, 0
        %1489 = vmatpush.msra.mxu0 0.0
        %1490 = vmatpush.msra.mxu0 0.0
        %1491 = vmatpush.msra.mxu0 0.0
        %1492 = vmatpush.msra.mxu0 0.0
        %1493 = vmatpush.msra.mxu0 0.0
        %1494 = vmatpush.msra.mxu0 0.0
        %1495 = vmatpush.msra.mxu0 0.0
        %1496 = vmatpush.msra.mxu0 0.0
        %1497 = vmatpush.msra.mxu0 0.0
        %1498 = vmatpush.msra.mxu0 0.0
        %1499 = vmatpush.msra.mxu0 0.0
        %1500 = vmatpush.msra.mxu0 0.0
        %1501 = vmatpush.msra.mxu0 %v1474
        %1502 = vmatpush.msra.mxu0 %v1473
        %1503 = vmatpush.msra.mxu0 %v1472
        %1504 = vmatpush.msra.mxu0 %v1471
        %1505 = vmatmul.f32.gmra.mxu0 %v1487
        %v1506 = vpop.f32.mrf.mxu0
        %v1507 = vadd.f32 0.0, %v1506
        %1508 = vdwg.mxu0
        %v1510 = vsel %vm431, %v1481, 0
        %1512 = vmatpush.msra.mxu0 0.0
        %1513 = vmatpush.msra.mxu0 0.0
        %1514 = vmatpush.msra.mxu0 0.0
        %1515 = vmatpush.msra.mxu0 0.0
        %1516 = vmatpush.msra.mxu0 0.0
        %1517 = vmatpush.msra.mxu0 0.0
        %1518 = vmatpush.msra.mxu0 0.0
        %1519 = vmatpush.msra.mxu0 0.0
        %1520 = vmatpush.msra.mxu0 0.0
        %1521 = vmatpush.msra.mxu0 0.0
        %1522 = vmatpush.msra.mxu0 0.0
        %1523 = vmatpush.msra.mxu0 0.0
        %1524 = vmatpush.msra.mxu0 %v1470
        %1525 = vmatpush.msra.mxu0 %v1469
        %1526 = vmatpush.msra.mxu0 %v1468
        %1527 = vmatpush.msra.mxu0 %v1467
        %1528 = vmatmul.f32.gmra.mxu0 %v1510
        %v1529 = vpop.f32.mrf.mxu0
        %v1530 = vadd.f32 %v1507, %v1529
        %1531 = vdwg.mxu0
        %v1532 = vld [vmem:[%s6 + $0x4] sm:$0x1]
        %v1533 = vperm.slane %v1532, 0
        %v1534 = vadd.f32 %v1530, %v1533
        %v1535 = vsel %vm613, %v1534, 0.0
        %1536 = vadd.xlane.f32.xlu0 %v1535
        %v1537 = vpop.xlane.xlu0 %1536
        %v1538 = vmul.f32 %v1534, %v1534
        %v1539 = vsel %vm613, %v1538, 0.0
        %1540 = vadd.xlane.f32.xlu0 %v1539
        %v1541 = vpop.xlane.xlu0 %1540
        %v1542 = vmul.f32 %v1537, 0.03125
        %v1543 = vmul.f32 %v1541, 0.03125
        %v1544 = vmul.f32 %v1542, %v1542
        %v1545 = vsub.f32 %v1543, %v1544
        %v1546 = vsub.f32 %v1534, %v1542
        %v1547 = vadd.f32 %v1545, 1e-05
        %v1548 = vrsqrt.pop %v1547
        %v1549 = vmul.f32 %v1548, %v1547
        %v1550 = vmul.f32 %v1549, %v1548
        %v1551 = vmul.f32 0.5, %v1550
        %v1552 = vsub.f32 1.5, %v1551
        %v1553 = vmul.f32 %v1548, %v1552
        %vm1554 = vweird.f32 %v1547
        %vm1555 = vweird.f32 %v1548
        %vm1556 = vmor %vm1554, %vm1555
        %v1557 = vsel %vm1556, %v1548, %v1553
        %v1558 = vmul.f32 %v1546, %v1557
        %v1559 = vld [vmem:[%s6 + $0x5] sm:$0x1]
        %v1560 = vperm.slane %v1559, 0
        %v1561 = vmul.f32 %v1558, %v1560
        %v1562 = vld [vmem:[%s6 + $0x6] sm:$0x1]
        %v1563 = vperm.slane %v1562, 0
        %v1564 = vadd.f32 %v1561, %v1563
        %s1565 = scalar_lea.vmem %s2, 224
        %v1566 = vld [vmem:[%s1565] sm:$0xff]
        %v1567 = vld [vmem:[%s1565 + $0x8] sm:$0xff]
        %v1568 = vld [vmem:[%s1565 + $0x10] sm:$0xff]
        %v1569 = vld [vmem:[%s1565 + $0x18] sm:$0xff]
        %v1571 = vrot.slane %v1564, 6
        %v1573 = vsel %vm425, 0.0, %v1571
        %s1574 = scalar_lea.vmem %s2, 160
        %v1575 = vld [vmem:[%s1574] sm:$0xff]
        %v1576 = vld [vmem:[%s1574 + $0x8] sm:$0xff]
        %v1577 = vld [vmem:[%s1574 + $0x10] sm:$0xff]
        %v1578 = vld [vmem:[%s1574 + $0x18] sm:$0xff]
        %v1580 = vsel %vm431, %v1573, 0
        %1582 = vmatpush.msra.mxu0 0.0
        %1583 = vmatpush.msra.mxu0 0.0
        %1584 = vmatpush.msra.mxu0 0.0
        %1585 = vmatpush.msra.mxu0 0.0
        %1586 = vmatpush.msra.mxu0 0.0
        %1587 = vmatpush.msra.mxu0 0.0
        %1588 = vmatpush.msra.mxu0 0.0
        %1589 = vmatpush.msra.mxu0 0.0
        %1590 = vmatpush.msra.mxu0 0.0
        %1591 = vmatpush.msra.mxu0 0.0
        %1592 = vmatpush.msra.mxu0 0.0
        %1593 = vmatpush.msra.mxu0 0.0
        %1594 = vmatpush.msra.mxu0 %v1578
        %1595 = vmatpush.msra.mxu0 %v1577
        %1596 = vmatpush.msra.mxu0 %v1576
        %1597 = vmatpush.msra.mxu0 %v1575
        %1598 = vmatmul.f32.gmra.mxu0 %v1580
        %v1599 = vpop.f32.mrf.mxu0
        %v1600 = vadd.f32 0.0, %v1599
        %1601 = vdwg.mxu0
        %v1602 = vsel %vm431, %v1564, 0
        %1604 = vmatpush.msra.mxu0 0.0
        %1605 = vmatpush.msra.mxu0 0.0
        %1606 = vmatpush.msra.mxu0 0.0
        %1607 = vmatpush.msra.mxu0 0.0
        %1608 = vmatpush.msra.mxu0 0.0
        %1609 = vmatpush.msra.mxu0 0.0
        %1610 = vmatpush.msra.mxu0 0.0
        %1611 = vmatpush.msra.mxu0 0.0
        %1612 = vmatpush.msra.mxu0 0.0
        %1613 = vmatpush.msra.mxu0 0.0
        %1614 = vmatpush.msra.mxu0 0.0
        %1615 = vmatpush.msra.mxu0 0.0
        %1616 = vmatpush.msra.mxu0 %v1569
        %1617 = vmatpush.msra.mxu0 %v1568
        %1618 = vmatpush.msra.mxu0 %v1567
        %1619 = vmatpush.msra.mxu0 %v1566
        %1620 = vmatmul.f32.gmra.mxu0 %v1602
        %v1621 = vpop.f32.mrf.mxu0
        %v1622 = vadd.f32 %v1600, %v1621
        %1623 = vdwg.mxu0
        %v1624 = vrot.slane %v1564, 7
        %v1626 = vsel %vm479, 0.0, %v1624
        %s1627 = scalar_lea.vmem %s2, 192
        %v1628 = vld [vmem:[%s1627] sm:$0xff]
        %v1629 = vld [vmem:[%s1627 + $0x8] sm:$0xff]
        %v1630 = vld [vmem:[%s1627 + $0x10] sm:$0xff]
        %v1631 = vld [vmem:[%s1627 + $0x18] sm:$0xff]
        %v1633 = vsel %vm431, %v1626, 0
        %1635 = vmatpush.msra.mxu0 0.0
        %1636 = vmatpush.msra.mxu0 0.0
        %1637 = vmatpush.msra.mxu0 0.0
        %1638 = vmatpush.msra.mxu0 0.0
        %1639 = vmatpush.msra.mxu0 0.0
        %1640 = vmatpush.msra.mxu0 0.0
        %1641 = vmatpush.msra.mxu0 0.0
        %1642 = vmatpush.msra.mxu0 0.0
        %1643 = vmatpush.msra.mxu0 0.0
        %1644 = vmatpush.msra.mxu0 0.0
        %1645 = vmatpush.msra.mxu0 0.0
        %1646 = vmatpush.msra.mxu0 0.0
        %1647 = vmatpush.msra.mxu0 %v1631
        %1648 = vmatpush.msra.mxu0 %v1630
        %1649 = vmatpush.msra.mxu0 %v1629
        %1650 = vmatpush.msra.mxu0 %v1628
        %1651 = vmatmul.f32.gmra.mxu0 %v1633
        %v1652 = vpop.f32.mrf.mxu0
        %v1653 = vadd.f32 0.0, %v1652
        %1654 = vdwg.mxu0
        %v1655 = vadd.f32 %v1622, %v1653
        %v1656 = vrot.slane %v1564, 1
        %v1658 = vsel %vm425, %v1656, 0.0
        %s1659 = scalar_lea.vmem %s2, 256
        %v1660 = vld [vmem:[%s1659] sm:$0xff]
        %v1661 = vld [vmem:[%s1659 + $0x8] sm:$0xff]
        %v1662 = vld [vmem:[%s1659 + $0x10] sm:$0xff]
        %v1663 = vld [vmem:[%s1659 + $0x18] sm:$0xff]
        %v1665 = vsel %vm431, %v1658, 0
        %1667 = vmatpush.msra.mxu0 0.0
        %1668 = vmatpush.msra.mxu0 0.0
        %1669 = vmatpush.msra.mxu0 0.0
        %1670 = vmatpush.msra.mxu0 0.0
        %1671 = vmatpush.msra.mxu0 0.0
        %1672 = vmatpush.msra.mxu0 0.0
        %1673 = vmatpush.msra.mxu0 0.0
        %1674 = vmatpush.msra.mxu0 0.0
        %1675 = vmatpush.msra.mxu0 0.0
        %1676 = vmatpush.msra.mxu0 0.0
        %1677 = vmatpush.msra.mxu0 0.0
        %1678 = vmatpush.msra.mxu0 0.0
        %1679 = vmatpush.msra.mxu0 %v1663
        %1680 = vmatpush.msra.mxu0 %v1662
        %1681 = vmatpush.msra.mxu0 %v1661
        %1682 = vmatpush.msra.mxu0 %v1660
        %1683 = vmatmul.f32.gmra.mxu0 %v1665
        %v1684 = vpop.f32.mrf.mxu0
        %v1685 = vadd.f32 0.0, %v1684
        %1686 = vdwg.mxu0
        %v1687 = vadd.f32 %v1655, %v1685
        %v1688 = vrot.slane %v1564, 2
        %v1690 = vsel %vm479, %v1688, 0.0
        %s1691 = scalar_lea.vmem %s2, 288
        %v1692 = vld [vmem:[%s1691] sm:$0xff]
        %v1693 = vld [vmem:[%s1691 + $0x8] sm:$0xff]
        %v1694 = vld [vmem:[%s1691 + $0x10] sm:$0xff]
        %v1695 = vld [vmem:[%s1691 + $0x18] sm:$0xff]
        %v1697 = vsel %vm431, %v1690, 0
        %1699 = vmatpush.msra.mxu0 0.0
        %1700 = vmatpush.msra.mxu0 0.0
        %1701 = vmatpush.msra.mxu0 0.0
        %1702 = vmatpush.msra.mxu0 0.0
        %1703 = vmatpush.msra.mxu0 0.0
        %1704 = vmatpush.msra.mxu0 0.0
        %1705 = vmatpush.msra.mxu0 0.0
        %1706 = vmatpush.msra.mxu0 0.0
        %1707 = vmatpush.msra.mxu0 0.0
        %1708 = vmatpush.msra.mxu0 0.0
        %1709 = vmatpush.msra.mxu0 0.0
        %1710 = vmatpush.msra.mxu0 0.0
        %1711 = vmatpush.msra.mxu0 %v1695
        %1712 = vmatpush.msra.mxu0 %v1694
        %1713 = vmatpush.msra.mxu0 %v1693
        %1714 = vmatpush.msra.mxu0 %v1692
        %1715 = vmatmul.f32.gmra.mxu0 %v1697
        %v1716 = vpop.f32.mrf.mxu0
        %v1717 = vadd.f32 0.0, %v1716
        %1718 = vdwg.mxu0
        %v1719 = vadd.f32 %v1687, %v1717
        %v1720 = vld [vmem:[%s6 + $0x7] sm:$0x1]
        %v1721 = vperm.slane %v1720, 0
        %v1722 = vadd.f32 %v1719, %v1721
        %v1723 = vadd.f32 %v1564, %v1722
        %s1724 = scalar_lea.vmem %s2, 736
        %v1725 = vld [vmem:[%s1724] sm:$0xff]
        %v1726 = vld [vmem:[%s1724 + $0x8] sm:$0xff]
        %v1727 = vld [vmem:[%s1724 + $0x10] sm:$0xff]
        %v1728 = vld [vmem:[%s1724 + $0x18] sm:$0xff]
        %v1729 = vld [vmem:[%s6 + $0x26] sm:$0x1]
        %v1730 = vperm.slane %v1729, 0
        %v1732 = vsel %vm431, %v1723, 0
        %1734 = vmatpush.msra.mxu0 0.0
        %1735 = vmatpush.msra.mxu0 0.0
        %1736 = vmatpush.msra.mxu0 0.0
        %1737 = vmatpush.msra.mxu0 0.0
        %1738 = vmatpush.msra.mxu0 0.0
        %1739 = vmatpush.msra.mxu0 0.0
        %1740 = vmatpush.msra.mxu0 0.0
        %1741 = vmatpush.msra.mxu0 0.0
        %1742 = vmatpush.msra.mxu0 0.0
        %1743 = vmatpush.msra.mxu0 0.0
        %1744 = vmatpush.msra.mxu0 0.0
        %1745 = vmatpush.msra.mxu0 0.0
        %1746 = vmatpush.msra.mxu0 %v1728
        %1747 = vmatpush.msra.mxu0 %v1727
        %1748 = vmatpush.msra.mxu0 %v1726
        %1749 = vmatpush.msra.mxu0 %v1725
        %1750 = vmatmul.f32.gmra.mxu0 %v1732
        %v1751 = vpop.f32.mrf.mxu0
        %v1752 = vadd.f32 %v1730, %v1751
        %1753 = vdwg.mxu0
        %s1754 = scalar_lea.vmem %s2, 672
        %v1755 = vld [vmem:[%s1754] sm:$0xff]
        %v1756 = vld [vmem:[%s1754 + $0x8] sm:$0xff]
        %v1757 = vld [vmem:[%s1754 + $0x10] sm:$0xff]
        %v1758 = vld [vmem:[%s1754 + $0x18] sm:$0xff]
        %v1759 = vld [vmem:[%s6 + $0x24] sm:$0x1]
        %v1760 = vperm.slane %v1759, 0
        %1761 = vmatpush.msra.mxu0 0.0
        %1762 = vmatpush.msra.mxu0 0.0
        %1763 = vmatpush.msra.mxu0 0.0
        %1764 = vmatpush.msra.mxu0 0.0
        %1765 = vmatpush.msra.mxu0 0.0
        %1766 = vmatpush.msra.mxu0 0.0
        %1767 = vmatpush.msra.mxu0 0.0
        %1768 = vmatpush.msra.mxu0 0.0
        %1769 = vmatpush.msra.mxu0 0.0
        %1770 = vmatpush.msra.mxu0 0.0
        %1771 = vmatpush.msra.mxu0 0.0
        %1772 = vmatpush.msra.mxu0 0.0
        %1773 = vmatpush.msra.mxu0 %v1758
        %1774 = vmatpush.msra.mxu0 %v1757
        %1775 = vmatpush.msra.mxu0 %v1756
        %1776 = vmatpush.msra.mxu0 %v1755
        %1777 = vmatmul.f32.gmra.mxu0 %v1732
        %v1778 = vpop.f32.mrf.mxu0
        %v1779 = vadd.f32 %v1760, %v1778
        %1780 = vdwg.mxu0
        %s1781 = scalar_lea.vmem %s2, 704
        %v1782 = vld [vmem:[%s1781] sm:$0xff]
        %v1783 = vld [vmem:[%s1781 + $0x8] sm:$0xff]
        %v1784 = vld [vmem:[%s1781 + $0x10] sm:$0xff]
        %v1785 = vld [vmem:[%s1781 + $0x18] sm:$0xff]
        %v1786 = vld [vmem:[%s6 + $0x25] sm:$0x1]
        %v1787 = vperm.slane %v1786, 0
        %1788 = vmatpush.msra.mxu0 0.0
        %1789 = vmatpush.msra.mxu0 0.0
        %1790 = vmatpush.msra.mxu0 0.0
        %1791 = vmatpush.msra.mxu0 0.0
        %1792 = vmatpush.msra.mxu0 0.0
        %1793 = vmatpush.msra.mxu0 0.0
        %1794 = vmatpush.msra.mxu0 0.0
        %1795 = vmatpush.msra.mxu0 0.0
        %1796 = vmatpush.msra.mxu0 0.0
        %1797 = vmatpush.msra.mxu0 0.0
        %1798 = vmatpush.msra.mxu0 0.0
        %1799 = vmatpush.msra.mxu0 0.0
        %1800 = vmatpush.msra.mxu0 %v1785
        %1801 = vmatpush.msra.mxu0 %v1784
        %1802 = vmatpush.msra.mxu0 %v1783
        %1803 = vmatpush.msra.mxu0 %v1782
        %1804 = vmatmul.f32.gmra.mxu0 %v1732
        %v1805 = vpop.f32.mrf.mxu0
        %v1806 = vadd.f32 %v1787, %v1805
        %1807 = vdwg.mxu0
        %v1808 = vsel %vm840, %v1779, 0.0
        %v1809 = vmul.f32 %v1808, %v347
        %v1810 = vmul.f32 %v1808, %v348
        %v1811 = vmul.f32 %v1808, %v349
        %v1812 = vmul.f32 %v1808, %v350
        %v1814 = vsel %vm431, %v1809, 0
        %v1817 = vsel %vm431, %v1810, 0
        %v1820 = vsel %vm431, %v1811, 0
        %v1823 = vsel %vm431, %v1812, 0
        %v1826 = vsel %vm431, %v1806, 0
        %1828 = vmatpush.xpose.msra.mxu0 0.0
        %1829 = vmatpush.xpose.msra.mxu0 0.0
        %1830 = vmatpush.xpose.msra.mxu0 0.0
        %1831 = vmatpush.xpose.msra.mxu0 0.0
        %1832 = vmatpush.xpose.msra.mxu0 0.0
        %1833 = vmatpush.xpose.msra.mxu0 0.0
        %1834 = vmatpush.xpose.msra.mxu0 0.0
        %1835 = vmatpush.xpose.msra.mxu0 0.0
        %1836 = vmatpush.xpose.msra.mxu0 0.0
        %1837 = vmatpush.xpose.msra.mxu0 0.0
        %1838 = vmatpush.xpose.msra.mxu0 0.0
        %1839 = vmatpush.xpose.msra.mxu0 0.0
        %1840 = vmatpush.xpose.msra.mxu0 0.0
        %1841 = vmatpush.xpose.msra.mxu0 0.0
        %1842 = vmatpush.xpose.msra.mxu0 0.0
        %1843 = vmatpush.xpose.msra.mxu0 %v1826
        %1844 = vmatmul.f32.gmra.mxu0 %v1814
        %v1845 = vpop.f32.mrf.mxu0
        %v1846 = vadd.f32 0.0, %v1845
        %1847 = vmatmul.f32.gmra.mxu0 %v1817
        %v1848 = vpop.f32.mrf.mxu0
        %v1849 = vadd.f32 0.0, %v1848
        %1850 = vmatmul.f32.gmra.mxu0 %v1820
        %v1851 = vpop.f32.mrf.mxu0
        %v1852 = vadd.f32 0.0, %v1851
        %1853 = vmatmul.f32.gmra.mxu0 %v1823
        %v1854 = vpop.f32.mrf.mxu0
        %v1855 = vadd.f32 0.0, %v1854
        %1856 = vdwg.mxu0
        %v1857 = vmul.f32 %v1846, 0.35355338
        %v1858 = vmul.f32 %v1849, 0.35355338
        %v1859 = vmul.f32 %v1852, 0.35355338
        %v1860 = vmul.f32 %v1855, 0.35355338
        %v1861 = vsel %vm783, %v1857, -inf
        %1862 = vmax.xlane.f32.xlu0 %v1861
        %v1863 = vpop.xlane.xlu0 %1862
        %v1864 = vsel %vm783, %v1858, -inf
        %1865 = vmax.xlane.f32.xlu0 %v1864
        %v1866 = vpop.xlane.xlu0 %1865
        %v1867 = vsel %vm783, %v1859, -inf
        %1868 = vmax.xlane.f32.xlu0 %v1867
        %v1869 = vpop.xlane.xlu0 %1868
        %v1870 = vsel %vm783, %v1860, -inf
        %1871 = vmax.xlane.f32.xlu0 %v1870
        %v1872 = vpop.xlane.xlu0 %1871
        %v1873 = vsub.f32 %v1857, %v1863
        %v1874 = vsub.f32 %v1858, %v1866
        %v1875 = vsub.f32 %v1859, %v1869
        %v1876 = vsub.f32 %v1860, %v1872
        %v1877 = vmul.f32 %v1873, 1.442695
        %v1878 = vpow.pop %v1877
        %v1879 = vmul.f32 %v1874, 1.442695
        %v1880 = vpow.pop %v1879
        %v1881 = vmul.f32 %v1875, 1.442695
        %v1882 = vpow.pop %v1881
        %v1883 = vmul.f32 %v1876, 1.442695
        %v1884 = vpow.pop %v1883
        %v1885 = vsel %vm783, %v1878, 0.0
        %1886 = vadd.xlane.f32.xlu0 %v1885
        %v1887 = vpop.xlane.xlu0 %1886
        %v1888 = vsel %vm783, %v1880, 0.0
        %1889 = vadd.xlane.f32.xlu0 %v1888
        %v1890 = vpop.xlane.xlu0 %1889
        %v1891 = vsel %vm783, %v1882, 0.0
        %1892 = vadd.xlane.f32.xlu0 %v1891
        %v1893 = vpop.xlane.xlu0 %1892
        %v1894 = vsel %vm783, %v1884, 0.0
        %1895 = vadd.xlane.f32.xlu0 %v1894
        %v1896 = vpop.xlane.xlu0 %1895
        %v1897 = vrcp.pop %v1887
        %v1898 = vrcp.pop %v1890
        %v1899 = vrcp.pop %v1893
        %v1900 = vrcp.pop %v1896
        %v1901 = vmul.f32 %v1878, %v1897
        %v1902 = vmul.f32 %v1880, %v1898
        %v1903 = vmul.f32 %v1882, %v1899
        %v1904 = vmul.f32 %v1884, %v1900
        %v1906 = vsel %vm783, %v1901, 0
        %v1909 = vsel %vm783, %v1902, 0
        %v1912 = vsel %vm783, %v1903, 0
        %v1915 = vsel %vm783, %v1904, 0
        %v1918 = vsel %vm840, %v1752, 0
        %1920 = vmatpush.msra.mxu0 0.0
        %1921 = vmatpush.msra.mxu0 0.0
        %1922 = vmatpush.msra.mxu0 0.0
        %1923 = vmatpush.msra.mxu0 0.0
        %1924 = vmatpush.msra.mxu0 0.0
        %1925 = vmatpush.msra.mxu0 0.0
        %1926 = vmatpush.msra.mxu0 0.0
        %1927 = vmatpush.msra.mxu0 0.0
        %1928 = vmatpush.msra.mxu0 0.0
        %1929 = vmatpush.msra.mxu0 0.0
        %1930 = vmatpush.msra.mxu0 0.0
        %1931 = vmatpush.msra.mxu0 0.0
        %1932 = vmatpush.msra.mxu0 0.0
        %1933 = vmatpush.msra.mxu0 0.0
        %1934 = vmatpush.msra.mxu0 0.0
        %1935 = vmatpush.msra.mxu0 %v1918
        %1936 = vmatmul.f32.gmra.mxu0 %v1906
        %v1937 = vpop.f32.mrf.mxu0
        %v1938 = vadd.f32 0.0, %v1937
        %1939 = vmatmul.f32.gmra.mxu0 %v1909
        %v1940 = vpop.f32.mrf.mxu0
        %v1941 = vadd.f32 0.0, %v1940
        %1942 = vmatmul.f32.gmra.mxu0 %v1912
        %v1943 = vpop.f32.mrf.mxu0
        %v1944 = vadd.f32 0.0, %v1943
        %1945 = vmatmul.f32.gmra.mxu0 %v1915
        %v1946 = vpop.f32.mrf.mxu0
        %v1947 = vadd.f32 0.0, %v1946
        %1948 = vdwg.mxu0
        %v1949 = vmul.f32 %v1938, %v347
        %v1950 = vmul.f32 %v1941, %v348
        %v1951 = vmul.f32 %v1944, %v349
        %v1952 = vmul.f32 %v1947, %v350
        %v1953 = vadd.f32 %v1949, %v1950
        %v1954 = vadd.f32 %v1953, %v1951
        %v1955 = vadd.f32 %v1954, %v1952
        %v1956 = vld [vmem:[%s6 + $0x2c] sm:$0x1]
        %v1957 = vperm.slane %v1956, 0
        %v1958 = vmul.f32 %v1957, %v1955
        %v1959 = vadd.f32 %v1723, %v1958
        %v1960 = vsel %vm613, %v1959, 0.0
        %1961 = vadd.xlane.f32.xlu0 %v1960
        %v1962 = vpop.xlane.xlu0 %1961
        %v1963 = vmul.f32 %v1959, %v1959
        %v1964 = vsel %vm613, %v1963, 0.0
        %1965 = vadd.xlane.f32.xlu0 %v1964
        %v1966 = vpop.xlane.xlu0 %1965
        %v1967 = vmul.f32 %v1962, 0.03125
        %v1968 = vmul.f32 %v1966, 0.03125
        %v1969 = vmul.f32 %v1967, %v1967
        %v1970 = vsub.f32 %v1968, %v1969
        %v1971 = vsub.f32 %v1959, %v1967
        %v1972 = vadd.f32 %v1970, 1e-05
        %v1973 = vrsqrt.pop %v1972
        %v1974 = vmul.f32 %v1973, %v1972
        %v1975 = vmul.f32 %v1974, %v1973
        %v1976 = vmul.f32 0.5, %v1975
        %v1977 = vsub.f32 1.5, %v1976
        %v1978 = vmul.f32 %v1973, %v1977
        %vm1979 = vweird.f32 %v1972
        %vm1980 = vweird.f32 %v1973
        %vm1981 = vmor %vm1979, %vm1980
        %v1982 = vsel %vm1981, %v1973, %v1978
        %v1983 = vmul.f32 %v1971, %v1982
        %v1984 = vld [vmem:[%s6 + $0x27] sm:$0x1]
        %v1985 = vperm.slane %v1984, 0
        %v1986 = vmul.f32 %v1983, %v1985
        %v1987 = vld [vmem:[%s6 + $0x28] sm:$0x1]
        %v1988 = vperm.slane %v1987, 0
        %v1989 = vadd.f32 %v1986, %v1988
        %s1990 = scalar_lea.vmem %s3, 64
        %v1991 = vld [vmem:[%s1990] sm:$0xff]
        %v1992 = vld [vmem:[%s1990 + $0x8] sm:$0xff]
        %v1993 = vld [vmem:[%s1990 + $0x10] sm:$0xff]
        %v1994 = vld [vmem:[%s1990 + $0x18] sm:$0xff]
        %v1995 = vld [vmem:[%s7 + $0x2] sm:$0x1]
        %v1996 = vperm.slane %v1995, 0
        %v1998 = vsel %vm431, %v1989, 0
        %2000 = vmatpush.msra.mxu0 0.0
        %2001 = vmatpush.msra.mxu0 0.0
        %2002 = vmatpush.msra.mxu0 0.0
        %2003 = vmatpush.msra.mxu0 0.0
        %2004 = vmatpush.msra.mxu0 0.0
        %2005 = vmatpush.msra.mxu0 0.0
        %2006 = vmatpush.msra.mxu0 0.0
        %2007 = vmatpush.msra.mxu0 0.0
        %2008 = vmatpush.msra.mxu0 0.0
        %2009 = vmatpush.msra.mxu0 0.0
        %2010 = vmatpush.msra.mxu0 0.0
        %2011 = vmatpush.msra.mxu0 0.0
        %2012 = vmatpush.msra.mxu0 %v1994
        %2013 = vmatpush.msra.mxu0 %v1993
        %2014 = vmatpush.msra.mxu0 %v1992
        %2015 = vmatpush.msra.mxu0 %v1991
        %2016 = vmatmul.f32.gmra.mxu0 %v1998
        %v2017 = vpop.f32.mrf.mxu0
        %v2018 = vadd.f32 %v1996, %v2017
        %2019 = vdwg.mxu0
        %v2020 = vmul.f32 %v2018, 0.5
        %v2021 = vmul.f32 %v2018, 0.044715
        %v2022 = vmul.f32 %v2021, %v2018
        %v2023 = vmul.f32 %v2022, %v2018
        %v2024 = vadd.f32 %v2018, %v2023
        %v2025 = vmul.f32 %v2024, 0.7978846
        %v2026 = vtanh.pop %v2025
        %v2027 = vadd.f32 %v2026, 1.0
        %v2028 = vmul.f32 %v2020, %v2027
        %s2029 = scalar_lea.vmem %s4, 256
        %v2030 = vld [vmem:[%s2029] sm:$0xff]
        %v2031 = vld [vmem:[%s2029 + $0x8] sm:$0xff]
        %v2032 = vld [vmem:[%s2029 + $0x10] sm:$0xff]
        %v2033 = vld [vmem:[%s2029 + $0x18] sm:$0xff]
        %v2034 = vld [vmem:[%s2029 + $0x20] sm:$0xff]
        %v2035 = vld [vmem:[%s2029 + $0x28] sm:$0xff]
        %v2036 = vld [vmem:[%s2029 + $0x30] sm:$0xff]
        %v2037 = vld [vmem:[%s2029 + $0x38] sm:$0xff]
        %v2038 = vld [vmem:[%s2029 + $0x40] sm:$0xff]
        %v2039 = vld [vmem:[%s2029 + $0x48] sm:$0xff]
        %v2040 = vld [vmem:[%s2029 + $0x50] sm:$0xff]
        %v2041 = vld [vmem:[%s2029 + $0x58] sm:$0xff]
        %v2042 = vld [vmem:[%s2029 + $0x60] sm:$0xff]
        %v2043 = vld [vmem:[%s2029 + $0x68] sm:$0xff]
        %v2044 = vld [vmem:[%s2029 + $0x70] sm:$0xff]
        %v2045 = vld [vmem:[%s2029 + $0x78] sm:$0xff]
        %v2046 = vld [vmem:[%s6 + $0x2b] sm:$0x1]
        %v2047 = vperm.slane %v2046, 0
        %2048 = vmatpush.msra.mxu0 %v2045
        %2049 = vmatpush.msra.mxu0 %v2044
        %2050 = vmatpush.msra.mxu0 %v2043
        %2051 = vmatpush.msra.mxu0 %v2042
        %2052 = vmatpush.msra.mxu0 %v2041
        %2053 = vmatpush.msra.mxu0 %v2040
        %2054 = vmatpush.msra.mxu0 %v2039
        %2055 = vmatpush.msra.mxu0 %v2038
        %2056 = vmatpush.msra.mxu0 %v2037
        %2057 = vmatpush.msra.mxu0 %v2036
        %2058 = vmatpush.msra.mxu0 %v2035
        %2059 = vmatpush.msra.mxu0 %v2034
        %2060 = vmatpush.msra.mxu0 %v2033
        %2061 = vmatpush.msra.mxu0 %v2032
        %2062 = vmatpush.msra.mxu0 %v2031
        %2063 = vmatpush.msra.mxu0 %v2030
        %2064 = vmatmul.f32.gmra.mxu0 %v2028
        %v2065 = vpop.f32.mrf.mxu0
        %v2066 = vadd.f32 %v2047, %v2065
        %2067 = vdwg.mxu0
        %v2068 = vld [vmem:[%s6 + $0x2d] sm:$0x1]
        %v2069 = vperm.slane %v2068, 0
        %v2070 = vmul.f32 %v2069, %v2066
        %v2071 = vadd.f32 %v1989, %v2070
        %v2072 = vsel %vm613, %v2071, 0.0
        %2073 = vadd.xlane.f32.xlu0 %v2072
        %v2074 = vpop.xlane.xlu0 %2073
        %v2075 = vmul.f32 %v2071, %v2071
        %v2076 = vsel %vm613, %v2075, 0.0
        %2077 = vadd.xlane.f32.xlu0 %v2076
        %v2078 = vpop.xlane.xlu0 %2077
        %v2079 = vmul.f32 %v2074, 0.03125
        %v2080 = vmul.f32 %v2078, 0.03125
        %v2081 = vmul.f32 %v2079, %v2079
        %v2082 = vsub.f32 %v2080, %v2081
        %v2083 = vsub.f32 %v2071, %v2079
        %v2084 = vadd.f32 %v2082, 1e-05
        %v2085 = vrsqrt.pop %v2084
        %v2086 = vmul.f32 %v2085, %v2084
        %v2087 = vmul.f32 %v2086, %v2085
        %v2088 = vmul.f32 0.5, %v2087
        %v2089 = vsub.f32 1.5, %v2088
        %v2090 = vmul.f32 %v2085, %v2089
        %vm2091 = vweird.f32 %v2084
        %vm2092 = vweird.f32 %v2085
        %vm2093 = vmor %vm2091, %vm2092
        %v2094 = vsel %vm2093, %v2085, %v2090
        %v2095 = vmul.f32 %v2083, %v2094
        %v2096 = vld [vmem:[%s6 + $0x29] sm:$0x1]
        %v2097 = vperm.slane %v2096, 0
        %v2098 = vmul.f32 %v2095, %v2097
        %v2099 = vld [vmem:[%s6 + $0x2a] sm:$0x1]
        %v2100 = vperm.slane %v2099, 0
        %v2101 = vadd.f32 %v2098, %v2100
        %s2102 = scalar_lea.vmem %s2, 832
        %v2103 = vld [vmem:[%s2102] sm:$0xff]
        %v2104 = vld [vmem:[%s2102 + $0x8] sm:$0xff]
        %v2105 = vld [vmem:[%s2102 + $0x10] sm:$0xff]
        %v2106 = vld [vmem:[%s2102 + $0x18] sm:$0xff]
        %v2107 = vld [vmem:[%s6 + $0x32] sm:$0x1]
        %v2108 = vperm.slane %v2107, 0
        %v2110 = vsel %vm431, %v2101, 0
        %2112 = vmatpush.msra.mxu0 0.0
        %2113 = vmatpush.msra.mxu0 0.0
        %2114 = vmatpush.msra.mxu0 0.0
        %2115 = vmatpush.msra.mxu0 0.0
        %2116 = vmatpush.msra.mxu0 0.0
        %2117 = vmatpush.msra.mxu0 0.0
        %2118 = vmatpush.msra.mxu0 0.0
        %2119 = vmatpush.msra.mxu0 0.0
        %2120 = vmatpush.msra.mxu0 0.0
        %2121 = vmatpush.msra.mxu0 0.0
        %2122 = vmatpush.msra.mxu0 0.0
        %2123 = vmatpush.msra.mxu0 0.0
        %2124 = vmatpush.msra.mxu0 %v2106
        %2125 = vmatpush.msra.mxu0 %v2105
        %2126 = vmatpush.msra.mxu0 %v2104
        %2127 = vmatpush.msra.mxu0 %v2103
        %2128 = vmatmul.f32.gmra.mxu0 %v2110
        %v2129 = vpop.f32.mrf.mxu0
        %v2130 = vadd.f32 %v2108, %v2129
        %2131 = vdwg.mxu0
        %s2132 = scalar_lea.vmem %s2, 768
        %v2133 = vld [vmem:[%s2132] sm:$0xff]
        %v2134 = vld [vmem:[%s2132 + $0x8] sm:$0xff]
        %v2135 = vld [vmem:[%s2132 + $0x10] sm:$0xff]
        %v2136 = vld [vmem:[%s2132 + $0x18] sm:$0xff]
        %v2137 = vld [vmem:[%s6 + $0x30] sm:$0x1]
        %v2138 = vperm.slane %v2137, 0
        %2139 = vmatpush.msra.mxu0 0.0
        %2140 = vmatpush.msra.mxu0 0.0
        %2141 = vmatpush.msra.mxu0 0.0
        %2142 = vmatpush.msra.mxu0 0.0
        %2143 = vmatpush.msra.mxu0 0.0
        %2144 = vmatpush.msra.mxu0 0.0
        %2145 = vmatpush.msra.mxu0 0.0
        %2146 = vmatpush.msra.mxu0 0.0
        %2147 = vmatpush.msra.mxu0 0.0
        %2148 = vmatpush.msra.mxu0 0.0
        %2149 = vmatpush.msra.mxu0 0.0
        %2150 = vmatpush.msra.mxu0 0.0
        %2151 = vmatpush.msra.mxu0 %v2136
        %2152 = vmatpush.msra.mxu0 %v2135
        %2153 = vmatpush.msra.mxu0 %v2134
        %2154 = vmatpush.msra.mxu0 %v2133
        %2155 = vmatmul.f32.gmra.mxu0 %v2110
        %v2156 = vpop.f32.mrf.mxu0
        %v2157 = vadd.f32 %v2138, %v2156
        %2158 = vdwg.mxu0
        %s2159 = scalar_lea.vmem %s2, 800
        %v2160 = vld [vmem:[%s2159] sm:$0xff]
        %v2161 = vld [vmem:[%s2159 + $0x8] sm:$0xff]
        %v2162 = vld [vmem:[%s2159 + $0x10] sm:$0xff]
        %v2163 = vld [vmem:[%s2159 + $0x18] sm:$0xff]
        %v2164 = vld [vmem:[%s6 + $0x31] sm:$0x1]
        %v2165 = vperm.slane %v2164, 0
        %2166 = vmatpush.msra.mxu0 0.0
        %2167 = vmatpush.msra.mxu0 0.0
        %2168 = vmatpush.msra.mxu0 0.0
        %2169 = vmatpush.msra.mxu0 0.0
        %2170 = vmatpush.msra.mxu0 0.0
        %2171 = vmatpush.msra.mxu0 0.0
        %2172 = vmatpush.msra.mxu0 0.0
        %2173 = vmatpush.msra.mxu0 0.0
        %2174 = vmatpush.msra.mxu0 0.0
        %2175 = vmatpush.msra.mxu0 0.0
        %2176 = vmatpush.msra.mxu0 0.0
        %2177 = vmatpush.msra.mxu0 0.0
        %2178 = vmatpush.msra.mxu0 %v2163
        %2179 = vmatpush.msra.mxu0 %v2162
        %2180 = vmatpush.msra.mxu0 %v2161
        %2181 = vmatpush.msra.mxu0 %v2160
        %2182 = vmatmul.f32.gmra.mxu0 %v2110
        %v2183 = vpop.f32.mrf.mxu0
        %v2184 = vadd.f32 %v2165, %v2183
        %2185 = vdwg.mxu0
        %v2186 = vsel %vm840, %v2157, 0.0
        %v2187 = vmul.f32 %v2186, %v347
        %v2188 = vmul.f32 %v2186, %v348
        %v2189 = vmul.f32 %v2186, %v349
        %v2190 = vmul.f32 %v2186, %v350
        %v2192 = vsel %vm431, %v2187, 0
        %v2195 = vsel %vm431, %v2188, 0
        %v2198 = vsel %vm431, %v2189, 0
        %v2201 = vsel %vm431, %v2190, 0
        %v2204 = vsel %vm431, %v2184, 0
        %2206 = vmatpush.xpose.msra.mxu0 0.0
        %2207 = vmatpush.xpose.msra.mxu0 0.0
        %2208 = vmatpush.xpose.msra.mxu0 0.0
        %2209 = vmatpush.xpose.msra.mxu0 0.0
        %2210 = vmatpush.xpose.msra.mxu0 0.0
        %2211 = vmatpush.xpose.msra.mxu0 0.0
        %2212 = vmatpush.xpose.msra.mxu0 0.0
        %2213 = vmatpush.xpose.msra.mxu0 0.0
        %2214 = vmatpush.xpose.msra.mxu0 0.0
        %2215 = vmatpush.xpose.msra.mxu0 0.0
        %2216 = vmatpush.xpose.msra.mxu0 0.0
        %2217 = vmatpush.xpose.msra.mxu0 0.0
        %2218 = vmatpush.xpose.msra.mxu0 0.0
        %2219 = vmatpush.xpose.msra.mxu0 0.0
        %2220 = vmatpush.xpose.msra.mxu0 0.0
        %2221 = vmatpush.xpose.msra.mxu0 %v2204
        %2222 = vmatmul.f32.gmra.mxu0 %v2192
        %v2223 = vpop.f32.mrf.mxu0
        %v2224 = vadd.f32 0.0, %v2223
        %2225 = vmatmul.f32.gmra.mxu0 %v2195
        %v2226 = vpop.f32.mrf.mxu0
        %v2227 = vadd.f32 0.0, %v2226
        %2228 = vmatmul.f32.gmra.mxu0 %v2198
        %v2229 = vpop.f32.mrf.mxu0
        %v2230 = vadd.f32 0.0, %v2229
        %2231 = vmatmul.f32.gmra.mxu0 %v2201
        %v2232 = vpop.f32.mrf.mxu0
        %v2233 = vadd.f32 0.0, %v2232
        %2234 = vdwg.mxu0
        %v2235 = vmul.f32 %v2224, 0.35355338
        %v2236 = vmul.f32 %v2227, 0.35355338
        %v2237 = vmul.f32 %v2230, 0.35355338
        %v2238 = vmul.f32 %v2233, 0.35355338
        %v2239 = vsel %vm783, %v2235, -inf
        %2240 = vmax.xlane.f32.xlu0 %v2239
        %v2241 = vpop.xlane.xlu0 %2240
        %v2242 = vsel %vm783, %v2236, -inf
        %2243 = vmax.xlane.f32.xlu0 %v2242
        %v2244 = vpop.xlane.xlu0 %2243
        %v2245 = vsel %vm783, %v2237, -inf
        %2246 = vmax.xlane.f32.xlu0 %v2245
        %v2247 = vpop.xlane.xlu0 %2246
        %v2248 = vsel %vm783, %v2238, -inf
        %2249 = vmax.xlane.f32.xlu0 %v2248
        %v2250 = vpop.xlane.xlu0 %2249
        %v2251 = vsub.f32 %v2235, %v2241
        %v2252 = vsub.f32 %v2236, %v2244
        %v2253 = vsub.f32 %v2237, %v2247
        %v2254 = vsub.f32 %v2238, %v2250
        %v2255 = vmul.f32 %v2251, 1.442695
        %v2256 = vpow.pop %v2255
        %v2257 = vmul.f32 %v2252, 1.442695
        %v2258 = vpow.pop %v2257
        %v2259 = vmul.f32 %v2253, 1.442695
        %v2260 = vpow.pop %v2259
        %v2261 = vmul.f32 %v2254, 1.442695
        %v2262 = vpow.pop %v2261
        %v2263 = vsel %vm783, %v2256, 0.0
        %2264 = vadd.xlane.f32.xlu0 %v2263
        %v2265 = vpop.xlane.xlu0 %2264
        %v2266 = vsel %vm783, %v2258, 0.0
        %2267 = vadd.xlane.f32.xlu0 %v2266
        %v2268 = vpop.xlane.xlu0 %2267
        %v2269 = vsel %vm783, %v2260, 0.0
        %2270 = vadd.xlane.f32.xlu0 %v2269
        %v2271 = vpop.xlane.xlu0 %2270
        %v2272 = vsel %vm783, %v2262, 0.0
        %2273 = vadd.xlane.f32.xlu0 %v2272
        %v2274 = vpop.xlane.xlu0 %2273
        %v2275 = vrcp.pop %v2265
        %v2276 = vrcp.pop %v2268
        %v2277 = vrcp.pop %v2271
        %v2278 = vrcp.pop %v2274
        %v2279 = vmul.f32 %v2256, %v2275
        %v2280 = vmul.f32 %v2258, %v2276
        %v2281 = vmul.f32 %v2260, %v2277
        %v2282 = vmul.f32 %v2262, %v2278
        %v2284 = vsel %vm783, %v2279, 0
        %v2287 = vsel %vm783, %v2280, 0
        %v2290 = vsel %vm783, %v2281, 0
        %v2293 = vsel %vm783, %v2282, 0
        %v2296 = vsel %vm840, %v2130, 0
        %2298 = vmatpush.msra.mxu0 0.0
        %2299 = vmatpush.msra.mxu0 0.0
        %2300 = vmatpush.msra.mxu0 0.0
        %2301 = vmatpush.msra.mxu0 0.0
        %2302 = vmatpush.msra.mxu0 0.0
        %2303 = vmatpush.msra.mxu0 0.0
        %2304 = vmatpush.msra.mxu0 0.0
        %2305 = vmatpush.msra.mxu0 0.0
        %2306 = vmatpush.msra.mxu0 0.0
        %2307 = vmatpush.msra.mxu0 0.0
        %2308 = vmatpush.msra.mxu0 0.0
        %2309 = vmatpush.msra.mxu0 0.0
        %2310 = vmatpush.msra.mxu0 0.0
        %2311 = vmatpush.msra.mxu0 0.0
        %2312 = vmatpush.msra.mxu0 0.0
        %2313 = vmatpush.msra.mxu0 %v2296
        %2314 = vmatmul.f32.gmra.mxu0 %v2284
        %v2315 = vpop.f32.mrf.mxu0
        %v2316 = vadd.f32 0.0, %v2315
        %2317 = vmatmul.f32.gmra.mxu0 %v2287
        %v2318 = vpop.f32.mrf.mxu0
        %v2319 = vadd.f32 0.0, %v2318
        %2320 = vmatmul.f32.gmra.mxu0 %v2290
        %v2321 = vpop.f32.mrf.mxu0
        %v2322 = vadd.f32 0.0, %v2321
        %2323 = vmatmul.f32.gmra.mxu0 %v2293
        %v2324 = vpop.f32.mrf.mxu0
        %v2325 = vadd.f32 0.0, %v2324
        %2326 = vdwg.mxu0
        %v2327 = vmul.f32 %v2316, %v347
        %v2328 = vmul.f32 %v2319, %v348
        %v2329 = vmul.f32 %v2322, %v349
        %v2330 = vmul.f32 %v2325, %v350
        %v2331 = vadd.f32 %v2327, %v2328
        %v2332 = vadd.f32 %v2331, %v2329
        %v2333 = vadd.f32 %v2332, %v2330
        %v2334 = vld [vmem:[%s6 + $0x38] sm:$0x1]
        %v2335 = vperm.slane %v2334, 0
        %v2336 = vmul.f32 %v2335, %v2333
        %v2337 = vadd.f32 %v2101, %v2336
        %v2338 = vsel %vm613, %v2337, 0.0
        %2339 = vadd.xlane.f32.xlu0 %v2338
        %v2340 = vpop.xlane.xlu0 %2339
        %v2341 = vmul.f32 %v2337, %v2337
        %v2342 = vsel %vm613, %v2341, 0.0
        %2343 = vadd.xlane.f32.xlu0 %v2342
        %v2344 = vpop.xlane.xlu0 %2343
        %v2345 = vmul.f32 %v2340, 0.03125
        %v2346 = vmul.f32 %v2344, 0.03125
        %v2347 = vmul.f32 %v2345, %v2345
        %v2348 = vsub.f32 %v2346, %v2347
        %v2349 = vsub.f32 %v2337, %v2345
        %v2350 = vadd.f32 %v2348, 1e-05
        %v2351 = vrsqrt.pop %v2350
        %v2352 = vmul.f32 %v2351, %v2350
        %v2353 = vmul.f32 %v2352, %v2351
        %v2354 = vmul.f32 0.5, %v2353
        %v2355 = vsub.f32 1.5, %v2354
        %v2356 = vmul.f32 %v2351, %v2355
        %vm2357 = vweird.f32 %v2350
        %vm2358 = vweird.f32 %v2351
        %vm2359 = vmor %vm2357, %vm2358
        %v2360 = vsel %vm2359, %v2351, %v2356
        %v2361 = vmul.f32 %v2349, %v2360
        %v2362 = vld [vmem:[%s6 + $0x33] sm:$0x1]
        %v2363 = vperm.slane %v2362, 0
        %v2364 = vmul.f32 %v2361, %v2363
        %v2365 = vld [vmem:[%s6 + $0x34] sm:$0x1]
        %v2366 = vperm.slane %v2365, 0
        %v2367 = vadd.f32 %v2364, %v2366
        %s2368 = scalar_lea.vmem %s3, 96
        %v2369 = vld [vmem:[%s2368] sm:$0xff]
        %v2370 = vld [vmem:[%s2368 + $0x8] sm:$0xff]
        %v2371 = vld [vmem:[%s2368 + $0x10] sm:$0xff]
        %v2372 = vld [vmem:[%s2368 + $0x18] sm:$0xff]
        %v2373 = vld [vmem:[%s7 + $0x3] sm:$0x1]
        %v2374 = vperm.slane %v2373, 0
        %v2376 = vsel %vm431, %v2367, 0
        %2378 = vmatpush.msra.mxu0 0.0
        %2379 = vmatpush.msra.mxu0 0.0
        %2380 = vmatpush.msra.mxu0 0.0
        %2381 = vmatpush.msra.mxu0 0.0
        %2382 = vmatpush.msra.mxu0 0.0
        %2383 = vmatpush.msra.mxu0 0.0
        %2384 = vmatpush.msra.mxu0 0.0
        %2385 = vmatpush.msra.mxu0 0.0
        %2386 = vmatpush.msra.mxu0 0.0
        %2387 = vmatpush.msra.mxu0 0.0
        %2388 = vmatpush.msra.mxu0 0.0
        %2389 = vmatpush.msra.mxu0 0.0
        %2390 = vmatpush.msra.mxu0 %v2372
        %2391 = vmatpush.msra.mxu0 %v2371
        %2392 = vmatpush.msra.mxu0 %v2370
        %2393 = vmatpush.msra.mxu0 %v2369
        %2394 = vmatmul.f32.gmra.mxu0 %v2376
        %v2395 = vpop.f32.mrf.mxu0
        %v2396 = vadd.f32 %v2374, %v2395
        %2397 = vdwg.mxu0
        %v2398 = vmul.f32 %v2396, 0.5
        %v2399 = vmul.f32 %v2396, 0.044715
        %v2400 = vmul.f32 %v2399, %v2396
        %v2401 = vmul.f32 %v2400, %v2396
        %v2402 = vadd.f32 %v2396, %v2401
        %v2403 = vmul.f32 %v2402, 0.7978846
        %v2404 = vtanh.pop %v2403
        %v2405 = vadd.f32 %v2404, 1.0
        %v2406 = vmul.f32 %v2398, %v2405
        %s2407 = scalar_lea.vmem %s4, 384
        %v2408 = vld [vmem:[%s2407] sm:$0xff]
        %v2409 = vld [vmem:[%s2407 + $0x8] sm:$0xff]
        %v2410 = vld [vmem:[%s2407 + $0x10] sm:$0xff]
        %v2411 = vld [vmem:[%s2407 + $0x18] sm:$0xff]
        %v2412 = vld [vmem:[%s2407 + $0x20] sm:$0xff]
        %v2413 = vld [vmem:[%s2407 + $0x28] sm:$0xff]
        %v2414 = vld [vmem:[%s2407 + $0x30] sm:$0xff]
        %v2415 = vld [vmem:[%s2407 + $0x38] sm:$0xff]
        %v2416 = vld [vmem:[%s2407 + $0x40] sm:$0xff]
        %v2417 = vld [vmem:[%s2407 + $0x48] sm:$0xff]
        %v2418 = vld [vmem:[%s2407 + $0x50] sm:$0xff]
        %v2419 = vld [vmem:[%s2407 + $0x58] sm:$0xff]
        %v2420 = vld [vmem:[%s2407 + $0x60] sm:$0xff]
        %v2421 = vld [vmem:[%s2407 + $0x68] sm:$0xff]
        %v2422 = vld [vmem:[%s2407 + $0x70] sm:$0xff]
        %v2423 = vld [vmem:[%s2407 + $0x78] sm:$0xff]
        %v2424 = vld [vmem:[%s6 + $0x37] sm:$0x1]
        %v2425 = vperm.slane %v2424, 0
        %2426 = vmatpush.msra.mxu0 %v2423
        %2427 = vmatpush.msra.mxu0 %v2422
        %2428 = vmatpush.msra.mxu0 %v2421
        %2429 = vmatpush.msra.mxu0 %v2420
        %2430 = vmatpush.msra.mxu0 %v2419
        %2431 = vmatpush.msra.mxu0 %v2418
        %2432 = vmatpush.msra.mxu0 %v2417
        %2433 = vmatpush.msra.mxu0 %v2416
        %2434 = vmatpush.msra.mxu0 %v2415
        %2435 = vmatpush.msra.mxu0 %v2414
        %2436 = vmatpush.msra.mxu0 %v2413
        %2437 = vmatpush.msra.mxu0 %v2412
        %2438 = vmatpush.msra.mxu0 %v2411
        %2439 = vmatpush.msra.mxu0 %v2410
        %2440 = vmatpush.msra.mxu0 %v2409
        %2441 = vmatpush.msra.mxu0 %v2408
        %2442 = vmatmul.f32.gmra.mxu0 %v2406
        %v2443 = vpop.f32.mrf.mxu0
        %v2444 = vadd.f32 %v2425, %v2443
        %2445 = vdwg.mxu0
        %v2446 = vld [vmem:[%s6 + $0x39] sm:$0x1]
        %v2447 = vperm.slane %v2446, 0
        %v2448 = vmul.f32 %v2447, %v2444
        %v2449 = vadd.f32 %v2367, %v2448
        %v2450 = vsel %vm613, %v2449, 0.0
        %2451 = vadd.xlane.f32.xlu0 %v2450
        %v2452 = vpop.xlane.xlu0 %2451
        %v2453 = vmul.f32 %v2449, %v2449
        %v2454 = vsel %vm613, %v2453, 0.0
        %2455 = vadd.xlane.f32.xlu0 %v2454
        %v2456 = vpop.xlane.xlu0 %2455
        %v2457 = vmul.f32 %v2452, 0.03125
        %v2458 = vmul.f32 %v2456, 0.03125
        %v2459 = vmul.f32 %v2457, %v2457
        %v2460 = vsub.f32 %v2458, %v2459
        %v2461 = vsub.f32 %v2449, %v2457
        %v2462 = vadd.f32 %v2460, 1e-05
        %v2463 = vrsqrt.pop %v2462
        %v2464 = vmul.f32 %v2463, %v2462
        %v2465 = vmul.f32 %v2464, %v2463
        %v2466 = vmul.f32 0.5, %v2465
        %v2467 = vsub.f32 1.5, %v2466
        %v2468 = vmul.f32 %v2463, %v2467
        %vm2469 = vweird.f32 %v2462
        %vm2470 = vweird.f32 %v2463
        %vm2471 = vmor %vm2469, %vm2470
        %v2472 = vsel %vm2471, %v2463, %v2468
        %v2473 = vmul.f32 %v2461, %v2472
        %v2474 = vld [vmem:[%s6 + $0x35] sm:$0x1]
        %v2475 = vperm.slane %v2474, 0
        %v2476 = vmul.f32 %v2473, %v2475
        %v2477 = vld [vmem:[%s6 + $0x36] sm:$0x1]
        %v2478 = vperm.slane %v2477, 0
        %v2479 = vadd.f32 %v2476, %v2478
        %s2480 = scalar_lea.vmem %s1, 128
        %v2481 = vld [vmem:[%s2480] sm:$0xff]
        %v2482 = vld [vmem:[%s2480 + $0x8] sm:$0xff]
        %v2483 = vld [vmem:[%s2480 + $0x10] sm:$0xff]
        %v2484 = vld [vmem:[%s2480 + $0x18] sm:$0xff]
        %v2485 = vld [vmem:[%s2480 + $0x20] sm:$0xff]
        %v2486 = vld [vmem:[%s2480 + $0x28] sm:$0xff]
        %v2487 = vld [vmem:[%s2480 + $0x30] sm:$0xff]
        %v2488 = vld [vmem:[%s2480 + $0x38] sm:$0xff]
        %v2490 = vrot.slane %v2479, 1
        %v2491 = vsel %vm431, %v2490, 0
        %2493 = vmatpush.msra.mxu0 0.0
        %2494 = vmatpush.msra.mxu0 0.0
        %2495 = vmatpush.msra.mxu0 0.0
        %2496 = vmatpush.msra.mxu0 0.0
        %2497 = vmatpush.msra.mxu0 0.0
        %2498 = vmatpush.msra.mxu0 0.0
        %2499 = vmatpush.msra.mxu0 0.0
        %2500 = vmatpush.msra.mxu0 0.0
        %2501 = vmatpush.msra.mxu0 0.0
        %2502 = vmatpush.msra.mxu0 0.0
        %2503 = vmatpush.msra.mxu0 0.0
        %2504 = vmatpush.msra.mxu0 0.0
        %2505 = vmatpush.msra.mxu0 %v2488
        %2506 = vmatpush.msra.mxu0 %v2487
        %2507 = vmatpush.msra.mxu0 %v2486
        %2508 = vmatpush.msra.mxu0 %v2485
        %2509 = vmatmul.f32.gmra.mxu0 %v2491
        %v2510 = vpop.f32.mrf.mxu0
        %v2511 = vadd.f32 0.0, %v2510
        %2512 = vdwg.mxu0
        %v2513 = vsel %vm431, %v2479, 0
        %2515 = vmatpush.msra.mxu0 0.0
        %2516 = vmatpush.msra.mxu0 0.0
        %2517 = vmatpush.msra.mxu0 0.0
        %2518 = vmatpush.msra.mxu0 0.0
        %2519 = vmatpush.msra.mxu0 0.0
        %2520 = vmatpush.msra.mxu0 0.0
        %2521 = vmatpush.msra.mxu0 0.0
        %2522 = vmatpush.msra.mxu0 0.0
        %2523 = vmatpush.msra.mxu0 0.0
        %2524 = vmatpush.msra.mxu0 0.0
        %2525 = vmatpush.msra.mxu0 0.0
        %2526 = vmatpush.msra.mxu0 0.0
        %2527 = vmatpush.msra.mxu0 %v2484
        %2528 = vmatpush.msra.mxu0 %v2483
        %2529 = vmatpush.msra.mxu0 %v2482
        %2530 = vmatpush.msra.mxu0 %v2481
        %2531 = vmatmul.f32.gmra.mxu0 %v2513
        %v2532 = vpop.f32.mrf.mxu0
        %v2533 = vadd.f32 %v2511, %v2532
        %2534 = vdwg.mxu0
        %v2535 = vld [vmem:[%s6 + $0x8] sm:$0x1]
        %v2536 = vadd.f32 %v2533, %v2535
        %vm2537 = vcmask 253952
        %v2538 = vsel %vm2537, %v2536, 0.0
        %2539 = vadd.xlane.f32.xlu0 %v2538
        %v2540 = vpop.xlane.xlu0 %2539
        %v2541 = vmul.f32 %v2536, %v2536
        %v2542 = vsel %vm2537, %v2541, 0.0
        %2543 = vadd.xlane.f32.xlu0 %v2542
        %v2544 = vpop.xlane.xlu0 %2543
        %v2545 = vmul.f32 %v2540, 0.03125
        %v2546 = vmul.f32 %v2544, 0.03125
        %v2547 = vmul.f32 %v2545, %v2545
        %v2548 = vsub.f32 %v2546, %v2547
        %v2549 = vsub.f32 %v2536, %v2545
        %v2550 = vadd.f32 %v2548, 1e-05
        %v2551 = vrsqrt.pop %v2550
        %v2552 = vmul.f32 %v2551, %v2550
        %v2553 = vmul.f32 %v2552, %v2551
        %v2554 = vmul.f32 0.5, %v2553
        %v2555 = vsub.f32 1.5, %v2554
        %v2556 = vmul.f32 %v2551, %v2555
        %vm2557 = vweird.f32 %v2550
        %vm2558 = vweird.f32 %v2551
        %vm2559 = vmor %vm2557, %vm2558
        %v2560 = vsel %vm2559, %v2551, %v2556
        %v2561 = vmul.f32 %v2549, %v2560
        %v2562 = vld [vmem:[%s6 + $0x9] sm:$0x1]
        %v2563 = vmul.f32 %v2561, %v2562
        %v2564 = vld [vmem:[%s6 + $0xa] sm:$0x1]
        %v2565 = vadd.f32 %v2563, %v2564
        %s2566 = scalar_lea.vmem %s2, 384
        %v2567 = vld [vmem:[%s2566] sm:$0xff]
        %v2568 = vld [vmem:[%s2566 + $0x8] sm:$0xff]
        %v2569 = vld [vmem:[%s2566 + $0x10] sm:$0xff]
        %v2570 = vld [vmem:[%s2566 + $0x18] sm:$0xff]
        %v2571 = vld [vmem:[%s6 + $0xb] sm:$0x1]
        %v2573 = vsel %vm431, %v2565, 0
        %2575 = vmatpush.msra.mxu0 0.0
        %2576 = vmatpush.msra.mxu0 0.0
        %2577 = vmatpush.msra.mxu0 0.0
        %2578 = vmatpush.msra.mxu0 0.0
        %2579 = vmatpush.msra.mxu0 0.0
        %2580 = vmatpush.msra.mxu0 0.0
        %2581 = vmatpush.msra.mxu0 0.0
        %2582 = vmatpush.msra.mxu0 0.0
        %2583 = vmatpush.msra.mxu0 0.0
        %2584 = vmatpush.msra.mxu0 0.0
        %2585 = vmatpush.msra.mxu0 0.0
        %2586 = vmatpush.msra.mxu0 0.0
        %2587 = vmatpush.msra.mxu0 %v2570
        %2588 = vmatpush.msra.mxu0 %v2569
        %2589 = vmatpush.msra.mxu0 %v2568
        %2590 = vmatpush.msra.mxu0 %v2567
        %2591 = vmatmul.f32.gmra.mxu0 %v2573
        %v2592 = vpop.f32.mrf.mxu0
        %v2593 = vadd.f32 %v2571, %v2592
        %2594 = vdwg.mxu0
        %v2595 = vadd.f32 %v2565, %v2593
        %s2596 = scalar_lea.vmem %s2, 928
        %v2597 = vld [vmem:[%s2596] sm:$0xff]
        %v2598 = vld [vmem:[%s2596 + $0x8] sm:$0xff]
        %v2599 = vld [vmem:[%s2596 + $0x10] sm:$0xff]
        %v2600 = vld [vmem:[%s2596 + $0x18] sm:$0xff]
        %v2601 = vld [vmem:[%s6 + $0x3e] sm:$0x1]
        %v2603 = vsel %vm431, %v2595, 0
        %2605 = vmatpush.msra.mxu0 0.0
        %2606 = vmatpush.msra.mxu0 0.0
        %2607 = vmatpush.msra.mxu0 0.0
        %2608 = vmatpush.msra.mxu0 0.0
        %2609 = vmatpush.msra.mxu0 0.0
        %2610 = vmatpush.msra.mxu0 0.0
        %2611 = vmatpush.msra.mxu0 0.0
        %2612 = vmatpush.msra.mxu0 0.0
        %2613 = vmatpush.msra.mxu0 0.0
        %2614 = vmatpush.msra.mxu0 0.0
        %2615 = vmatpush.msra.mxu0 0.0
        %2616 = vmatpush.msra.mxu0 0.0
        %2617 = vmatpush.msra.mxu0 %v2600
        %2618 = vmatpush.msra.mxu0 %v2599
        %2619 = vmatpush.msra.mxu0 %v2598
        %2620 = vmatpush.msra.mxu0 %v2597
        %2621 = vmatmul.f32.gmra.mxu0 %v2603
        %v2622 = vpop.f32.mrf.mxu0
        %v2623 = vadd.f32 %v2601, %v2622
        %2624 = vdwg.mxu0
        %v2625 = vld [vmem:[%s6 + $0x44] sm:$0x1]
        %v2626 = vmul.f32 %v2625, %v2623
        %v2627 = vadd.f32 %v2595, %v2626
        %v2628 = vsel %vm2537, %v2627, 0.0
        %2629 = vadd.xlane.f32.xlu0 %v2628
        %v2630 = vpop.xlane.xlu0 %2629
        %v2631 = vmul.f32 %v2627, %v2627
        %v2632 = vsel %vm2537, %v2631, 0.0
        %2633 = vadd.xlane.f32.xlu0 %v2632
        %v2634 = vpop.xlane.xlu0 %2633
        %v2635 = vmul.f32 %v2630, 0.03125
        %v2636 = vmul.f32 %v2634, 0.03125
        %v2637 = vmul.f32 %v2635, %v2635
        %v2638 = vsub.f32 %v2636, %v2637
        %v2639 = vsub.f32 %v2627, %v2635
        %v2640 = vadd.f32 %v2638, 1e-05
        %v2641 = vrsqrt.pop %v2640
        %v2642 = vmul.f32 %v2641, %v2640
        %v2643 = vmul.f32 %v2642, %v2641
        %v2644 = vmul.f32 0.5, %v2643
        %v2645 = vsub.f32 1.5, %v2644
        %v2646 = vmul.f32 %v2641, %v2645
        %vm2647 = vweird.f32 %v2640
        %vm2648 = vweird.f32 %v2641
        %vm2649 = vmor %vm2647, %vm2648
        %v2650 = vsel %vm2649, %v2641, %v2646
        %v2651 = vmul.f32 %v2639, %v2650
        %v2652 = vld [vmem:[%s6 + $0x3f] sm:$0x1]
        %v2653 = vmul.f32 %v2651, %v2652
        %v2654 = vld [vmem:[%s6 + $0x40] sm:$0x1]
        %v2655 = vadd.f32 %v2653, %v2654
        %s2656 = scalar_lea.vmem %s3, 128
        %v2657 = vld [vmem:[%s2656] sm:$0xff]
        %v2658 = vld [vmem:[%s2656 + $0x8] sm:$0xff]
        %v2659 = vld [vmem:[%s2656 + $0x10] sm:$0xff]
        %v2660 = vld [vmem:[%s2656 + $0x18] sm:$0xff]
        %v2661 = vld [vmem:[%s7 + $0x4] sm:$0x1]
        %v2663 = vsel %vm431, %v2655, 0
        %2665 = vmatpush.msra.mxu0 0.0
        %2666 = vmatpush.msra.mxu0 0.0
        %2667 = vmatpush.msra.mxu0 0.0
        %2668 = vmatpush.msra.mxu0 0.0
        %2669 = vmatpush.msra.mxu0 0.0
        %2670 = vmatpush.msra.mxu0 0.0
        %2671 = vmatpush.msra.mxu0 0.0
        %2672 = vmatpush.msra.mxu0 0.0
        %2673 = vmatpush.msra.mxu0 0.0
        %2674 = vmatpush.msra.mxu0 0.0
        %2675 = vmatpush.msra.mxu0 0.0
        %2676 = vmatpush.msra.mxu0 0.0
        %2677 = vmatpush.msra.mxu0 %v2660
        %2678 = vmatpush.msra.mxu0 %v2659
        %2679 = vmatpush.msra.mxu0 %v2658
        %2680 = vmatpush.msra.mxu0 %v2657
        %2681 = vmatmul.f32.gmra.mxu0 %v2663
        %v2682 = vpop.f32.mrf.mxu0
        %v2683 = vadd.f32 %v2661, %v2682
        %2684 = vdwg.mxu0
        %v2685 = vmul.f32 %v2683, 0.5
        %v2686 = vmul.f32 %v2683, 0.044715
        %v2687 = vmul.f32 %v2686, %v2683
        %v2688 = vmul.f32 %v2687, %v2683
        %v2689 = vadd.f32 %v2683, %v2688
        %v2690 = vmul.f32 %v2689, 0.7978846
        %v2691 = vtanh.pop %v2690
        %v2692 = vadd.f32 %v2691, 1.0
        %v2693 = vmul.f32 %v2685, %v2692
        %s2694 = scalar_lea.vmem %s4, 512
        %v2695 = vld [vmem:[%s2694] sm:$0xff]
        %v2696 = vld [vmem:[%s2694 + $0x8] sm:$0xff]
        %v2697 = vld [vmem:[%s2694 + $0x10] sm:$0xff]
        %v2698 = vld [vmem:[%s2694 + $0x18] sm:$0xff]
        %v2699 = vld [vmem:[%s2694 + $0x20] sm:$0xff]
        %v2700 = vld [vmem:[%s2694 + $0x28] sm:$0xff]
        %v2701 = vld [vmem:[%s2694 + $0x30] sm:$0xff]
        %v2702 = vld [vmem:[%s2694 + $0x38] sm:$0xff]
        %v2703 = vld [vmem:[%s2694 + $0x40] sm:$0xff]
        %v2704 = vld [vmem:[%s2694 + $0x48] sm:$0xff]
        %v2705 = vld [vmem:[%s2694 + $0x50] sm:$0xff]
        %v2706 = vld [vmem:[%s2694 + $0x58] sm:$0xff]
        %v2707 = vld [vmem:[%s2694 + $0x60] sm:$0xff]
        %v2708 = vld [vmem:[%s2694 + $0x68] sm:$0xff]
        %v2709 = vld [vmem:[%s2694 + $0x70] sm:$0xff]
        %v2710 = vld [vmem:[%s2694 + $0x78] sm:$0xff]
        %v2711 = vld [vmem:[%s6 + $0x43] sm:$0x1]
        %2712 = vmatpush.msra.mxu0 %v2710
        %2713 = vmatpush.msra.mxu0 %v2709
        %2714 = vmatpush.msra.mxu0 %v2708
        %2715 = vmatpush.msra.mxu0 %v2707
        %2716 = vmatpush.msra.mxu0 %v2706
        %2717 = vmatpush.msra.mxu0 %v2705
        %2718 = vmatpush.msra.mxu0 %v2704
        %2719 = vmatpush.msra.mxu0 %v2703
        %2720 = vmatpush.msra.mxu0 %v2702
        %2721 = vmatpush.msra.mxu0 %v2701
        %2722 = vmatpush.msra.mxu0 %v2700
        %2723 = vmatpush.msra.mxu0 %v2699
        %2724 = vmatpush.msra.mxu0 %v2698
        %2725 = vmatpush.msra.mxu0 %v2697
        %2726 = vmatpush.msra.mxu0 %v2696
        %2727 = vmatpush.msra.mxu0 %v2695
        %2728 = vmatmul.f32.gmra.mxu0 %v2693
        %v2729 = vpop.f32.mrf.mxu0
        %v2730 = vadd.f32 %v2711, %v2729
        %2731 = vdwg.mxu0
        %v2732 = vld [vmem:[%s6 + $0x45] sm:$0x1]
        %v2733 = vmul.f32 %v2732, %v2730
        %v2734 = vadd.f32 %v2655, %v2733
        %v2735 = vsel %vm2537, %v2734, 0.0
        %2736 = vadd.xlane.f32.xlu0 %v2735
        %v2737 = vpop.xlane.xlu0 %2736
        %v2738 = vmul.f32 %v2734, %v2734
        %v2739 = vsel %vm2537, %v2738, 0.0
        %2740 = vadd.xlane.f32.xlu0 %v2739
        %v2741 = vpop.xlane.xlu0 %2740
        %v2742 = vmul.f32 %v2737, 0.03125
        %v2743 = vmul.f32 %v2741, 0.03125
        %v2744 = vmul.f32 %v2742, %v2742
        %v2745 = vsub.f32 %v2743, %v2744
        %v2746 = vsub.f32 %v2734, %v2742
        %v2747 = vadd.f32 %v2745, 1e-05
        %v2748 = vrsqrt.pop %v2747
        %v2749 = vmul.f32 %v2748, %v2747
        %v2750 = vmul.f32 %v2749, %v2748
        %v2751 = vmul.f32 0.5, %v2750
        %v2752 = vsub.f32 1.5, %v2751
        %v2753 = vmul.f32 %v2748, %v2752
        %vm2754 = vweird.f32 %v2747
        %vm2755 = vweird.f32 %v2748
        %vm2756 = vmor %vm2754, %vm2755
        %v2757 = vsel %vm2756, %v2748, %v2753
        %v2758 = vmul.f32 %v2746, %v2757
        %v2759 = vld [vmem:[%s6 + $0x41] sm:$0x1]
        %v2760 = vmul.f32 %v2758, %v2759
        %v2761 = vld [vmem:[%s6 + $0x42] sm:$0x1]
        %v2762 = vadd.f32 %v2760, %v2761
        %s2763 = scalar_lea.vmem %s2, 1024
        %v2764 = vld [vmem:[%s2763] sm:$0xff]
        %v2765 = vld [vmem:[%s2763 + $0x8] sm:$0xff]
        %v2766 = vld [vmem:[%s2763 + $0x10] sm:$0xff]
        %v2767 = vld [vmem:[%s2763 + $0x18] sm:$0xff]
        %v2768 = vld [vmem:[%s6 + $0x4a] sm:$0x1]
        %v2770 = vsel %vm431, %v2762, 0
        %2772 = vmatpush.msra.mxu0 0.0
        %2773 = vmatpush.msra.mxu0 0.0
        %2774 = vmatpush.msra.mxu0 0.0
        %2775 = vmatpush.msra.mxu0 0.0
        %2776 = vmatpush.msra.mxu0 0.0
        %2777 = vmatpush.msra.mxu0 0.0
        %2778 = vmatpush.msra.mxu0 0.0
        %2779 = vmatpush.msra.mxu0 0.0
        %2780 = vmatpush.msra.mxu0 0.0
        %2781 = vmatpush.msra.mxu0 0.0
        %2782 = vmatpush.msra.mxu0 0.0
        %2783 = vmatpush.msra.mxu0 0.0
        %2784 = vmatpush.msra.mxu0 %v2767
        %2785 = vmatpush.msra.mxu0 %v2766
        %2786 = vmatpush.msra.mxu0 %v2765
        %2787 = vmatpush.msra.mxu0 %v2764
        %2788 = vmatmul.f32.gmra.mxu0 %v2770
        %v2789 = vpop.f32.mrf.mxu0
        %v2790 = vadd.f32 %v2768, %v2789
        %2791 = vdwg.mxu0
        %v2792 = vld [vmem:[%s6 + $0x50] sm:$0x1]
        %v2793 = vmul.f32 %v2792, %v2790
        %v2794 = vadd.f32 %v2762, %v2793
        %v2795 = vsel %vm2537, %v2794, 0.0
        %2796 = vadd.xlane.f32.xlu0 %v2795
        %v2797 = vpop.xlane.xlu0 %2796
        %v2798 = vmul.f32 %v2794, %v2794
        %v2799 = vsel %vm2537, %v2798, 0.0
        %2800 = vadd.xlane.f32.xlu0 %v2799
        %v2801 = vpop.xlane.xlu0 %2800
        %v2802 = vmul.f32 %v2797, 0.03125
        %v2803 = vmul.f32 %v2801, 0.03125
        %v2804 = vmul.f32 %v2802, %v2802
        %v2805 = vsub.f32 %v2803, %v2804
        %v2806 = vsub.f32 %v2794, %v2802
        %v2807 = vadd.f32 %v2805, 1e-05
        %v2808 = vrsqrt.pop %v2807
        %v2809 = vmul.f32 %v2808, %v2807
        %v2810 = vmul.f32 %v2809, %v2808
        %v2811 = vmul.f32 0.5, %v2810
        %v2812 = vsub.f32 1.5, %v2811
        %v2813 = vmul.f32 %v2808, %v2812
        %vm2814 = vweird.f32 %v2807
        %vm2815 = vweird.f32 %v2808
        %vm2816 = vmor %vm2814, %vm2815
        %v2817 = vsel %vm2816, %v2808, %v2813
        %v2818 = vmul.f32 %v2806, %v2817
        %v2819 = vld [vmem:[%s6 + $0x4b] sm:$0x1]
        %v2820 = vmul.f32 %v2818, %v2819
        %v2821 = vld [vmem:[%s6 + $0x4c] sm:$0x1]
        %v2822 = vadd.f32 %v2820, %v2821
        %s2823 = scalar_lea.vmem %s3, 160
        %v2824 = vld [vmem:[%s2823] sm:$0xff]
        %v2825 = vld [vmem:[%s2823 + $0x8] sm:$0xff]
        %v2826 = vld [vmem:[%s2823 + $0x10] sm:$0xff]
        %v2827 = vld [vmem:[%s2823 + $0x18] sm:$0xff]
        %v2828 = vld [vmem:[%s7 + $0x5] sm:$0x1]
        %v2830 = vsel %vm431, %v2822, 0
        %2832 = vmatpush.msra.mxu0 0.0
        %2833 = vmatpush.msra.mxu0 0.0
        %2834 = vmatpush.msra.mxu0 0.0
        %2835 = vmatpush.msra.mxu0 0.0
        %2836 = vmatpush.msra.mxu0 0.0
        %2837 = vmatpush.msra.mxu0 0.0
        %2838 = vmatpush.msra.mxu0 0.0
        %2839 = vmatpush.msra.mxu0 0.0
        %2840 = vmatpush.msra.mxu0 0.0
        %2841 = vmatpush.msra.mxu0 0.0
        %2842 = vmatpush.msra.mxu0 0.0
        %2843 = vmatpush.msra.mxu0 0.0
        %2844 = vmatpush.msra.mxu0 %v2827
        %2845 = vmatpush.msra.mxu0 %v2826
        %2846 = vmatpush.msra.mxu0 %v2825
        %2847 = vmatpush.msra.mxu0 %v2824
        %2848 = vmatmul.f32.gmra.mxu0 %v2830
        %v2849 = vpop.f32.mrf.mxu0
        %v2850 = vadd.f32 %v2828, %v2849
        %2851 = vdwg.mxu0
        %v2852 = vmul.f32 %v2850, 0.5
        %v2853 = vmul.f32 %v2850, 0.044715
        %v2854 = vmul.f32 %v2853, %v2850
        %v2855 = vmul.f32 %v2854, %v2850
        %v2856 = vadd.f32 %v2850, %v2855
        %v2857 = vmul.f32 %v2856, 0.7978846
        %v2858 = vtanh.pop %v2857
        %v2859 = vadd.f32 %v2858, 1.0
        %v2860 = vmul.f32 %v2852, %v2859
        %s2861 = scalar_lea.vmem %s4, 640
        %v2862 = vld [vmem:[%s2861] sm:$0xff]
        %v2863 = vld [vmem:[%s2861 + $0x8] sm:$0xff]
        %v2864 = vld [vmem:[%s2861 + $0x10] sm:$0xff]
        %v2865 = vld [vmem:[%s2861 + $0x18] sm:$0xff]
        %v2866 = vld [vmem:[%s2861 + $0x20] sm:$0xff]
        %v2867 = vld [vmem:[%s2861 + $0x28] sm:$0xff]
        %v2868 = vld [vmem:[%s2861 + $0x30] sm:$0xff]
        %v2869 = vld [vmem:[%s2861 + $0x38] sm:$0xff]
        %v2870 = vld [vmem:[%s2861 + $0x40] sm:$0xff]
        %v2871 = vld [vmem:[%s2861 + $0x48] sm:$0xff]
        %v2872 = vld [vmem:[%s2861 + $0x50] sm:$0xff]
        %v2873 = vld [vmem:[%s2861 + $0x58] sm:$0xff]
        %v2874 = vld [vmem:[%s2861 + $0x60] sm:$0xff]
        %v2875 = vld [vmem:[%s2861 + $0x68] sm:$0xff]
        %v2876 = vld [vmem:[%s2861 + $0x70] sm:$0xff]
        %v2877 = vld [vmem:[%s2861 + $0x78] sm:$0xff]
        %v2878 = vld [vmem:[%s6 + $0x4f] sm:$0x1]
        %2879 = vmatpush.msra.mxu0 %v2877
        %2880 = vmatpush.msra.mxu0 %v2876
        %2881 = vmatpush.msra.mxu0 %v2875
        %2882 = vmatpush.msra.mxu0 %v2874
        %2883 = vmatpush.msra.mxu0 %v2873
        %2884 = vmatpush.msra.mxu0 %v2872
        %2885 = vmatpush.msra.mxu0 %v2871
        %2886 = vmatpush.msra.mxu0 %v2870
        %2887 = vmatpush.msra.mxu0 %v2869
        %2888 = vmatpush.msra.mxu0 %v2868
        %2889 = vmatpush.msra.mxu0 %v2867
        %2890 = vmatpush.msra.mxu0 %v2866
        %2891 = vmatpush.msra.mxu0 %v2865
        %2892 = vmatpush.msra.mxu0 %v2864
        %2893 = vmatpush.msra.mxu0 %v2863
        %2894 = vmatpush.msra.mxu0 %v2862
        %2895 = vmatmul.f32.gmra.mxu0 %v2860
        %v2896 = vpop.f32.mrf.mxu0
        %v2897 = vadd.f32 %v2878, %v2896
        %2898 = vdwg.mxu0
        %v2899 = vld [vmem:[%s6 + $0x51] sm:$0x1]
        %v2900 = vmul.f32 %v2899, %v2897
        %v2901 = vadd.f32 %v2822, %v2900
        %v2902 = vsel %vm2537, %v2901, 0.0
        %2903 = vadd.xlane.f32.xlu0 %v2902
        %v2904 = vpop.xlane.xlu0 %2903
        %v2905 = vmul.f32 %v2901, %v2901
        %v2906 = vsel %vm2537, %v2905, 0.0
        %2907 = vadd.xlane.f32.xlu0 %v2906
        %v2908 = vpop.xlane.xlu0 %2907
        %v2909 = vmul.f32 %v2904, 0.03125
        %v2910 = vmul.f32 %v2908, 0.03125
        %v2911 = vmul.f32 %v2909, %v2909
        %v2912 = vsub.f32 %v2910, %v2911
        %v2913 = vsub.f32 %v2901, %v2909
        %v2914 = vadd.f32 %v2912, 1e-05
        %v2915 = vrsqrt.pop %v2914
        %v2916 = vmul.f32 %v2915, %v2914
        %v2917 = vmul.f32 %v2916, %v2915
        %v2918 = vmul.f32 0.5, %v2917
        %v2919 = vsub.f32 1.5, %v2918
        %v2920 = vmul.f32 %v2915, %v2919
        %vm2921 = vweird.f32 %v2914
        %vm2922 = vweird.f32 %v2915
        %vm2923 = vmor %vm2921, %vm2922
        %v2924 = vsel %vm2923, %v2915, %v2920
        %v2925 = vmul.f32 %v2913, %v2924
        %v2926 = vld [vmem:[%s6 + $0x4d] sm:$0x1]
        %v2927 = vmul.f32 %v2925, %v2926
        %v2928 = vld [vmem:[%s6 + $0x4e] sm:$0x1]
        %v2929 = vadd.f32 %v2927, %v2928
        %v2930 = vld [vmem:[%s8] sm:$0xff]
        %v2931 = vld [vmem:[%s8 + $0x8] sm:$0xff]
        %v2932 = vld [vmem:[%s8 + $0x10] sm:$0xff]
        %v2933 = vld [vmem:[%s8 + $0x18] sm:$0xff]
        %v2934 = vld [vmem:[%s7 + $0x6] sm:$0x1]
        %v2936 = vsel %vm431, %v2929, 0
        %2938 = vmatpush.msra.mxu0 0.0
        %2939 = vmatpush.msra.mxu0 0.0
        %2940 = vmatpush.msra.mxu0 0.0
        %2941 = vmatpush.msra.mxu0 0.0
        %2942 = vmatpush.msra.mxu0 0.0
        %2943 = vmatpush.msra.mxu0 0.0
        %2944 = vmatpush.msra.mxu0 0.0
        %2945 = vmatpush.msra.mxu0 0.0
        %2946 = vmatpush.msra.mxu0 0.0
        %2947 = vmatpush.msra.mxu0 0.0
        %2948 = vmatpush.msra.mxu0 0.0
        %2949 = vmatpush.msra.mxu0 0.0
        %2950 = vmatpush.msra.mxu0 %v2933
        %2951 = vmatpush.msra.mxu0 %v2932
        %2952 = vmatpush.msra.mxu0 %v2931
        %2953 = vmatpush.msra.mxu0 %v2930
        %2954 = vmatmul.f32.gmra.mxu0 %v2936
        %v2955 = vpop.f32.mrf.mxu0
        %v2956 = vadd.f32 %v2934, %v2955
        %2957 = vdwg.mxu0
        %2958 = vst [vmem:[%s322] sm:$0x1] %v2956
        %s2959 = sand.u32 %s225, 1
        %s2960 = scalar_lea.sflag [#allocation3], %s2959
        %s2961 = sand.u32 %s225, 1
        %s2962 = scalar_lea.vmem [#allocation2], %s2961
        // Predicated region
        $region57: #{model_forward.1} parent=55 // pred_check
          %p2963 = pneg %p235
        $region58: #{model_forward.1} parent=55 // pred_check_branch
          %2965 = sbr.rel (%p2963) target = $region60
        $region59: #{model_forward.1} parent=55 // pred_region
          %2967 = vsyncadd %s2960, 0
          %s2968 = scalar_lea.hbm %s9, %s23
          %s2970 = sshll.u32 %s2962, 4
          %s2971 = int_to_ptr.vmem [resolvable:$true] %s2970
          %s2972 = sshll.u32 %s2968, 4
          %s2973 = int_to_ptr.hbm [resolvable:$true] %s2972
          %2975 = dma.vmem_to_hbm [thread:$0]  %s2971, 16, %s2973, %s2960
        $region60: #{model_forward.1} parent=55 // pred_fallthru
          _
      $region56: #{model_forward.1} parent=5 // pred_fallthru
        _
      %p2976 = scmp.le.s32.totalorder 2, %s18
      // Predicated region
      $region61: #{model_forward.1} parent=5 // pred_check
        %p2977 = pneg %p2976
      $region62: #{model_forward.1} parent=5 // pred_check_branch
        %2979 = sbr.rel (%p2977) target = $region64
      $region63: #{model_forward.1} parent=5 // pred_region
        %s2980 = ssub.s32 %s18, 2
        // Predicated region
        $region65: #{model_forward.1} parent=63 // pred_check
          %p2981 = pneg %p241
        $region66: #{model_forward.1} parent=63 // pred_check_branch
          %2983 = sbr.rel (%p2981) target = $region68
        $region67: #{model_forward.1} parent=63 // pred_region
          %s2984 = sand.u32 %s226, 1
          %s2985 = scalar_lea.sflag [#allocation3], %s2984
          %s2986 = sand.u32 %s226, 1
          %s2987 = scalar_lea.vmem [#allocation2], %s2986
          %2989 = dma.done %s2985, 16
        $region68: #{model_forward.1} parent=63 // pred_fallthru
          _
      $region64: #{model_forward.1} parent=5 // pred_fallthru
        _
    $region6: #{model_forward.1} parent=1 // loop_footer
      %s22 = sadd.s32 1, %s18
    $region7: #{model_forward.1} parent=1 // loop_footer_branch
      %17 = sbr.rel target = $region3
    $region8: #{model_forward.1} parent=1 // loop_exit
      _
    %2990 = vsyncpa [#allocation3], 1
    %s2991 = scalar_lea.sflag [#allocation3], 1
    %2992 = vsyncpa %s2991, 1

</llo_original>
